<compile_context>
chip_gen: v7x
topology: tpu7x:2x2x1
jax: 0.10.0
libtpu: 0.0.40
codegen_flags: <defaults>
</compile_context>

<pallas_src>
import functools

import jax
import jax.numpy as jnp
from jax.experimental import pallas as pl
from jax.experimental.pallas import tpu as pltpu


def _round_up(x, m):
    return ((x + m - 1) // m) * m


def _mean_pool_regressor_kernel(hs_ref, mask_ref, w_ref, b_ref, out_ref,
                                acc_ref, den_ref, *, n_pad):
    """Grid (B//tb, S_pad//ts): batch axis 'parallel', sequence axis reduction.

    hs_ref  : (tb, ts, H)  input dtype — roberta last_hidden_state tile
    mask_ref: (tb, ts, 1)  f32         — attention_mask tile
    w_ref   : (1, H)       f32         — regressor weight, lane-dense
    b_ref   : (1, 1)       f32 SMEM    — regressor bias
    out_ref : (tb, 1)      f32         — logits (resident across the S axis)
    acc_ref : (tb, H)      f32 VMEM    — running sum_s mask * hs
    den_ref : (tb, 1)      f32 VMEM    — running sum_s clamp(mask, 1e-9)
    n_pad   : static int               — wrapper-side sequence padding length
    """
    j = pl.program_id(1)

    @pl.when(j == 0)
    def _init():
        acc_ref[...] = jnp.zeros_like(acc_ref)
        den_ref[...] = jnp.zeros_like(den_ref)

    hs = hs_ref[...].astype(jnp.float32)     # cast happens in-kernel only
    mask = mask_ref[...]                     # (tb, ts, 1) f32

    # Masked hidden-sum on the VPU (multiply + sublane-axis reduce): the big
    # activation tile is touched exactly once; MXU/extended slot stays free
    # and there is no reshape / lane-1 intermediate.
    acc_ref[...] += jnp.sum(hs * mask, axis=1)                        # (tb, H)
    # This module clamps the per-element mask BEFORE the sequence sum:
    # torch.clamp(mask[..., None], min=1e-9).sum(axis=1)
    den_ref[...] += jnp.sum(jnp.maximum(mask, 1e-9), axis=1)          # (tb, 1)

    @pl.when(j == pl.num_programs(1) - 1)
    def _finalize():
        den = den_ref[...]
        if n_pad:  # static: remove the clamp terms added by wrapper seq padding
            den = den - n_pad * 1e-9
        # dropout: identity in eval mode.
        # regressor: (acc / den) @ W^T + b == lane_reduce(acc * w) / den + b
        num = jnp.sum(acc_ref[...] * w_ref[...], axis=1, keepdims=True)
        out_ref[...] = (num / den + b_ref[0, 0]).astype(out_ref.dtype)


def _pick_batch_tile(B, block_b):
    """Batch tile: multiple of 8 dividing B (or full B). Keeps >= 2 batch
    blocks when B >= 16 so the 'parallel' axis can shard across both v7x TCs."""
    if B < 8 or B % 8 != 0:
        return B
    tb = max((min(block_b, B) // 8) * 8, 8)
    while B % tb != 0:
        tb -= 8
    while B >= 16 and B // tb < 2 and tb > 8:
        tb -= 8
        while B % tb != 0:
            tb -= 8
    return tb


def _pick_seq_tile(S, tb, H, itemsize, block_s, hs_block_budget):
    """Sequence tile ts (a multiple of 128, or the full S) plus the padded
    sequence length S_pad (a multiple of ts). ts is sized so one hs block
    stays under `hs_block_budget` bytes."""
    max_ts = hs_block_budget // max(tb * H * itemsize, 1)
    max_ts = min(max_ts, block_s)
    max_ts = max((max_ts // 128) * 128, 128)
    if S <= max_ts:
        return S, S                           # single full-S block (always legal)
    for ts in range(max_ts, 127, -128):
        if S % ts == 0:
            return ts, S                      # tiles S exactly, no padding
    return max_ts, pl.cdiv(S, max_ts) * max_ts  # rare: pad S up to a tile multiple


def _vmem_capacity_bytes():
    try:
        return int(pltpu.get_tpu_info().vmem_capacity_bytes)
    except Exception:
        return 64 << 20                       # conservative: v7x per-core VMEM


def roberta_mean_pooler_head(last_hidden_state, attention_mask, weight, bias,
                             *, block_b=8, block_s=1024):
    """last_hidden_state: (B, S, H), attention_mask: (B, S),
    weight: (1, H) | (H, 1) | (H,), bias: scalar-like  ->  logits (B, 1) f32.

    The activations are streamed in their own dtype (no wrapper cast pass);
    pass bf16 activations only when the backbone already produces bf16.
    Accumulation is always f32 inside the kernel."""
    B, S, H = last_hidden_state.shape
    in_dtype = jnp.dtype(last_hidden_state.dtype)
    itemsize = in_dtype.itemsize

    # Small operands (traffic ~ hs / H): lane-dense f32 weight, f32 mask, bias.
    w = jnp.asarray(weight, dtype=jnp.float32).reshape(1, H)
    b = jnp.asarray(bias, dtype=jnp.float32).reshape(1, 1)
    mask3 = attention_mask.astype(jnp.float32).reshape(B, S, 1)

    # Per-generation VMEM budget: ~75% of physical, capped at 96 MiB
    # (v5e/v6e: 128 MiB -> 96 MiB target; v7x: 64 MiB -> 48 MiB target).
    vmem_target = min(_vmem_capacity_bytes() * 3 // 4, 96 << 20)
    hs_block_budget = max((vmem_target - (8 << 20)) * 2 // 5, 4 << 20)

    tb = _pick_batch_tile(B, block_b)
    ts, S_pad = _pick_seq_tile(S, tb, H, itemsize, block_s, hs_block_budget)
    n_pad = S_pad - S

    hs = last_hidden_state
    if n_pad:
        # Rare path (S not tileable by a 128-multiple): one extra HBM pass.
        # Pad rows carry mask = 0; the kernel subtracts their 1e-9 clamp terms.
        hs = jnp.pad(hs, ((0, 0), (0, n_pad), (0, 0)))
        mask3 = jnp.pad(mask3, ((0, 0), (0, n_pad), (0, 0)))

    grid = (B // tb, S_pad // ts)

    # Scoped-VMEM: double-buffered hs + lane-padded mask blocks + constants +
    # accumulators + headroom; capped at the per-generation target.
    hs_block_bytes = tb * ts * H * itemsize
    mask_block_bytes = max(tb, 8) * _round_up(ts, 8) * 128 * 4   # lane-padded
    fixed_bytes = (8 * max(H, 128) * 4              # (1, H) weight tile
                   + max(tb, 8) * max(H, 128) * 4   # (tb, H) accumulator
                   + 3 * max(tb, 8) * 128 * 4)      # den scratch + out block
    vmem_limit = 2 * (hs_block_bytes + mask_block_bytes) + fixed_bytes + (4 << 20)
    vmem_limit = int(min(max(vmem_limit, 16 << 20), vmem_target))

    cost = pl.CostEstimate(
        flops=2 * B * S_pad * H + 3 * B * H,
        transcendentals=0,
        bytes_accessed=(hs.size * itemsize + mask3.size * 4 + w.size * 4
                        + b.size * 4 + B * 4),
    )

    kernel = functools.partial(_mean_pool_regressor_kernel, n_pad=n_pad)

    return pl.pallas_call(
        kernel,
        out_shape=jax.ShapeDtypeStruct((B, 1), jnp.float32),
        grid_spec=pltpu.PrefetchScalarGridSpec(
            num_scalar_prefetch=0,
            grid=grid,
            in_specs=[
                pl.BlockSpec((tb, ts, H), lambda i, j: (i, j, 0)),
                pl.BlockSpec((tb, ts, 1), lambda i, j: (i, j, 0)),
                pl.BlockSpec((1, H), lambda i, j: (0, 0)),
                pl.BlockSpec(memory_space=pltpu.MemorySpace.SMEM),
            ],
            out_specs=pl.BlockSpec((tb, 1), lambda i, j: (i, 0)),
            scratch_shapes=[
                pltpu.VMEM((tb, H), jnp.float32),   # masked hidden-sum acc
                pltpu.VMEM((tb, 1), jnp.float32),   # clamped-mask sum acc
            ],
        ),
        compiler_params=pltpu.CompilerParams(
            dimension_semantics=("parallel", "arbitrary"),
            vmem_limit_bytes=vmem_limit,
        ),
        cost_estimate=cost,
    )(hs, mask3, w, b)


def reference_head(last_hidden_state, attention_mask, weight, bias):
    """Pure-JAX reference mirroring the PyTorch forward exactly (eval mode)."""
    hs = last_hidden_state.astype(jnp.float32)
    mask = attention_mask.astype(jnp.float32)[:, :, None]
    masked = hs * mask
    num_tokens = jnp.clip(mask, 1e-9, None)
    mean_emb = masked.sum(axis=1) / num_tokens.sum(axis=1)
    w = jnp.asarray(weight, jnp.float32).reshape(1, -1)
    b = jnp.asarray(bias, jnp.float32).reshape(1, 1)
    return mean_emb @ w.T + b


if __name__ == "__main__":
    B, S, H = 16, 384, 256   # small synthetic shapes (real RoBERTa: H=768/1024)

    key = jax.random.PRNGKey(0)
    k_hs, k_w, k_b = jax.random.split(key, 3)

    # Synthetic deterministic "roberta last_hidden_state" (see TODO above).
    last_hidden_state = jax.random.normal(k_hs, (B, S, H), dtype=jnp.float32)

    # Varied deterministic sequence lengths (incl. a full and an empty row).
    lengths = jnp.array([(i * 53) % (S + 1) for i in range(B)], dtype=jnp.int32)
    lengths = lengths.at[0].set(S).at[1].set(0)
    attention_mask = (jnp.arange(S)[None, :] < lengths[:, None]).astype(jnp.float32)

    # Regressor parameters (nn.Linear(hidden_size, 1)): weight (1, H), bias (1,).
    weight = jax.random.normal(k_w, (1, H), dtype=jnp.float32) / jnp.sqrt(H)
    bias = jax.random.normal(k_b, (1,), dtype=jnp.float32) * 0.01

    ref = reference_head(last_hidden_state, attention_mask, weight, bias)

    # (1) Default tiles: full-S block per batch block, grid (2, 1).
    out = roberta_mean_pooler_head(last_hidden_state, attention_mask, weight, bias)
    out = jax.block_until_ready(out)
    assert out.shape == (B, 1)
    assert jnp.allclose(out, ref, atol=1e-5, rtol=1e-4), \
        float(jnp.max(jnp.abs(out - ref)))

    # (2) Forced small sequence tile: multi-step streamed reduction, grid (2, 3).
    out_t = roberta_mean_pooler_head(last_hidden_state, attention_mask, weight,
                                     bias, block_s=128)
    out_t = jax.block_until_ready(out_t)
    assert jnp.allclose(out_t, ref, atol=1e-5, rtol=1e-4)

    # (3) Ragged S (not a multiple of 128): wrapper pads, mask neutralizes pad.
    S_rag = 200
    hs_r, mask_r = last_hidden_state[:, :S_rag], attention_mask[:, :S_rag]
    ref_r = reference_head(hs_r, mask_r, weight, bias)
    out_r = roberta_mean_pooler_head(hs_r, mask_r, weight, bias, block_s=128)
    out_r = jax.block_until_ready(out_r)
    assert jnp.allclose(out_r, ref_r, atol=1e-5, rtol=1e-4)

    # (4) bf16 activations (i.e. a bf16 backbone) stream directly — the wrapper
    # does NOT cast; f32 accumulation stays inside the kernel.
    hs_bf16 = last_hidden_state.astype(jnp.bfloat16)
    ref_bf16 = reference_head(hs_bf16, attention_mask, weight, bias)
    out_bf16 = roberta_mean_pooler_head(hs_bf16, attention_mask, weight, bias,
                                        block_s=128)
    out_bf16 = jax.block_until_ready(out_bf16)
    assert jnp.allclose(out_bf16, ref_bf16, atol=1e-3, rtol=1e-2)

    print("KERNEL_OK")
</pallas_src>

<mosaic_0001>
module attributes {stable_mosaic.version = 11 : i64} {
  func.func @_mean_pool_regressor_kernel(%arg0: i32, %arg1: i32, %arg2: memref<8x384x256xf32, #tpu.memory_space<vmem>>, %arg3: memref<8x384x1xf32, #tpu.memory_space<vmem>>, %arg4: memref<1x256xf32, #tpu.memory_space<vmem>>, %arg5: memref<1x1xf32, #tpu.memory_space<smem>>, %arg6: memref<8x1xf32, #tpu.memory_space<vmem>>, %arg7: memref<8x256xf32, #tpu.memory_space<vmem>>, %arg8: memref<8x1xf32, #tpu.memory_space<vmem>>) attributes {dimension_semantics = [#tpu.dimension_semantics<parallel>, #tpu.dimension_semantics<arbitrary>], iteration_bounds = array<i64: 2, 1>, scalar_prefetch = 0 : i64, scratch_operands = 2 : i64, tpu.core_type = #tpu.core_type<tc>, window_params = [{transform_indices = @transform_0, window_bounds = array<i64: 8, 384, 256>}, {transform_indices = @transform_1, window_bounds = array<i64: 8, 384, 1>}, {pipeline_mode = #tpu.pipeline_mode<synchronous>, transform_indices = @transform_2, window_bounds = array<i64: 1, 256>}, {transform_indices = @transform_3, window_bounds = array<i64: 1, 1>}, {transform_indices = @transform_4, window_bounds = array<i64: 8, 1>}]} {
    %c0_i32 = arith.constant 0 : i32
    %0 = arith.cmpi eq, %arg1, %c0_i32 : i32
    %1 = arith.extui %0 : i1 to i32
    %c0_i32_0 = arith.constant 0 : i32
    %2 = arith.cmpi ne, %1, %c0_i32_0 : i32
    scf.if %2 {
      %cst_18 = arith.constant 0.000000e+00 : f32
      %20 = vector.broadcast %cst_18 : f32 to vector<8x256xf32>
      %c0_19 = arith.constant 0 : index
      %c0_20 = arith.constant 0 : index
      %21 = vector.load %arg7[%c0_19, %c0_20] : memref<8x256xf32, #tpu.memory_space<vmem>>, vector<8x256xf32>
      tpu.vector_store %arg7[%c0_19, %c0_20], %20 {strides = array<i32>} : memref<8x256xf32, #tpu.memory_space<vmem>>, vector<8x256xf32>,
      %cst_21 = arith.constant 0.000000e+00 : f32
      %22 = vector.broadcast %cst_21 : f32 to vector<8x1xf32>
      %c0_22 = arith.constant 0 : index
      %c0_23 = arith.constant 0 : index
      %23 = vector.load %arg8[%c0_22, %c0_23] : memref<8x1xf32, #tpu.memory_space<vmem>>, vector<8x1xf32>
      tpu.vector_store %arg8[%c0_22, %c0_23], %22 {strides = array<i32>} : memref<8x1xf32, #tpu.memory_space<vmem>>, vector<8x1xf32>,
    } else {
    }
    %c0 = arith.constant 0 : index
    %c0_1 = arith.constant 0 : index
    %c0_2 = arith.constant 0 : index
    %3 = vector.load %arg2[%c0, %c0_1, %c0_2] : memref<8x384x256xf32, #tpu.memory_space<vmem>>, vector<8x384x256xf32>
    %c0_3 = arith.constant 0 : index
    %c0_4 = arith.constant 0 : index
    %c0_5 = arith.constant 0 : index
    %4 = vector.load %arg3[%c0_3, %c0_4, %c0_5] : memref<8x384x1xf32, #tpu.memory_space<vmem>>, vector<8x384x1xf32>
    %c0_6 = arith.constant 0 : index
    %c0_7 = arith.constant 0 : index
    %5 = vector.load %arg7[%c0_6, %c0_7] : memref<8x256xf32, #tpu.memory_space<vmem>>, vector<8x256xf32>
    %6 = vector.broadcast %4 : vector<8x384x1xf32> to vector<8x384x256xf32>
    %7 = arith.mulf %3, %6 : vector<8x384x256xf32>
    %cst = arith.constant dense<0.000000e+00> : vector<8x256xf32>
    %8 = vector.multi_reduction <add>, %7, %cst [1] : vector<8x384x256xf32> to vector<8x256xf32>
    %9 = arith.addf %5, %8 : vector<8x256xf32>
    %c0_8 = arith.constant 0 : index
    %c0_9 = arith.constant 0 : index
    %10 = vector.load %arg7[%c0_8, %c0_9] : memref<8x256xf32, #tpu.memory_space<vmem>>, vector<8x256xf32>
    tpu.vector_store %arg7[%c0_8, %c0_9], %9 {strides = array<i32>} : memref<8x256xf32, #tpu.memory_space<vmem>>, vector<8x256xf32>,
    %c0_10 = arith.constant 0 : index
    %c0_11 = arith.constant 0 : index
    %11 = vector.load %arg8[%c0_10, %c0_11] : memref<8x1xf32, #tpu.memory_space<vmem>>, vector<8x1xf32>
    %cst_12 = arith.constant 9.99999971E-10 : f32
    %12 = vector.broadcast %cst_12 : f32 to vector<8x384x1xf32>
    %13 = arith.maximumf %4, %12 : vector<8x384x1xf32>
    %cst_13 = arith.constant dense<0.000000e+00> : vector<8x1xf32>
    %14 = vector.multi_reduction <add>, %13, %cst_13 [1] : vector<8x384x1xf32> to vector<8x1xf32>
    %15 = arith.addf %11, %14 : vector<8x1xf32>
    %c0_14 = arith.constant 0 : index
    %c0_15 = arith.constant 0 : index
    %16 = vector.load %arg8[%c0_14, %c0_15] : memref<8x1xf32, #tpu.memory_space<vmem>>, vector<8x1xf32>
    tpu.vector_store %arg8[%c0_14, %c0_15], %15 {strides = array<i32>} : memref<8x1xf32, #tpu.memory_space<vmem>>, vector<8x1xf32>,
    %c0_i32_16 = arith.constant 0 : i32
    %17 = arith.cmpi eq, %arg1, %c0_i32_16 : i32
    %18 = arith.extui %17 : i1 to i32
    %c0_i32_17 = arith.constant 0 : i32
    %19 = arith.cmpi ne, %18, %c0_i32_17 : i32
    scf.if %19 {
      %c0_18 = arith.constant 0 : index
      %c0_19 = arith.constant 0 : index
      %20 = vector.load %arg8[%c0_18, %c0_19] : memref<8x1xf32, #tpu.memory_space<vmem>>, vector<8x1xf32>
      %c0_20 = arith.constant 0 : index
      %c0_21 = arith.constant 0 : index
      %21 = vector.load %arg7[%c0_20, %c0_21] : memref<8x256xf32, #tpu.memory_space<vmem>>, vector<8x256xf32>
      %c0_22 = arith.constant 0 : index
      %c0_23 = arith.constant 0 : index
      %22 = vector.load %arg4[%c0_22, %c0_23] : memref<1x256xf32, #tpu.memory_space<vmem>>, vector<1x256xf32>
      %23 = vector.broadcast %22 : vector<1x256xf32> to vector<8x256xf32>
      %24 = arith.mulf %21, %23 : vector<8x256xf32>
      %cst_24 = arith.constant dense<0.000000e+00> : vector<8xf32>
      %25 = vector.multi_reduction <add>, %24, %cst_24 [1] : vector<8x256xf32> to vector<8xf32>
      %26 = vector.shape_cast %25 : vector<8xf32> to vector<8x1xf32>
      %27 = arith.divf %26, %20 : vector<8x1xf32>
      %c0_25 = arith.constant 0 : index
      %c0_26 = arith.constant 0 : index
      %28 = memref.load %arg5[%c0_25, %c0_26] : memref<1x1xf32, #tpu.memory_space<smem>>
      %29 = vector.broadcast %28 : f32 to vector<8x1xf32>
      %30 = arith.addf %27, %29 : vector<8x1xf32>
      %c0_27 = arith.constant 0 : index
      %c0_28 = arith.constant 0 : index
      %31 = vector.load %arg6[%c0_27, %c0_28] : memref<8x1xf32, #tpu.memory_space<vmem>>, vector<8x1xf32>
      tpu.vector_store %arg6[%c0_27, %c0_28], %30 {strides = array<i32>} : memref<8x1xf32, #tpu.memory_space<vmem>>, vector<8x1xf32>,
    } else {
    }
    return
  }
  func.func @transform_0(%arg0: i32, %arg1: i32) -> (i32, i32, i32) {
    %c0_i32 = arith.constant 0 : i32
    %c0_i32_0 = arith.constant 0 : i32
    return %arg0, %arg1, %c0_i32 : i32, i32, i32
  }
  func.func @transform_1(%arg0: i32, %arg1: i32) -> (i32, i32, i32) {
    %c0_i32 = arith.constant 0 : i32
    %c0_i32_0 = arith.constant 0 : i32
    return %arg0, %arg1, %c0_i32 : i32, i32, i32
  }
  func.func @transform_2(%arg0: i32, %arg1: i32) -> (i32, i32) {
    %c0_i32 = arith.constant 0 : i32
    %c0_i32_0 = arith.constant 0 : i32
    %c0_i32_1 = arith.constant 0 : i32
    return %c0_i32, %c0_i32_0 : i32, i32
  }
  func.func @transform_3(%arg0: i32, %arg1: i32) -> (i32, i32) {
    %c0_i32 = arith.constant 0 : i32
    %c0_i32_0 = arith.constant 0 : i32
    %c0_i32_1 = arith.constant 0 : i32
    return %c0_i32, %c0_i32_0 : i32, i32
  }
  func.func @transform_4(%arg0: i32, %arg1: i32) -> (i32, i32) {
    %c0_i32 = arith.constant 0 : i32
    %c0_i32_0 = arith.constant 0 : i32
    return %arg0, %c0_i32 : i32, i32
  }
}

</mosaic_0001>

<llo_original>
// kernel: tpu_custom_call.1
$region0: #{tpu_custom_call.1}
  #allocation0 [shape = 'u32[]', space=smem, size = 0x4, offset = 0x4, fixed_abs, tag = 'smem constant byte address 0x4 - core index']
  #allocation1 [shape = 'u32[144,128]{1,0:T(1,128)}', space=vmem, size = 0x12000, scoped, tag = 'internal scratch']
  #allocation2 [shape = 'f32[8,256]{1,0:T(8,128)}', space=vmem, size = 0x2000, scoped, tag = 'scratch operand']
  #allocation3 [shape = 'f32[8,1]{1,0:T(8,128)}', space=vmem, size = 0x1000, scoped, tag = 'scratch operand']
  #allocation4 [shape = 'f32[1,1]{1,0:T(1,128)S(6)}', space=smem, size = 0x200, scoped, tag = 'scoped memory for tpu_custom_call.1']
  %s0 = inlined_call_operand.hbm [shape: f32[16,384,256], index: 0, kind: input, shape index: {}]
  %s1 = inlined_call_operand.vmem [shape: f32[16,384,1], index: 1, kind: input, shape index: {}]
  %s2 = inlined_call_operand.hbm [shape: f32[1,256], index: 2, kind: input, shape index: {}]
  %s3 = inlined_call_operand.<no memory space> [shape: f32[1,1], index: 3, kind: input, shape index: {}]
  %s4 = inlined_call_operand.vmem [shape: f32[16,1], index: 4, kind: output, shape index: {}]
  %s5 = sld [smem:[#allocation0]]
  $region65: #{tpu_custom_call.1} parent=0
    _
  %s7 = ssub.s32 1, %s5
  %s8 = scalar_select 0, %s7, %s5
  %9 = sst [smem:[#allocation4]] %s3
  $region1: #{tpu_custom_call.1} parent=0
    #allocation5 [shape = 'u8[6291456]{0}', space=vmem, size = 0x600000, scoped, tag = 'input window, operand 0']
    #allocation6 [shape = 's32[2]{0}', space=sflag, size = 0x8, scoped, tag = 'scoped memory for tpu_custom_call.1']
    #allocation7 [shape = 'u8[1024]{0}', space=vmem, size = 0x400, scoped, tag = 'input window, operand 2, single buffered']
    #allocation8 [shape = 's32[1]{0}', space=sflag, size = 0x4, scoped, tag = 'scoped memory for tpu_custom_call.1']
    %10 = vsyncpa [#allocation6], 0
    %s11 = scalar_lea.sflag [#allocation6], 1
    %12 = vsyncpa %s11, 0
    %13 = vsyncpa [#allocation8], 0
    loop: start=0, step=1, limit=4
    $region2: #{tpu_custom_call.1} parent=1 // loop_pre_header
      _
    $region3: #{tpu_custom_call.1} parent=1 // loop_header
      %s15 = sphi 0, %s19
      %p16 = scmp.ge.s32.totalorder %s15, 4
      %s22 = sphi 0, %s34
      %s23 = sphi 0, %s30
      %s24 = sphi 0, %s22
      %s25 = sphi 0, %s23
      %s26 = sphi 0, %s24
      %s27 = sphi 0, %s25
      %s39 = sphi 0, %s41
      %s42 = sphi 0, %s39
      %s43 = sphi 0, %s42
      %s59 = sphi 0, %s43
      %s67 = sphi 0, %s69
      %s70 = sphi 0, %s67
      %s71 = sphi 0, %s70
      %s87 = sphi 0, %s71
      %s91 = sphi 0, %s91
      %s93 = sphi 0, %s91
      %s94 = sphi 0, %s93
      %s108 = sphi 0, %s94
      %s112 = sphi 0, %s112
      %s114 = sphi 0, %s112
      %s115 = sphi 0, %s114
      %s129 = sphi 0, %s115
      %s135 = sphi 0, %s137
      %s138 = sphi 0, %s135
      %s139 = sphi 0, %s138
      %s155 = sphi 0, %s139
    $region4: #{tpu_custom_call.1} parent=1 // loop_header_branch
      %18 = sbr.rel (%p16) target = $region8
    $region5: #{tpu_custom_call.1} parent=1 // loop_body
      %s20 = ssub.s32 %s15, 1
      %s21 = ssub.s32 %s15, 2
      %s28 = sadd.s32 1, %s23
      %p29 = scmp.ge.s32.totalorder %s28, 1
      %s30 = scalar_select %p29, 0, %s28
      %s31 = sadd.s32 1, %s22
      %s32 = scalar_select %p29, %s31, %s22
      %p33 = scmp.ge.s32.totalorder %s32, 2
      %s34 = scalar_select %p33, 0, %s32
      %s35 = ssub.s32 %s22, %s34
      %s36 = ssub.s32 %s23, %s30
      %s37 = sor.u32 %s35, %s36
      %p38 = scmp.eq.s32.totalorder %s37, 0
      %s40 = sadd.s32 %s39, 1
      %s41 = scalar_select %p38, %s39, %s40
      %p44 = pneg %p38
      %p45 = scmp.eq.s32.totalorder %s15, 1
      %p46 = por %p44, %p45
      %p47 = scmp.ne.s32.totalorder %s39, %s42
      %p48 = scmp.eq.s32.totalorder %s15, 0
      %p49 = por %p47, %p48
      %p50 = scmp.ne.s32.totalorder %s39, %s42
      %p51 = scmp.eq.s32.totalorder %s20, 1
      %p52 = por %p50, %p51
      %p53 = scmp.ne.s32.totalorder %s42, %s43
      %p54 = scmp.eq.s32.totalorder %s20, 0
      %p55 = por %p53, %p54
      %p56 = scmp.ne.s32.totalorder %s42, %s43
      %p57 = scmp.eq.s32.totalorder %s21, 1
      %p58 = por %p56, %p57
      %p60 = scmp.ne.s32.totalorder %s43, %s59
      %p61 = scmp.eq.s32.totalorder %s21, 0
      %p62 = por %p60, %p61
      %s63 = ssub.s32 %s22, %s34
      %s64 = ssub.s32 %s23, %s30
      %s65 = sor.u32 %s63, %s64
      %p66 = scmp.eq.s32.totalorder %s65, 0
      %s68 = sadd.s32 %s67, 1
      %s69 = scalar_select %p66, %s67, %s68
      %p72 = pneg %p66
      %p73 = scmp.eq.s32.totalorder %s15, 1
      %p74 = por %p72, %p73
      %p75 = scmp.ne.s32.totalorder %s67, %s70
      %p76 = scmp.eq.s32.totalorder %s15, 0
      %p77 = por %p75, %p76
      %p78 = scmp.ne.s32.totalorder %s67, %s70
      %p79 = scmp.eq.s32.totalorder %s20, 1
      %p80 = por %p78, %p79
      %p81 = scmp.ne.s32.totalorder %s70, %s71
      %p82 = scmp.eq.s32.totalorder %s20, 0
      %p83 = por %p81, %p82
      %p84 = scmp.ne.s32.totalorder %s70, %s71
      %p85 = scmp.eq.s32.totalorder %s21, 1
      %p86 = por %p84, %p85
      %p88 = scmp.ne.s32.totalorder %s71, %s87
      %p89 = scmp.eq.s32.totalorder %s21, 0
      %p90 = por %p88, %p89
      %s92 = sadd.s32 %s91, 1
      %p95 = scmp.eq.s32.totalorder %s15, 1
      %p96 = scmp.ne.s32.totalorder %s91, %s93
      %p97 = scmp.eq.s32.totalorder %s15, 0
      %p98 = por %p96, %p97
      %p99 = scmp.ne.s32.totalorder %s91, %s93
      %p100 = scmp.eq.s32.totalorder %s20, 1
      %p101 = por %p99, %p100
      %p102 = scmp.ne.s32.totalorder %s93, %s94
      %p103 = scmp.eq.s32.totalorder %s20, 0
      %p104 = por %p102, %p103
      %p105 = scmp.ne.s32.totalorder %s93, %s94
      %p106 = scmp.eq.s32.totalorder %s21, 1
      %p107 = por %p105, %p106
      %p109 = scmp.ne.s32.totalorder %s94, %s108
      %p110 = scmp.eq.s32.totalorder %s21, 0
      %p111 = por %p109, %p110
      %s113 = sadd.s32 %s112, 1
      %p116 = scmp.eq.s32.totalorder %s15, 1
      %p117 = scmp.ne.s32.totalorder %s112, %s114
      %p118 = scmp.eq.s32.totalorder %s15, 0
      %p119 = por %p117, %p118
      %p120 = scmp.ne.s32.totalorder %s112, %s114
      %p121 = scmp.eq.s32.totalorder %s20, 1
      %p122 = por %p120, %p121
      %p123 = scmp.ne.s32.totalorder %s114, %s115
      %p124 = scmp.eq.s32.totalorder %s20, 0
      %p125 = por %p123, %p124
      %p126 = scmp.ne.s32.totalorder %s114, %s115
      %p127 = scmp.eq.s32.totalorder %s21, 1
      %p128 = por %p126, %p127
      %p130 = scmp.ne.s32.totalorder %s115, %s129
      %p131 = scmp.eq.s32.totalorder %s21, 0
      %p132 = por %p130, %p131
      %s133 = ssub.s32 %s22, %s34
      %p134 = scmp.eq.s32.totalorder %s133, 0
      %s136 = sadd.s32 %s135, 1
      %s137 = scalar_select %p134, %s135, %s136
      %p140 = pneg %p134
      %p141 = scmp.eq.s32.totalorder %s15, 1
      %p142 = por %p140, %p141
      %p143 = scmp.ne.s32.totalorder %s135, %s138
      %p144 = scmp.eq.s32.totalorder %s15, 0
      %p145 = por %p143, %p144
      %p146 = scmp.ne.s32.totalorder %s135, %s138
      %p147 = scmp.eq.s32.totalorder %s20, 1
      %p148 = por %p146, %p147
      %p149 = scmp.ne.s32.totalorder %s138, %s139
      %p150 = scmp.eq.s32.totalorder %s20, 0
      %p151 = por %p149, %p150
      %p152 = scmp.ne.s32.totalorder %s138, %s139
      %p153 = scmp.eq.s32.totalorder %s21, 1
      %p154 = por %p152, %p153
      %p156 = scmp.ne.s32.totalorder %s139, %s155
      %p157 = scmp.eq.s32.totalorder %s21, 0
      %p158 = por %p156, %p157
      %p159 = scmp.le.s32.totalorder 1, %s15
      %p160 = scmp.lt.s32.totalorder %s15, 3
      %p161 = pnand %p159, %p160
      %p162 = pneg %p161
      // Predicated region
      $region9: #{tpu_custom_call.1} parent=5 // pred_check
        _
      $region10: #{tpu_custom_call.1} parent=5 // pred_check_branch
        %164 = sbr.rel (%p161) target = $region12
      $region11: #{tpu_custom_call.1} parent=5 // pred_region
        %s165 = ssub.s32 %s15, 1
        // Predicated region
        $region13: #{tpu_custom_call.1} parent=11 // pred_check
          %p166 = pneg %p104
        $region14: #{tpu_custom_call.1} parent=11 // pred_check_branch
          %168 = sbr.rel (%p166) target = $region16
        $region15: #{tpu_custom_call.1} parent=11 // pred_region
          %s170 = ssub.s32 32, 32
          %171 = vsyncadd [#allocation8], %s170
          %s173 = sshll.u32 [#allocation7], 4
          %s174 = int_to_ptr.vmem [resolvable:$true] %s173
          %176 = dma.hbm_to_vmem [thread:$0]  %s2, 32, %s174, [#allocation8]
        $region16: #{tpu_custom_call.1} parent=11 // pred_fallthru
          _
        // Predicated region
        $region17: #{tpu_custom_call.1} parent=11 // pred_check
          %p177 = pneg %p125
        $region18: #{tpu_custom_call.1} parent=11 // pred_check_branch
          %179 = sbr.rel (%p177) target = $region20
        $region19: #{tpu_custom_call.1} parent=11 // pred_region
          _
        $region20: #{tpu_custom_call.1} parent=11 // pred_fallthru
          _
      $region12: #{tpu_custom_call.1} parent=5 // pred_fallthru
        _
      %p180 = scmp.lt.s32.totalorder %s15, 2
      // Predicated region
      $region21: #{tpu_custom_call.1} parent=5 // pred_check
        %p181 = pneg %p180
      $region22: #{tpu_custom_call.1} parent=5 // pred_check_branch
        %183 = sbr.rel (%p181) target = $region24
      $region23: #{tpu_custom_call.1} parent=5 // pred_region
        // Predicated region
        $region25: #{tpu_custom_call.1} parent=23 // pred_check
          %p184 = pneg %p49
        $region26: #{tpu_custom_call.1} parent=23 // pred_check_branch
          %186 = sbr.rel (%p184) target = $region28
        $region27: #{tpu_custom_call.1} parent=23 // pred_region
          %s187 = sand.u32 %s39, 1
          %s188 = scalar_lea.sflag [#allocation6], %s187
          %s189 = sand.u32 %s39, 1
          %s190 = smul.addr %s189, 6144
          %s191 = scalar_lea.vmem [#allocation5], %s190
          %s192 = smul.u32 8, %s22
          %s193 = smul.u32 48, %s23
          %s195 = ssub.s32 98304, 98304
          %196 = vsyncadd %s188, %s195
          %s197 = smul.addr %s193, 2
          %s198 = smul.addr %s192, 96
          %s199 = sadd.s32 %s197, %s198
          %s200 = smul.addr %s199, 128
          %s201 = scalar_lea.hbm %s0, %s200
          %s202 = sshll.u32 %s191, 4
          %s203 = int_to_ptr.vmem [resolvable:$true] %s202
          %208 = dma.hbm_to_vmem [thread:$0]  %s201, 98304, %s203, %s188, 256, 256, 16
        $region28: #{tpu_custom_call.1} parent=23 // pred_fallthru
          _
        // Predicated region
        $region29: #{tpu_custom_call.1} parent=23 // pred_check
          %p209 = pneg %p77
        $region30: #{tpu_custom_call.1} parent=23 // pred_check_branch
          %211 = sbr.rel (%p209) target = $region32
        $region31: #{tpu_custom_call.1} parent=23 // pred_region
          %s212 = smul.u32 8, %s22
          %s213 = smul.u32 48, %s23
          %p214 = scmp.lt.s32.totalorder %s212, 15
          %s215 = scalar_select %p214, %s212, 15
          %p216 = scmp.lt.s32.totalorder %s213, 47
          %s217 = scalar_select %p216, %s213, 47
          %s218 = smul.addr %s215, 48
          %s219 = sadd.s32 %s217, %s218
          %s220 = smul.addr %s219, 8
          %s221 = scalar_lea.vmem %s1, %s220
          %s222 = smul.u32 8, %s22
          %s223 = smul.u32 48, %s23
        $region32: #{tpu_custom_call.1} parent=23 // pred_fallthru
          _
      $region24: #{tpu_custom_call.1} parent=5 // pred_fallthru
        _
      %p224 = scmp.le.s32.totalorder 1, %s15
      %p225 = scmp.lt.s32.totalorder %s15, 3
      %p226 = pnand %p224, %p225
      %p227 = pneg %p226
      // Predicated region
      $region33: #{tpu_custom_call.1} parent=5 // pred_check
        _
      $region34: #{tpu_custom_call.1} parent=5 // pred_check_branch
        %229 = sbr.rel (%p226) target = $region36
      $region35: #{tpu_custom_call.1} parent=5 // pred_region
        %s230 = ssub.s32 %s15, 1
        %s231 = sand.u32 %s42, 1
        %s232 = scalar_lea.sflag [#allocation6], %s231
        %s233 = sand.u32 %s42, 1
        %s234 = smul.addr %s233, 6144
        %s235 = scalar_lea.vmem [#allocation5], %s234
        // Predicated region
        $region37: #{tpu_custom_call.1} parent=35 // pred_check
          %p236 = pneg %p55
        $region38: #{tpu_custom_call.1} parent=35 // pred_check_branch
          %238 = sbr.rel (%p236) target = $region40
        $region39: #{tpu_custom_call.1} parent=35 // pred_region
          %239 = dma.done %s232, 98304
        $region40: #{tpu_custom_call.1} parent=35 // pred_fallthru
          _
        // Predicated region
        $region41: #{tpu_custom_call.1} parent=35 // pred_check
          %p240 = pneg %p104
        $region42: #{tpu_custom_call.1} parent=35 // pred_check_branch
          %242 = sbr.rel (%p240) target = $region44
        $region43: #{tpu_custom_call.1} parent=35 // pred_region
          %243 = dma.done [#allocation8], 32
        $region44: #{tpu_custom_call.1} parent=35 // pred_fallthru
          _
        %s244 = sand.u32 %s42, 1
        %s245 = scalar_lea.sflag [#allocation6], %s244
        %s246 = sand.u32 %s42, 1
        %s247 = smul.addr %s246, 6144
        %s248 = scalar_lea.vmem [#allocation5], %s247
        %p249 = pneg %p55
        %p250 = pneg %p52
        %s251 = smul.u32 8, %s24
        %s252 = smul.u32 48, %s25
        %p253 = scmp.lt.s32.totalorder %s251, 15
        %s254 = scalar_select %p253, %s251, 15
        %p255 = scmp.lt.s32.totalorder %s252, 47
        %s256 = scalar_select %p255, %s252, 47
        %s257 = smul.addr %s254, 48
        %s258 = sadd.s32 %s256, %s257
        %s259 = smul.addr %s258, 8
        %s260 = scalar_lea.vmem %s1, %s259
        %p261 = pneg %p83
        %p262 = pneg %p80
        %p263 = pneg %p104
        %p264 = pneg %p101
        %p265 = pneg %p125
        %p266 = pneg %p122
        %p267 = pneg %p151
        %p268 = pneg %p148
        %p269 = scmp.lt.s32.totalorder %s24, 1
        %s270 = scalar_select %p269, %s24, 1
        %s271 = smul.addr %s270, 8
        %s272 = scalar_lea.vmem %s4, %s271
        %s273 = smul.u32 8, %s24
        %s274 = smul.u32 48, %s25
        %s275 = smul.u32 8, %s24
        %s276 = smul.u32 48, %s25
        %p277 = scmp.lt.s32.totalorder %s275, 15
        %s278 = scalar_select %p277, %s275, 15
        %p279 = scmp.lt.s32.totalorder %s276, 47
        %s280 = scalar_select %p279, %s276, 47
        %s281 = smul.addr %s278, 48
        %s282 = sadd.s32 %s280, %s281
        %s283 = smul.addr %s282, 8
        %s284 = scalar_lea.vmem %s1, %s283
        %s285 = smul.u32 8, %s24
        %s286 = smul.u32 48, %s25
        %p287 = scmp.lt.s32.totalorder %s24, 1
        %s288 = scalar_select %p287, %s24, 1
        %s289 = smul.addr %s288, 8
        %s290 = scalar_lea.vmem %s4, %s289
        %p291 = scmp.eq.s32.totalorder %s25, 0
        // Predicated region
        $region45: #{tpu_custom_call.1} parent=35 // pred_check
          %p292 = pneg %p291
        $region46: #{tpu_custom_call.1} parent=35 // pred_check_branch
          %294 = sbr.rel (%p292) target = $region48
        $region47: #{tpu_custom_call.1} parent=35 // pred_region
          %295 = vst [vmem:[#allocation2] sm:$0xff] 0.0
          %296 = vst [vmem:[#allocation2 + $0x8] sm:$0xff] 0.0
          %vm297 = vcmask 7168
          %298 = vst.msk [vmem:[#allocation3] sm:$0xff] %vm297, 0.0
        $region48: #{tpu_custom_call.1} parent=35 // pred_fallthru
          _
        %v299 = vld [vmem:[%s235] sm:$0xff]
        %v300 = vld [vmem:[%s235 + $0x8] sm:$0xff]
        %v301 = vld [vmem:[%s235 + $0x10] sm:$0xff]
        %v302 = vld [vmem:[%s235 + $0x18] sm:$0xff]
        %v303 = vld [vmem:[%s235 + $0x20] sm:$0xff]
        %v304 = vld [vmem:[%s235 + $0x28] sm:$0xff]
        %v305 = vld [vmem:[%s235 + $0x30] sm:$0xff]
        %v306 = vld [vmem:[%s235 + $0x38] sm:$0xff]
        %v307 = vld [vmem:[%s235 + $0x40] sm:$0xff]
        %v308 = vld [vmem:[%s235 + $0x48] sm:$0xff]
        %v309 = vld [vmem:[%s235 + $0x50] sm:$0xff]
        %v310 = vld [vmem:[%s235 + $0x58] sm:$0xff]
        %v311 = vld [vmem:[%s235 + $0x60] sm:$0xff]
        %v312 = vld [vmem:[%s235 + $0x68] sm:$0xff]
        %v313 = vld [vmem:[%s235 + $0x70] sm:$0xff]
        %v314 = vld [vmem:[%s235 + $0x78] sm:$0xff]
        %v315 = vld [vmem:[%s235 + $0x80] sm:$0xff]
        %v316 = vld [vmem:[%s235 + $0x88] sm:$0xff]
        %v317 = vld [vmem:[%s235 + $0x90] sm:$0xff]
        %v318 = vld [vmem:[%s235 + $0x98] sm:$0xff]
        %v319 = vld [vmem:[%s235 + $0xa0] sm:$0xff]
        %v320 = vld [vmem:[%s235 + $0xa8] sm:$0xff]
        %v321 = vld [vmem:[%s235 + $0xb0] sm:$0xff]
        %v322 = vld [vmem:[%s235 + $0xb8] sm:$0xff]
        %v323 = vld [vmem:[%s235 + $0xc0] sm:$0xff]
        %v324 = vld [vmem:[%s235 + $0xc8] sm:$0xff]
        %v325 = vld [vmem:[%s235 + $0xd0] sm:$0xff]
        %v326 = vld [vmem:[%s235 + $0xd8] sm:$0xff]
        %v327 = vld [vmem:[%s235 + $0xe0] sm:$0xff]
        %v328 = vld [vmem:[%s235 + $0xe8] sm:$0xff]
        %v329 = vld [vmem:[%s235 + $0xf0] sm:$0xff]
        %v330 = vld [vmem:[%s235 + $0xf8] sm:$0xff]
        %v331 = vld [vmem:[%s235 + $0x100] sm:$0xff]
        %v332 = vld [vmem:[%s235 + $0x108] sm:$0xff]
        %v333 = vld [vmem:[%s235 + $0x110] sm:$0xff]
        %v334 = vld [vmem:[%s235 + $0x118] sm:$0xff]
        %v335 = vld [vmem:[%s235 + $0x120] sm:$0xff]
        %v336 = vld [vmem:[%s235 + $0x128] sm:$0xff]
        %v337 = vld [vmem:[%s235 + $0x130] sm:$0xff]
        %v338 = vld [vmem:[%s235 + $0x138] sm:$0xff]
        %v339 = vld [vmem:[%s235 + $0x140] sm:$0xff]
        %v340 = vld [vmem:[%s235 + $0x148] sm:$0xff]
        %v341 = vld [vmem:[%s235 + $0x150] sm:$0xff]
        %v342 = vld [vmem:[%s235 + $0x158] sm:$0xff]
        %v343 = vld [vmem:[%s235 + $0x160] sm:$0xff]
        %v344 = vld [vmem:[%s235 + $0x168] sm:$0xff]
        %v345 = vld [vmem:[%s235 + $0x170] sm:$0xff]
        %v346 = vld [vmem:[%s235 + $0x178] sm:$0xff]
        %v347 = vld [vmem:[%s235 + $0x180] sm:$0xff]
        %v348 = vld [vmem:[%s235 + $0x188] sm:$0xff]
        %v349 = vld [vmem:[%s235 + $0x190] sm:$0xff]
        %v350 = vld [vmem:[%s235 + $0x198] sm:$0xff]
        %v351 = vld [vmem:[%s235 + $0x1a0] sm:$0xff]
        %v352 = vld [vmem:[%s235 + $0x1a8] sm:$0xff]
        %v353 = vld [vmem:[%s235 + $0x1b0] sm:$0xff]
        %v354 = vld [vmem:[%s235 + $0x1b8] sm:$0xff]
        %v355 = vld [vmem:[%s235 + $0x1c0] sm:$0xff]
        %v356 = vld [vmem:[%s235 + $0x1c8] sm:$0xff]
        %v357 = vld [vmem:[%s235 + $0x1d0] sm:$0xff]
        %v358 = vld [vmem:[%s235 + $0x1d8] sm:$0xff]
        %v359 = vld [vmem:[%s235 + $0x1e0] sm:$0xff]
        %v360 = vld [vmem:[%s235 + $0x1e8] sm:$0xff]
        %v361 = vld [vmem:[%s235 + $0x1f0] sm:$0xff]
        %v362 = vld [vmem:[%s235 + $0x1f8] sm:$0xff]
        %v363 = vld [vmem:[%s235 + $0x200] sm:$0xff]
        %v364 = vld [vmem:[%s235 + $0x208] sm:$0xff]
        %v365 = vld [vmem:[%s235 + $0x210] sm:$0xff]
        %v366 = vld [vmem:[%s235 + $0x218] sm:$0xff]
        %v367 = vld [vmem:[%s235 + $0x220] sm:$0xff]
        %v368 = vld [vmem:[%s235 + $0x228] sm:$0xff]
        %v369 = vld [vmem:[%s235 + $0x230] sm:$0xff]
        %v370 = vld [vmem:[%s235 + $0x238] sm:$0xff]
        %v371 = vld [vmem:[%s235 + $0x240] sm:$0xff]
        %v372 = vld [vmem:[%s235 + $0x248] sm:$0xff]
        %v373 = vld [vmem:[%s235 + $0x250] sm:$0xff]
        %v374 = vld [vmem:[%s235 + $0x258] sm:$0xff]
        %v375 = vld [vmem:[%s235 + $0x260] sm:$0xff]
        %v376 = vld [vmem:[%s235 + $0x268] sm:$0xff]
        %v377 = vld [vmem:[%s235 + $0x270] sm:$0xff]
        %v378 = vld [vmem:[%s235 + $0x278] sm:$0xff]
        %v379 = vld [vmem:[%s235 + $0x280] sm:$0xff]
        %v380 = vld [vmem:[%s235 + $0x288] sm:$0xff]
        %v381 = vld [vmem:[%s235 + $0x290] sm:$0xff]
        %v382 = vld [vmem:[%s235 + $0x298] sm:$0xff]
        %v383 = vld [vmem:[%s235 + $0x2a0] sm:$0xff]
        %v384 = vld [vmem:[%s235 + $0x2a8] sm:$0xff]
        %v385 = vld [vmem:[%s235 + $0x2b0] sm:$0xff]
        %v386 = vld [vmem:[%s235 + $0x2b8] sm:$0xff]
        %v387 = vld [vmem:[%s235 + $0x2c0] sm:$0xff]
        %v388 = vld [vmem:[%s235 + $0x2c8] sm:$0xff]
        %v389 = vld [vmem:[%s235 + $0x2d0] sm:$0xff]
        %v390 = vld [vmem:[%s235 + $0x2d8] sm:$0xff]
        %v391 = vld [vmem:[%s235 + $0x2e0] sm:$0xff]
        %v392 = vld [vmem:[%s235 + $0x2e8] sm:$0xff]
        %v393 = vld [vmem:[%s235 + $0x2f0] sm:$0xff]
        %v394 = vld [vmem:[%s235 + $0x2f8] sm:$0xff]
        %v395 = vld [vmem:[%s235 + $0x300] sm:$0xff]
        %v396 = vld [vmem:[%s235 + $0x308] sm:$0xff]
        %v397 = vld [vmem:[%s235 + $0x310] sm:$0xff]
        %v398 = vld [vmem:[%s235 + $0x318] sm:$0xff]
        %v399 = vld [vmem:[%s235 + $0x320] sm:$0xff]
        %v400 = vld [vmem:[%s235 + $0x328] sm:$0xff]
        %v401 = vld [vmem:[%s235 + $0x330] sm:$0xff]
        %v402 = vld [vmem:[%s235 + $0x338] sm:$0xff]
        %v403 = vld [vmem:[%s235 + $0x340] sm:$0xff]
        %v404 = vld [vmem:[%s235 + $0x348] sm:$0xff]
        %v405 = vld [vmem:[%s235 + $0x350] sm:$0xff]
        %v406 = vld [vmem:[%s235 + $0x358] sm:$0xff]
        %v407 = vld [vmem:[%s235 + $0x360] sm:$0xff]
        %v408 = vld [vmem:[%s235 + $0x368] sm:$0xff]
        %v409 = vld [vmem:[%s235 + $0x370] sm:$0xff]
        %v410 = vld [vmem:[%s235 + $0x378] sm:$0xff]
        %v411 = vld [vmem:[%s235 + $0x380] sm:$0xff]
        %v412 = vld [vmem:[%s235 + $0x388] sm:$0xff]
        %v413 = vld [vmem:[%s235 + $0x390] sm:$0xff]
        %v414 = vld [vmem:[%s235 + $0x398] sm:$0xff]
        %v415 = vld [vmem:[%s235 + $0x3a0] sm:$0xff]
        %v416 = vld [vmem:[%s235 + $0x3a8] sm:$0xff]
        %v417 = vld [vmem:[%s235 + $0x3b0] sm:$0xff]
        %v418 = vld [vmem:[%s235 + $0x3b8] sm:$0xff]
        %v419 = vld [vmem:[%s235 + $0x3c0] sm:$0xff]
        %v420 = vld [vmem:[%s235 + $0x3c8] sm:$0xff]
        %v421 = vld [vmem:[%s235 + $0x3d0] sm:$0xff]
        %v422 = vld [vmem:[%s235 + $0x3d8] sm:$0xff]
        %v423 = vld [vmem:[%s235 + $0x3e0] sm:$0xff]
        %v424 = vld [vmem:[%s235 + $0x3e8] sm:$0xff]
        %v425 = vld [vmem:[%s235 + $0x3f0] sm:$0xff]
        %v426 = vld [vmem:[%s235 + $0x3f8] sm:$0xff]
        %v427 = vld [vmem:[%s235 + $0x400] sm:$0xff]
        %v428 = vld [vmem:[%s235 + $0x408] sm:$0xff]
        %v429 = vld [vmem:[%s235 + $0x410] sm:$0xff]
        %v430 = vld [vmem:[%s235 + $0x418] sm:$0xff]
        %v431 = vld [vmem:[%s235 + $0x420] sm:$0xff]
        %v432 = vld [vmem:[%s235 + $0x428] sm:$0xff]
        %v433 = vld [vmem:[%s235 + $0x430] sm:$0xff]
        %v434 = vld [vmem:[%s235 + $0x438] sm:$0xff]
        %v435 = vld [vmem:[%s235 + $0x440] sm:$0xff]
        %v436 = vld [vmem:[%s235 + $0x448] sm:$0xff]
        %v437 = vld [vmem:[%s235 + $0x450] sm:$0xff]
        %v438 = vld [vmem:[%s235 + $0x458] sm:$0xff]
        %v439 = vld [vmem:[%s235 + $0x460] sm:$0xff]
        %v440 = vld [vmem:[%s235 + $0x468] sm:$0xff]
        %v441 = vld [vmem:[%s235 + $0x470] sm:$0xff]
        %v442 = vld [vmem:[%s235 + $0x478] sm:$0xff]
        %v443 = vld [vmem:[%s235 + $0x480] sm:$0xff]
        %v444 = vld [vmem:[%s235 + $0x488] sm:$0xff]
        %v445 = vld [vmem:[%s235 + $0x490] sm:$0xff]
        %v446 = vld [vmem:[%s235 + $0x498] sm:$0xff]
        %v447 = vld [vmem:[%s235 + $0x4a0] sm:$0xff]
        %v448 = vld [vmem:[%s235 + $0x4a8] sm:$0xff]
        %v449 = vld [vmem:[%s235 + $0x4b0] sm:$0xff]
        %v450 = vld [vmem:[%s235 + $0x4b8] sm:$0xff]
        %v451 = vld [vmem:[%s235 + $0x4c0] sm:$0xff]
        %v452 = vld [vmem:[%s235 + $0x4c8] sm:$0xff]
        %v453 = vld [vmem:[%s235 + $0x4d0] sm:$0xff]
        %v454 = vld [vmem:[%s235 + $0x4d8] sm:$0xff]
        %v455 = vld [vmem:[%s235 + $0x4e0] sm:$0xff]
        %v456 = vld [vmem:[%s235 + $0x4e8] sm:$0xff]
        %v457 = vld [vmem:[%s235 + $0x4f0] sm:$0xff]
        %v458 = vld [vmem:[%s235 + $0x4f8] sm:$0xff]
        %v459 = vld [vmem:[%s235 + $0x500] sm:$0xff]
        %v460 = vld [vmem:[%s235 + $0x508] sm:$0xff]
        %v461 = vld [vmem:[%s235 + $0x510] sm:$0xff]
        %v462 = vld [vmem:[%s235 + $0x518] sm:$0xff]
        %v463 = vld [vmem:[%s235 + $0x520] sm:$0xff]
        %v464 = vld [vmem:[%s235 + $0x528] sm:$0xff]
        %v465 = vld [vmem:[%s235 + $0x530] sm:$0xff]
        %v466 = vld [vmem:[%s235 + $0x538] sm:$0xff]
        %v467 = vld [vmem:[%s235 + $0x540] sm:$0xff]
        %v468 = vld [vmem:[%s235 + $0x548] sm:$0xff]
        %v469 = vld [vmem:[%s235 + $0x550] sm:$0xff]
        %v470 = vld [vmem:[%s235 + $0x558] sm:$0xff]
        %v471 = vld [vmem:[%s235 + $0x560] sm:$0xff]
        %v472 = vld [vmem:[%s235 + $0x568] sm:$0xff]
        %v473 = vld [vmem:[%s235 + $0x570] sm:$0xff]
        %v474 = vld [vmem:[%s235 + $0x578] sm:$0xff]
        %v475 = vld [vmem:[%s235 + $0x580] sm:$0xff]
        %v476 = vld [vmem:[%s235 + $0x588] sm:$0xff]
        %v477 = vld [vmem:[%s235 + $0x590] sm:$0xff]
        %v478 = vld [vmem:[%s235 + $0x598] sm:$0xff]
        %v479 = vld [vmem:[%s235 + $0x5a0] sm:$0xff]
        %v480 = vld [vmem:[%s235 + $0x5a8] sm:$0xff]
        %v481 = vld [vmem:[%s235 + $0x5b0] sm:$0xff]
        %v482 = vld [vmem:[%s235 + $0x5b8] sm:$0xff]
        %v483 = vld [vmem:[%s235 + $0x5c0] sm:$0xff]
        %v484 = vld [vmem:[%s235 + $0x5c8] sm:$0xff]
        %v485 = vld [vmem:[%s235 + $0x5d0] sm:$0xff]
        %v486 = vld [vmem:[%s235 + $0x5d8] sm:$0xff]
        %v487 = vld [vmem:[%s235 + $0x5e0] sm:$0xff]
        %v488 = vld [vmem:[%s235 + $0x5e8] sm:$0xff]
        %v489 = vld [vmem:[%s235 + $0x5f0] sm:$0xff]
        %v490 = vld [vmem:[%s235 + $0x5f8] sm:$0xff]
        %v491 = vld [vmem:[%s235 + $0x600] sm:$0xff]
        %v492 = vld [vmem:[%s235 + $0x608] sm:$0xff]
        %v493 = vld [vmem:[%s235 + $0x610] sm:$0xff]
        %v494 = vld [vmem:[%s235 + $0x618] sm:$0xff]
        %v495 = vld [vmem:[%s235 + $0x620] sm:$0xff]
        %v496 = vld [vmem:[%s235 + $0x628] sm:$0xff]
        %v497 = vld [vmem:[%s235 + $0x630] sm:$0xff]
        %v498 = vld [vmem:[%s235 + $0x638] sm:$0xff]
        %v499 = vld [vmem:[%s235 + $0x640] sm:$0xff]
        %v500 = vld [vmem:[%s235 + $0x648] sm:$0xff]
        %v501 = vld [vmem:[%s235 + $0x650] sm:$0xff]
        %v502 = vld [vmem:[%s235 + $0x658] sm:$0xff]
        %v503 = vld [vmem:[%s235 + $0x660] sm:$0xff]
        %v504 = vld [vmem:[%s235 + $0x668] sm:$0xff]
        %v505 = vld [vmem:[%s235 + $0x670] sm:$0xff]
        %v506 = vld [vmem:[%s235 + $0x678] sm:$0xff]
        %v507 = vld [vmem:[%s235 + $0x680] sm:$0xff]
        %v508 = vld [vmem:[%s235 + $0x688] sm:$0xff]
        %v509 = vld [vmem:[%s235 + $0x690] sm:$0xff]
        %v510 = vld [vmem:[%s235 + $0x698] sm:$0xff]
        %v511 = vld [vmem:[%s235 + $0x6a0] sm:$0xff]
        %v512 = vld [vmem:[%s235 + $0x6a8] sm:$0xff]
        %v513 = vld [vmem:[%s235 + $0x6b0] sm:$0xff]
        %v514 = vld [vmem:[%s235 + $0x6b8] sm:$0xff]
        %v515 = vld [vmem:[%s235 + $0x6c0] sm:$0xff]
        %v516 = vld [vmem:[%s235 + $0x6c8] sm:$0xff]
        %v517 = vld [vmem:[%s235 + $0x6d0] sm:$0xff]
        %v518 = vld [vmem:[%s235 + $0x6d8] sm:$0xff]
        %v519 = vld [vmem:[%s235 + $0x6e0] sm:$0xff]
        %v520 = vld [vmem:[%s235 + $0x6e8] sm:$0xff]
        %v521 = vld [vmem:[%s235 + $0x6f0] sm:$0xff]
        %v522 = vld [vmem:[%s235 + $0x6f8] sm:$0xff]
        %v523 = vld [vmem:[%s235 + $0x700] sm:$0xff]
        %v524 = vld [vmem:[%s235 + $0x708] sm:$0xff]
        %v525 = vld [vmem:[%s235 + $0x710] sm:$0xff]
        %v526 = vld [vmem:[%s235 + $0x718] sm:$0xff]
        %v527 = vld [vmem:[%s235 + $0x720] sm:$0xff]
        %v528 = vld [vmem:[%s235 + $0x728] sm:$0xff]
        %v529 = vld [vmem:[%s235 + $0x730] sm:$0xff]
        %v530 = vld [vmem:[%s235 + $0x738] sm:$0xff]
        %v531 = vld [vmem:[%s235 + $0x740] sm:$0xff]
        %v532 = vld [vmem:[%s235 + $0x748] sm:$0xff]
        %v533 = vld [vmem:[%s235 + $0x750] sm:$0xff]
        %v534 = vld [vmem:[%s235 + $0x758] sm:$0xff]
        %v535 = vld [vmem:[%s235 + $0x760] sm:$0xff]
        %v536 = vld [vmem:[%s235 + $0x768] sm:$0xff]
        %v537 = vld [vmem:[%s235 + $0x770] sm:$0xff]
        %v538 = vld [vmem:[%s235 + $0x778] sm:$0xff]
        %v539 = vld [vmem:[%s235 + $0x780] sm:$0xff]
        %v540 = vld [vmem:[%s235 + $0x788] sm:$0xff]
        %v541 = vld [vmem:[%s235 + $0x790] sm:$0xff]
        %v542 = vld [vmem:[%s235 + $0x798] sm:$0xff]
        %v543 = vld [vmem:[%s235 + $0x7a0] sm:$0xff]
        %v544 = vld [vmem:[%s235 + $0x7a8] sm:$0xff]
        %v545 = vld [vmem:[%s235 + $0x7b0] sm:$0xff]
        %v546 = vld [vmem:[%s235 + $0x7b8] sm:$0xff]
        %v547 = vld [vmem:[%s235 + $0x7c0] sm:$0xff]
        %v548 = vld [vmem:[%s235 + $0x7c8] sm:$0xff]
        %v549 = vld [vmem:[%s235 + $0x7d0] sm:$0xff]
        %v550 = vld [vmem:[%s235 + $0x7d8] sm:$0xff]
        %v551 = vld [vmem:[%s235 + $0x7e0] sm:$0xff]
        %v552 = vld [vmem:[%s235 + $0x7e8] sm:$0xff]
        %v553 = vld [vmem:[%s235 + $0x7f0] sm:$0xff]
        %v554 = vld [vmem:[%s235 + $0x7f8] sm:$0xff]
        %v555 = vld [vmem:[%s235 + $0x800] sm:$0xff]
        %v556 = vld [vmem:[%s235 + $0x808] sm:$0xff]
        %v557 = vld [vmem:[%s235 + $0x810] sm:$0xff]
        %v558 = vld [vmem:[%s235 + $0x818] sm:$0xff]
        %v559 = vld [vmem:[%s235 + $0x820] sm:$0xff]
        %v560 = vld [vmem:[%s235 + $0x828] sm:$0xff]
        %v561 = vld [vmem:[%s235 + $0x830] sm:$0xff]
        %v562 = vld [vmem:[%s235 + $0x838] sm:$0xff]
        %v563 = vld [vmem:[%s235 + $0x840] sm:$0xff]
        %v564 = vld [vmem:[%s235 + $0x848] sm:$0xff]
        %v565 = vld [vmem:[%s235 + $0x850] sm:$0xff]
        %v566 = vld [vmem:[%s235 + $0x858] sm:$0xff]
        %v567 = vld [vmem:[%s235 + $0x860] sm:$0xff]
        %v568 = vld [vmem:[%s235 + $0x868] sm:$0xff]
        %v569 = vld [vmem:[%s235 + $0x870] sm:$0xff]
        %v570 = vld [vmem:[%s235 + $0x878] sm:$0xff]
        %v571 = vld [vmem:[%s235 + $0x880] sm:$0xff]
        %v572 = vld [vmem:[%s235 + $0x888] sm:$0xff]
        %v573 = vld [vmem:[%s235 + $0x890] sm:$0xff]
        %v574 = vld [vmem:[%s235 + $0x898] sm:$0xff]
        %v575 = vld [vmem:[%s235 + $0x8a0] sm:$0xff]
        %v576 = vld [vmem:[%s235 + $0x8a8] sm:$0xff]
        %v577 = vld [vmem:[%s235 + $0x8b0] sm:$0xff]
        %v578 = vld [vmem:[%s235 + $0x8b8] sm:$0xff]
        %v579 = vld [vmem:[%s235 + $0x8c0] sm:$0xff]
        %v580 = vld [vmem:[%s235 + $0x8c8] sm:$0xff]
        %v581 = vld [vmem:[%s235 + $0x8d0] sm:$0xff]
        %v582 = vld [vmem:[%s235 + $0x8d8] sm:$0xff]
        %v583 = vld [vmem:[%s235 + $0x8e0] sm:$0xff]
        %v584 = vld [vmem:[%s235 + $0x8e8] sm:$0xff]
        %v585 = vld [vmem:[%s235 + $0x8f0] sm:$0xff]
        %v586 = vld [vmem:[%s235 + $0x8f8] sm:$0xff]
        %v587 = vld [vmem:[%s235 + $0x900] sm:$0xff]
        %v588 = vld [vmem:[%s235 + $0x908] sm:$0xff]
        %v589 = vld [vmem:[%s235 + $0x910] sm:$0xff]
        %v590 = vld [vmem:[%s235 + $0x918] sm:$0xff]
        %v591 = vld [vmem:[%s235 + $0x920] sm:$0xff]
        %v592 = vld [vmem:[%s235 + $0x928] sm:$0xff]
        %v593 = vld [vmem:[%s235 + $0x930] sm:$0xff]
        %v594 = vld [vmem:[%s235 + $0x938] sm:$0xff]
        %v595 = vld [vmem:[%s235 + $0x940] sm:$0xff]
        %v596 = vld [vmem:[%s235 + $0x948] sm:$0xff]
        %v597 = vld [vmem:[%s235 + $0x950] sm:$0xff]
        %v598 = vld [vmem:[%s235 + $0x958] sm:$0xff]
        %v599 = vld [vmem:[%s235 + $0x960] sm:$0xff]
        %v600 = vld [vmem:[%s235 + $0x968] sm:$0xff]
        %v601 = vld [vmem:[%s235 + $0x970] sm:$0xff]
        %v602 = vld [vmem:[%s235 + $0x978] sm:$0xff]
        %v603 = vld [vmem:[%s235 + $0x980] sm:$0xff]
        %v604 = vld [vmem:[%s235 + $0x988] sm:$0xff]
        %v605 = vld [vmem:[%s235 + $0x990] sm:$0xff]
        %v606 = vld [vmem:[%s235 + $0x998] sm:$0xff]
        %v607 = vld [vmem:[%s235 + $0x9a0] sm:$0xff]
        %v608 = vld [vmem:[%s235 + $0x9a8] sm:$0xff]
        %v609 = vld [vmem:[%s235 + $0x9b0] sm:$0xff]
        %v610 = vld [vmem:[%s235 + $0x9b8] sm:$0xff]
        %v611 = vld [vmem:[%s235 + $0x9c0] sm:$0xff]
        %v612 = vld [vmem:[%s235 + $0x9c8] sm:$0xff]
        %v613 = vld [vmem:[%s235 + $0x9d0] sm:$0xff]
        %v614 = vld [vmem:[%s235 + $0x9d8] sm:$0xff]
        %v615 = vld [vmem:[%s235 + $0x9e0] sm:$0xff]
        %v616 = vld [vmem:[%s235 + $0x9e8] sm:$0xff]
        %v617 = vld [vmem:[%s235 + $0x9f0] sm:$0xff]
        %v618 = vld [vmem:[%s235 + $0x9f8] sm:$0xff]
        %v619 = vld [vmem:[%s235 + $0xa00] sm:$0xff]
        %v620 = vld [vmem:[%s235 + $0xa08] sm:$0xff]
        %v621 = vld [vmem:[%s235 + $0xa10] sm:$0xff]
        %v622 = vld [vmem:[%s235 + $0xa18] sm:$0xff]
        %v623 = vld [vmem:[%s235 + $0xa20] sm:$0xff]
        %v624 = vld [vmem:[%s235 + $0xa28] sm:$0xff]
        %v625 = vld [vmem:[%s235 + $0xa30] sm:$0xff]
        %v626 = vld [vmem:[%s235 + $0xa38] sm:$0xff]
        %v627 = vld [vmem:[%s235 + $0xa40] sm:$0xff]
        %v628 = vld [vmem:[%s235 + $0xa48] sm:$0xff]
        %v629 = vld [vmem:[%s235 + $0xa50] sm:$0xff]
        %v630 = vld [vmem:[%s235 + $0xa58] sm:$0xff]
        %v631 = vld [vmem:[%s235 + $0xa60] sm:$0xff]
        %v632 = vld [vmem:[%s235 + $0xa68] sm:$0xff]
        %v633 = vld [vmem:[%s235 + $0xa70] sm:$0xff]
        %v634 = vld [vmem:[%s235 + $0xa78] sm:$0xff]
        %v635 = vld [vmem:[%s235 + $0xa80] sm:$0xff]
        %v636 = vld [vmem:[%s235 + $0xa88] sm:$0xff]
        %v637 = vld [vmem:[%s235 + $0xa90] sm:$0xff]
        %v638 = vld [vmem:[%s235 + $0xa98] sm:$0xff]
        %v639 = vld [vmem:[%s235 + $0xaa0] sm:$0xff]
        %v640 = vld [vmem:[%s235 + $0xaa8] sm:$0xff]
        %v641 = vld [vmem:[%s235 + $0xab0] sm:$0xff]
        %v642 = vld [vmem:[%s235 + $0xab8] sm:$0xff]
        %v643 = vld [vmem:[%s235 + $0xac0] sm:$0xff]
        %v644 = vld [vmem:[%s235 + $0xac8] sm:$0xff]
        %v645 = vld [vmem:[%s235 + $0xad0] sm:$0xff]
        %v646 = vld [vmem:[%s235 + $0xad8] sm:$0xff]
        %v647 = vld [vmem:[%s235 + $0xae0] sm:$0xff]
        %v648 = vld [vmem:[%s235 + $0xae8] sm:$0xff]
        %v649 = vld [vmem:[%s235 + $0xaf0] sm:$0xff]
        %v650 = vld [vmem:[%s235 + $0xaf8] sm:$0xff]
        %v651 = vld [vmem:[%s235 + $0xb00] sm:$0xff]
        %v652 = vld [vmem:[%s235 + $0xb08] sm:$0xff]
        %v653 = vld [vmem:[%s235 + $0xb10] sm:$0xff]
        %v654 = vld [vmem:[%s235 + $0xb18] sm:$0xff]
        %v655 = vld [vmem:[%s235 + $0xb20] sm:$0xff]
        %v656 = vld [vmem:[%s235 + $0xb28] sm:$0xff]
        %v657 = vld [vmem:[%s235 + $0xb30] sm:$0xff]
        %v658 = vld [vmem:[%s235 + $0xb38] sm:$0xff]
        %v659 = vld [vmem:[%s235 + $0xb40] sm:$0xff]
        %v660 = vld [vmem:[%s235 + $0xb48] sm:$0xff]
        %v661 = vld [vmem:[%s235 + $0xb50] sm:$0xff]
        %v662 = vld [vmem:[%s235 + $0xb58] sm:$0xff]
        %v663 = vld [vmem:[%s235 + $0xb60] sm:$0xff]
        %v664 = vld [vmem:[%s235 + $0xb68] sm:$0xff]
        %v665 = vld [vmem:[%s235 + $0xb70] sm:$0xff]
        %v666 = vld [vmem:[%s235 + $0xb78] sm:$0xff]
        %v667 = vld [vmem:[%s235 + $0xb80] sm:$0xff]
        %v668 = vld [vmem:[%s235 + $0xb88] sm:$0xff]
        %v669 = vld [vmem:[%s235 + $0xb90] sm:$0xff]
        %v670 = vld [vmem:[%s235 + $0xb98] sm:$0xff]
        %v671 = vld [vmem:[%s235 + $0xba0] sm:$0xff]
        %v672 = vld [vmem:[%s235 + $0xba8] sm:$0xff]
        %v673 = vld [vmem:[%s235 + $0xbb0] sm:$0xff]
        %v674 = vld [vmem:[%s235 + $0xbb8] sm:$0xff]
        %v675 = vld [vmem:[%s235 + $0xbc0] sm:$0xff]
        %v676 = vld [vmem:[%s235 + $0xbc8] sm:$0xff]
        %v677 = vld [vmem:[%s235 + $0xbd0] sm:$0xff]
        %v678 = vld [vmem:[%s235 + $0xbd8] sm:$0xff]
        %v679 = vld [vmem:[%s235 + $0xbe0] sm:$0xff]
        %v680 = vld [vmem:[%s235 + $0xbe8] sm:$0xff]
        %v681 = vld [vmem:[%s235 + $0xbf0] sm:$0xff]
        %v682 = vld [vmem:[%s235 + $0xbf8] sm:$0xff]
        %v683 = vld [vmem:[%s235 + $0xc00] sm:$0xff]
        %v684 = vld [vmem:[%s235 + $0xc08] sm:$0xff]
        %v685 = vld [vmem:[%s235 + $0xc10] sm:$0xff]
        %v686 = vld [vmem:[%s235 + $0xc18] sm:$0xff]
        %v687 = vld [vmem:[%s235 + $0xc20] sm:$0xff]
        %v688 = vld [vmem:[%s235 + $0xc28] sm:$0xff]
        %v689 = vld [vmem:[%s235 + $0xc30] sm:$0xff]
        %v690 = vld [vmem:[%s235 + $0xc38] sm:$0xff]
        %v691 = vld [vmem:[%s235 + $0xc40] sm:$0xff]
        %v692 = vld [vmem:[%s235 + $0xc48] sm:$0xff]
        %v693 = vld [vmem:[%s235 + $0xc50] sm:$0xff]
        %v694 = vld [vmem:[%s235 + $0xc58] sm:$0xff]
        %v695 = vld [vmem:[%s235 + $0xc60] sm:$0xff]
        %v696 = vld [vmem:[%s235 + $0xc68] sm:$0xff]
        %v697 = vld [vmem:[%s235 + $0xc70] sm:$0xff]
        %v698 = vld [vmem:[%s235 + $0xc78] sm:$0xff]
        %v699 = vld [vmem:[%s235 + $0xc80] sm:$0xff]
        %v700 = vld [vmem:[%s235 + $0xc88] sm:$0xff]
        %v701 = vld [vmem:[%s235 + $0xc90] sm:$0xff]
        %v702 = vld [vmem:[%s235 + $0xc98] sm:$0xff]
        %v703 = vld [vmem:[%s235 + $0xca0] sm:$0xff]
        %v704 = vld [vmem:[%s235 + $0xca8] sm:$0xff]
        %v705 = vld [vmem:[%s235 + $0xcb0] sm:$0xff]
        %v706 = vld [vmem:[%s235 + $0xcb8] sm:$0xff]
        %v707 = vld [vmem:[%s235 + $0xcc0] sm:$0xff]
        %v708 = vld [vmem:[%s235 + $0xcc8] sm:$0xff]
        %v709 = vld [vmem:[%s235 + $0xcd0] sm:$0xff]
        %v710 = vld [vmem:[%s235 + $0xcd8] sm:$0xff]
        %v711 = vld [vmem:[%s235 + $0xce0] sm:$0xff]
        %v712 = vld [vmem:[%s235 + $0xce8] sm:$0xff]
        %v713 = vld [vmem:[%s235 + $0xcf0] sm:$0xff]
        %v714 = vld [vmem:[%s235 + $0xcf8] sm:$0xff]
        %v715 = vld [vmem:[%s235 + $0xd00] sm:$0xff]
        %v716 = vld [vmem:[%s235 + $0xd08] sm:$0xff]
        %v717 = vld [vmem:[%s235 + $0xd10] sm:$0xff]
        %v718 = vld [vmem:[%s235 + $0xd18] sm:$0xff]
        %v719 = vld [vmem:[%s235 + $0xd20] sm:$0xff]
        %v720 = vld [vmem:[%s235 + $0xd28] sm:$0xff]
        %v721 = vld [vmem:[%s235 + $0xd30] sm:$0xff]
        %v722 = vld [vmem:[%s235 + $0xd38] sm:$0xff]
        %v723 = vld [vmem:[%s235 + $0xd40] sm:$0xff]
        %v724 = vld [vmem:[%s235 + $0xd48] sm:$0xff]
        %v725 = vld [vmem:[%s235 + $0xd50] sm:$0xff]
        %v726 = vld [vmem:[%s235 + $0xd58] sm:$0xff]
        %v727 = vld [vmem:[%s235 + $0xd60] sm:$0xff]
        %v728 = vld [vmem:[%s235 + $0xd68] sm:$0xff]
        %v729 = vld [vmem:[%s235 + $0xd70] sm:$0xff]
        %v730 = vld [vmem:[%s235 + $0xd78] sm:$0xff]
        %v731 = vld [vmem:[%s235 + $0xd80] sm:$0xff]
        %v732 = vld [vmem:[%s235 + $0xd88] sm:$0xff]
        %v733 = vld [vmem:[%s235 + $0xd90] sm:$0xff]
        %v734 = vld [vmem:[%s235 + $0xd98] sm:$0xff]
        %v735 = vld [vmem:[%s235 + $0xda0] sm:$0xff]
        %v736 = vld [vmem:[%s235 + $0xda8] sm:$0xff]
        %v737 = vld [vmem:[%s235 + $0xdb0] sm:$0xff]
        %v738 = vld [vmem:[%s235 + $0xdb8] sm:$0xff]
        %v739 = vld [vmem:[%s235 + $0xdc0] sm:$0xff]
        %v740 = vld [vmem:[%s235 + $0xdc8] sm:$0xff]
        %v741 = vld [vmem:[%s235 + $0xdd0] sm:$0xff]
        %v742 = vld [vmem:[%s235 + $0xdd8] sm:$0xff]
        %v743 = vld [vmem:[%s235 + $0xde0] sm:$0xff]
        %v744 = vld [vmem:[%s235 + $0xde8] sm:$0xff]
        %v745 = vld [vmem:[%s235 + $0xdf0] sm:$0xff]
        %v746 = vld [vmem:[%s235 + $0xdf8] sm:$0xff]
        %v747 = vld [vmem:[%s235 + $0xe00] sm:$0xff]
        %v748 = vld [vmem:[%s235 + $0xe08] sm:$0xff]
        %v749 = vld [vmem:[%s235 + $0xe10] sm:$0xff]
        %v750 = vld [vmem:[%s235 + $0xe18] sm:$0xff]
        %v751 = vld [vmem:[%s235 + $0xe20] sm:$0xff]
        %v752 = vld [vmem:[%s235 + $0xe28] sm:$0xff]
        %v753 = vld [vmem:[%s235 + $0xe30] sm:$0xff]
        %v754 = vld [vmem:[%s235 + $0xe38] sm:$0xff]
        %v755 = vld [vmem:[%s235 + $0xe40] sm:$0xff]
        %v756 = vld [vmem:[%s235 + $0xe48] sm:$0xff]
        %v757 = vld [vmem:[%s235 + $0xe50] sm:$0xff]
        %v758 = vld [vmem:[%s235 + $0xe58] sm:$0xff]
        %v759 = vld [vmem:[%s235 + $0xe60] sm:$0xff]
        %v760 = vld [vmem:[%s235 + $0xe68] sm:$0xff]
        %v761 = vld [vmem:[%s235 + $0xe70] sm:$0xff]
        %v762 = vld [vmem:[%s235 + $0xe78] sm:$0xff]
        %v763 = vld [vmem:[%s235 + $0xe80] sm:$0xff]
        %v764 = vld [vmem:[%s235 + $0xe88] sm:$0xff]
        %v765 = vld [vmem:[%s235 + $0xe90] sm:$0xff]
        %v766 = vld [vmem:[%s235 + $0xe98] sm:$0xff]
        %v767 = vld [vmem:[%s235 + $0xea0] sm:$0xff]
        %v768 = vld [vmem:[%s235 + $0xea8] sm:$0xff]
        %v769 = vld [vmem:[%s235 + $0xeb0] sm:$0xff]
        %v770 = vld [vmem:[%s235 + $0xeb8] sm:$0xff]
        %v771 = vld [vmem:[%s235 + $0xec0] sm:$0xff]
        %v772 = vld [vmem:[%s235 + $0xec8] sm:$0xff]
        %v773 = vld [vmem:[%s235 + $0xed0] sm:$0xff]
        %v774 = vld [vmem:[%s235 + $0xed8] sm:$0xff]
        %v775 = vld [vmem:[%s235 + $0xee0] sm:$0xff]
        %v776 = vld [vmem:[%s235 + $0xee8] sm:$0xff]
        %v777 = vld [vmem:[%s235 + $0xef0] sm:$0xff]
        %v778 = vld [vmem:[%s235 + $0xef8] sm:$0xff]
        %v779 = vld [vmem:[%s235 + $0xf00] sm:$0xff]
        %v780 = vld [vmem:[%s235 + $0xf08] sm:$0xff]
        %v781 = vld [vmem:[%s235 + $0xf10] sm:$0xff]
        %v782 = vld [vmem:[%s235 + $0xf18] sm:$0xff]
        %v783 = vld [vmem:[%s235 + $0xf20] sm:$0xff]
        %v784 = vld [vmem:[%s235 + $0xf28] sm:$0xff]
        %v785 = vld [vmem:[%s235 + $0xf30] sm:$0xff]
        %v786 = vld [vmem:[%s235 + $0xf38] sm:$0xff]
        %v787 = vld [vmem:[%s235 + $0xf40] sm:$0xff]
        %v788 = vld [vmem:[%s235 + $0xf48] sm:$0xff]
        %v789 = vld [vmem:[%s235 + $0xf50] sm:$0xff]
        %v790 = vld [vmem:[%s235 + $0xf58] sm:$0xff]
        %v791 = vld [vmem:[%s235 + $0xf60] sm:$0xff]
        %v792 = vld [vmem:[%s235 + $0xf68] sm:$0xff]
        %v793 = vld [vmem:[%s235 + $0xf70] sm:$0xff]
        %v794 = vld [vmem:[%s235 + $0xf78] sm:$0xff]
        %v795 = vld [vmem:[%s235 + $0xf80] sm:$0xff]
        %v796 = vld [vmem:[%s235 + $0xf88] sm:$0xff]
        %v797 = vld [vmem:[%s235 + $0xf90] sm:$0xff]
        %v798 = vld [vmem:[%s235 + $0xf98] sm:$0xff]
        %v799 = vld [vmem:[%s235 + $0xfa0] sm:$0xff]
        %v800 = vld [vmem:[%s235 + $0xfa8] sm:$0xff]
        %v801 = vld [vmem:[%s235 + $0xfb0] sm:$0xff]
        %v802 = vld [vmem:[%s235 + $0xfb8] sm:$0xff]
        %v803 = vld [vmem:[%s235 + $0xfc0] sm:$0xff]
        %v804 = vld [vmem:[%s235 + $0xfc8] sm:$0xff]
        %v805 = vld [vmem:[%s235 + $0xfd0] sm:$0xff]
        %v806 = vld [vmem:[%s235 + $0xfd8] sm:$0xff]
        %v807 = vld [vmem:[%s235 + $0xfe0] sm:$0xff]
        %v808 = vld [vmem:[%s235 + $0xfe8] sm:$0xff]
        %v809 = vld [vmem:[%s235 + $0xff0] sm:$0xff]
        %v810 = vld [vmem:[%s235 + $0xff8] sm:$0xff]
        %v811 = vld [vmem:[%s235 + $0x1000] sm:$0xff]
        %v812 = vld [vmem:[%s235 + $0x1008] sm:$0xff]
        %v813 = vld [vmem:[%s235 + $0x1010] sm:$0xff]
        %v814 = vld [vmem:[%s235 + $0x1018] sm:$0xff]
        %v815 = vld [vmem:[%s235 + $0x1020] sm:$0xff]
        %v816 = vld [vmem:[%s235 + $0x1028] sm:$0xff]
        %v817 = vld [vmem:[%s235 + $0x1030] sm:$0xff]
        %v818 = vld [vmem:[%s235 + $0x1038] sm:$0xff]
        %v819 = vld [vmem:[%s235 + $0x1040] sm:$0xff]
        %v820 = vld [vmem:[%s235 + $0x1048] sm:$0xff]
        %v821 = vld [vmem:[%s235 + $0x1050] sm:$0xff]
        %v822 = vld [vmem:[%s235 + $0x1058] sm:$0xff]
        %v823 = vld [vmem:[%s235 + $0x1060] sm:$0xff]
        %v824 = vld [vmem:[%s235 + $0x1068] sm:$0xff]
        %v825 = vld [vmem:[%s235 + $0x1070] sm:$0xff]
        %v826 = vld [vmem:[%s235 + $0x1078] sm:$0xff]
        %v827 = vld [vmem:[%s235 + $0x1080] sm:$0xff]
        %v828 = vld [vmem:[%s235 + $0x1088] sm:$0xff]
        %v829 = vld [vmem:[%s235 + $0x1090] sm:$0xff]
        %v830 = vld [vmem:[%s235 + $0x1098] sm:$0xff]
        %v831 = vld [vmem:[%s235 + $0x10a0] sm:$0xff]
        %v832 = vld [vmem:[%s235 + $0x10a8] sm:$0xff]
        %v833 = vld [vmem:[%s235 + $0x10b0] sm:$0xff]
        %v834 = vld [vmem:[%s235 + $0x10b8] sm:$0xff]
        %v835 = vld [vmem:[%s235 + $0x10c0] sm:$0xff]
        %v836 = vld [vmem:[%s235 + $0x10c8] sm:$0xff]
        %v837 = vld [vmem:[%s235 + $0x10d0] sm:$0xff]
        %v838 = vld [vmem:[%s235 + $0x10d8] sm:$0xff]
        %v839 = vld [vmem:[%s235 + $0x10e0] sm:$0xff]
        %v840 = vld [vmem:[%s235 + $0x10e8] sm:$0xff]
        %v841 = vld [vmem:[%s235 + $0x10f0] sm:$0xff]
        %v842 = vld [vmem:[%s235 + $0x10f8] sm:$0xff]
        %v843 = vld [vmem:[%s235 + $0x1100] sm:$0xff]
        %v844 = vld [vmem:[%s235 + $0x1108] sm:$0xff]
        %v845 = vld [vmem:[%s235 + $0x1110] sm:$0xff]
        %v846 = vld [vmem:[%s235 + $0x1118] sm:$0xff]
        %v847 = vld [vmem:[%s235 + $0x1120] sm:$0xff]
        %v848 = vld [vmem:[%s235 + $0x1128] sm:$0xff]
        %v849 = vld [vmem:[%s235 + $0x1130] sm:$0xff]
        %v850 = vld [vmem:[%s235 + $0x1138] sm:$0xff]
        %v851 = vld [vmem:[%s235 + $0x1140] sm:$0xff]
        %v852 = vld [vmem:[%s235 + $0x1148] sm:$0xff]
        %v853 = vld [vmem:[%s235 + $0x1150] sm:$0xff]
        %v854 = vld [vmem:[%s235 + $0x1158] sm:$0xff]
        %v855 = vld [vmem:[%s235 + $0x1160] sm:$0xff]
        %v856 = vld [vmem:[%s235 + $0x1168] sm:$0xff]
        %v857 = vld [vmem:[%s235 + $0x1170] sm:$0xff]
        %v858 = vld [vmem:[%s235 + $0x1178] sm:$0xff]
        %v859 = vld [vmem:[%s235 + $0x1180] sm:$0xff]
        %v860 = vld [vmem:[%s235 + $0x1188] sm:$0xff]
        %v861 = vld [vmem:[%s235 + $0x1190] sm:$0xff]
        %v862 = vld [vmem:[%s235 + $0x1198] sm:$0xff]
        %v863 = vld [vmem:[%s235 + $0x11a0] sm:$0xff]
        %v864 = vld [vmem:[%s235 + $0x11a8] sm:$0xff]
        %v865 = vld [vmem:[%s235 + $0x11b0] sm:$0xff]
        %v866 = vld [vmem:[%s235 + $0x11b8] sm:$0xff]
        %v867 = vld [vmem:[%s235 + $0x11c0] sm:$0xff]
        %v868 = vld [vmem:[%s235 + $0x11c8] sm:$0xff]
        %v869 = vld [vmem:[%s235 + $0x11d0] sm:$0xff]
        %v870 = vld [vmem:[%s235 + $0x11d8] sm:$0xff]
        %v871 = vld [vmem:[%s235 + $0x11e0] sm:$0xff]
        %v872 = vld [vmem:[%s235 + $0x11e8] sm:$0xff]
        %v873 = vld [vmem:[%s235 + $0x11f0] sm:$0xff]
        %v874 = vld [vmem:[%s235 + $0x11f8] sm:$0xff]
        %v875 = vld [vmem:[%s235 + $0x1200] sm:$0xff]
        %v876 = vld [vmem:[%s235 + $0x1208] sm:$0xff]
        %v877 = vld [vmem:[%s235 + $0x1210] sm:$0xff]
        %v878 = vld [vmem:[%s235 + $0x1218] sm:$0xff]
        %v879 = vld [vmem:[%s235 + $0x1220] sm:$0xff]
        %v880 = vld [vmem:[%s235 + $0x1228] sm:$0xff]
        %v881 = vld [vmem:[%s235 + $0x1230] sm:$0xff]
        %v882 = vld [vmem:[%s235 + $0x1238] sm:$0xff]
        %v883 = vld [vmem:[%s235 + $0x1240] sm:$0xff]
        %v884 = vld [vmem:[%s235 + $0x1248] sm:$0xff]
        %v885 = vld [vmem:[%s235 + $0x1250] sm:$0xff]
        %v886 = vld [vmem:[%s235 + $0x1258] sm:$0xff]
        %v887 = vld [vmem:[%s235 + $0x1260] sm:$0xff]
        %v888 = vld [vmem:[%s235 + $0x1268] sm:$0xff]
        %v889 = vld [vmem:[%s235 + $0x1270] sm:$0xff]
        %v890 = vld [vmem:[%s235 + $0x1278] sm:$0xff]
        %v891 = vld [vmem:[%s235 + $0x1280] sm:$0xff]
        %v892 = vld [vmem:[%s235 + $0x1288] sm:$0xff]
        %v893 = vld [vmem:[%s235 + $0x1290] sm:$0xff]
        %v894 = vld [vmem:[%s235 + $0x1298] sm:$0xff]
        %v895 = vld [vmem:[%s235 + $0x12a0] sm:$0xff]
        %v896 = vld [vmem:[%s235 + $0x12a8] sm:$0xff]
        %v897 = vld [vmem:[%s235 + $0x12b0] sm:$0xff]
        %v898 = vld [vmem:[%s235 + $0x12b8] sm:$0xff]
        %v899 = vld [vmem:[%s235 + $0x12c0] sm:$0xff]
        %v900 = vld [vmem:[%s235 + $0x12c8] sm:$0xff]
        %v901 = vld [vmem:[%s235 + $0x12d0] sm:$0xff]
        %v902 = vld [vmem:[%s235 + $0x12d8] sm:$0xff]
        %v903 = vld [vmem:[%s235 + $0x12e0] sm:$0xff]
        %v904 = vld [vmem:[%s235 + $0x12e8] sm:$0xff]
        %v905 = vld [vmem:[%s235 + $0x12f0] sm:$0xff]
        %v906 = vld [vmem:[%s235 + $0x12f8] sm:$0xff]
        %v907 = vld [vmem:[%s235 + $0x1300] sm:$0xff]
        %v908 = vld [vmem:[%s235 + $0x1308] sm:$0xff]
        %v909 = vld [vmem:[%s235 + $0x1310] sm:$0xff]
        %v910 = vld [vmem:[%s235 + $0x1318] sm:$0xff]
        %v911 = vld [vmem:[%s235 + $0x1320] sm:$0xff]
        %v912 = vld [vmem:[%s235 + $0x1328] sm:$0xff]
        %v913 = vld [vmem:[%s235 + $0x1330] sm:$0xff]
        %v914 = vld [vmem:[%s235 + $0x1338] sm:$0xff]
        %v915 = vld [vmem:[%s235 + $0x1340] sm:$0xff]
        %v916 = vld [vmem:[%s235 + $0x1348] sm:$0xff]
        %v917 = vld [vmem:[%s235 + $0x1350] sm:$0xff]
        %v918 = vld [vmem:[%s235 + $0x1358] sm:$0xff]
        %v919 = vld [vmem:[%s235 + $0x1360] sm:$0xff]
        %v920 = vld [vmem:[%s235 + $0x1368] sm:$0xff]
        %v921 = vld [vmem:[%s235 + $0x1370] sm:$0xff]
        %v922 = vld [vmem:[%s235 + $0x1378] sm:$0xff]
        %v923 = vld [vmem:[%s235 + $0x1380] sm:$0xff]
        %v924 = vld [vmem:[%s235 + $0x1388] sm:$0xff]
        %v925 = vld [vmem:[%s235 + $0x1390] sm:$0xff]
        %v926 = vld [vmem:[%s235 + $0x1398] sm:$0xff]
        %v927 = vld [vmem:[%s235 + $0x13a0] sm:$0xff]
        %v928 = vld [vmem:[%s235 + $0x13a8] sm:$0xff]
        %v929 = vld [vmem:[%s235 + $0x13b0] sm:$0xff]
        %v930 = vld [vmem:[%s235 + $0x13b8] sm:$0xff]
        %v931 = vld [vmem:[%s235 + $0x13c0] sm:$0xff]
        %v932 = vld [vmem:[%s235 + $0x13c8] sm:$0xff]
        %v933 = vld [vmem:[%s235 + $0x13d0] sm:$0xff]
        %v934 = vld [vmem:[%s235 + $0x13d8] sm:$0xff]
        %v935 = vld [vmem:[%s235 + $0x13e0] sm:$0xff]
        %v936 = vld [vmem:[%s235 + $0x13e8] sm:$0xff]
        %v937 = vld [vmem:[%s235 + $0x13f0] sm:$0xff]
        %v938 = vld [vmem:[%s235 + $0x13f8] sm:$0xff]
        %v939 = vld [vmem:[%s235 + $0x1400] sm:$0xff]
        %v940 = vld [vmem:[%s235 + $0x1408] sm:$0xff]
        %v941 = vld [vmem:[%s235 + $0x1410] sm:$0xff]
        %v942 = vld [vmem:[%s235 + $0x1418] sm:$0xff]
        %v943 = vld [vmem:[%s235 + $0x1420] sm:$0xff]
        %v944 = vld [vmem:[%s235 + $0x1428] sm:$0xff]
        %v945 = vld [vmem:[%s235 + $0x1430] sm:$0xff]
        %v946 = vld [vmem:[%s235 + $0x1438] sm:$0xff]
        %v947 = vld [vmem:[%s235 + $0x1440] sm:$0xff]
        %v948 = vld [vmem:[%s235 + $0x1448] sm:$0xff]
        %v949 = vld [vmem:[%s235 + $0x1450] sm:$0xff]
        %v950 = vld [vmem:[%s235 + $0x1458] sm:$0xff]
        %v951 = vld [vmem:[%s235 + $0x1460] sm:$0xff]
        %v952 = vld [vmem:[%s235 + $0x1468] sm:$0xff]
        %v953 = vld [vmem:[%s235 + $0x1470] sm:$0xff]
        %v954 = vld [vmem:[%s235 + $0x1478] sm:$0xff]
        %v955 = vld [vmem:[%s235 + $0x1480] sm:$0xff]
        %v956 = vld [vmem:[%s235 + $0x1488] sm:$0xff]
        %v957 = vld [vmem:[%s235 + $0x1490] sm:$0xff]
        %v958 = vld [vmem:[%s235 + $0x1498] sm:$0xff]
        %v959 = vld [vmem:[%s235 + $0x14a0] sm:$0xff]
        %v960 = vld [vmem:[%s235 + $0x14a8] sm:$0xff]
        %v961 = vld [vmem:[%s235 + $0x14b0] sm:$0xff]
        %v962 = vld [vmem:[%s235 + $0x14b8] sm:$0xff]
        %v963 = vld [vmem:[%s235 + $0x14c0] sm:$0xff]
        %v964 = vld [vmem:[%s235 + $0x14c8] sm:$0xff]
        %v965 = vld [vmem:[%s235 + $0x14d0] sm:$0xff]
        %v966 = vld [vmem:[%s235 + $0x14d8] sm:$0xff]
        %v967 = vld [vmem:[%s235 + $0x14e0] sm:$0xff]
        %v968 = vld [vmem:[%s235 + $0x14e8] sm:$0xff]
        %v969 = vld [vmem:[%s235 + $0x14f0] sm:$0xff]
        %v970 = vld [vmem:[%s235 + $0x14f8] sm:$0xff]
        %v971 = vld [vmem:[%s235 + $0x1500] sm:$0xff]
        %v972 = vld [vmem:[%s235 + $0x1508] sm:$0xff]
        %v973 = vld [vmem:[%s235 + $0x1510] sm:$0xff]
        %v974 = vld [vmem:[%s235 + $0x1518] sm:$0xff]
        %v975 = vld [vmem:[%s235 + $0x1520] sm:$0xff]
        %v976 = vld [vmem:[%s235 + $0x1528] sm:$0xff]
        %v977 = vld [vmem:[%s235 + $0x1530] sm:$0xff]
        %v978 = vld [vmem:[%s235 + $0x1538] sm:$0xff]
        %v979 = vld [vmem:[%s235 + $0x1540] sm:$0xff]
        %v980 = vld [vmem:[%s235 + $0x1548] sm:$0xff]
        %v981 = vld [vmem:[%s235 + $0x1550] sm:$0xff]
        %v982 = vld [vmem:[%s235 + $0x1558] sm:$0xff]
        %v983 = vld [vmem:[%s235 + $0x1560] sm:$0xff]
        %v984 = vld [vmem:[%s235 + $0x1568] sm:$0xff]
        %v985 = vld [vmem:[%s235 + $0x1570] sm:$0xff]
        %v986 = vld [vmem:[%s235 + $0x1578] sm:$0xff]
        %v987 = vld [vmem:[%s235 + $0x1580] sm:$0xff]
        %v988 = vld [vmem:[%s235 + $0x1588] sm:$0xff]
        %v989 = vld [vmem:[%s235 + $0x1590] sm:$0xff]
        %v990 = vld [vmem:[%s235 + $0x1598] sm:$0xff]
        %v991 = vld [vmem:[%s235 + $0x15a0] sm:$0xff]
        %v992 = vld [vmem:[%s235 + $0x15a8] sm:$0xff]
        %v993 = vld [vmem:[%s235 + $0x15b0] sm:$0xff]
        %v994 = vld [vmem:[%s235 + $0x15b8] sm:$0xff]
        %v995 = vld [vmem:[%s235 + $0x15c0] sm:$0xff]
        %v996 = vld [vmem:[%s235 + $0x15c8] sm:$0xff]
        %v997 = vld [vmem:[%s235 + $0x15d0] sm:$0xff]
        %v998 = vld [vmem:[%s235 + $0x15d8] sm:$0xff]
        %v999 = vld [vmem:[%s235 + $0x15e0] sm:$0xff]
        %v1000 = vld [vmem:[%s235 + $0x15e8] sm:$0xff]
        %v1001 = vld [vmem:[%s235 + $0x15f0] sm:$0xff]
        %v1002 = vld [vmem:[%s235 + $0x15f8] sm:$0xff]
        %v1003 = vld [vmem:[%s235 + $0x1600] sm:$0xff]
        %v1004 = vld [vmem:[%s235 + $0x1608] sm:$0xff]
        %v1005 = vld [vmem:[%s235 + $0x1610] sm:$0xff]
        %v1006 = vld [vmem:[%s235 + $0x1618] sm:$0xff]
        %v1007 = vld [vmem:[%s235 + $0x1620] sm:$0xff]
        %v1008 = vld [vmem:[%s235 + $0x1628] sm:$0xff]
        %v1009 = vld [vmem:[%s235 + $0x1630] sm:$0xff]
        %v1010 = vld [vmem:[%s235 + $0x1638] sm:$0xff]
        %v1011 = vld [vmem:[%s235 + $0x1640] sm:$0xff]
        %v1012 = vld [vmem:[%s235 + $0x1648] sm:$0xff]
        %v1013 = vld [vmem:[%s235 + $0x1650] sm:$0xff]
        %v1014 = vld [vmem:[%s235 + $0x1658] sm:$0xff]
        %v1015 = vld [vmem:[%s235 + $0x1660] sm:$0xff]
        %v1016 = vld [vmem:[%s235 + $0x1668] sm:$0xff]
        %v1017 = vld [vmem:[%s235 + $0x1670] sm:$0xff]
        %v1018 = vld [vmem:[%s235 + $0x1678] sm:$0xff]
        %v1019 = vld [vmem:[%s235 + $0x1680] sm:$0xff]
        %v1020 = vld [vmem:[%s235 + $0x1688] sm:$0xff]
        %v1021 = vld [vmem:[%s235 + $0x1690] sm:$0xff]
        %v1022 = vld [vmem:[%s235 + $0x1698] sm:$0xff]
        %v1023 = vld [vmem:[%s235 + $0x16a0] sm:$0xff]
        %v1024 = vld [vmem:[%s235 + $0x16a8] sm:$0xff]
        %v1025 = vld [vmem:[%s235 + $0x16b0] sm:$0xff]
        %v1026 = vld [vmem:[%s235 + $0x16b8] sm:$0xff]
        %v1027 = vld [vmem:[%s235 + $0x16c0] sm:$0xff]
        %v1028 = vld [vmem:[%s235 + $0x16c8] sm:$0xff]
        %v1029 = vld [vmem:[%s235 + $0x16d0] sm:$0xff]
        %v1030 = vld [vmem:[%s235 + $0x16d8] sm:$0xff]
        %v1031 = vld [vmem:[%s235 + $0x16e0] sm:$0xff]
        %v1032 = vld [vmem:[%s235 + $0x16e8] sm:$0xff]
        %v1033 = vld [vmem:[%s235 + $0x16f0] sm:$0xff]
        %v1034 = vld [vmem:[%s235 + $0x16f8] sm:$0xff]
        %v1035 = vld [vmem:[%s235 + $0x1700] sm:$0xff]
        %v1036 = vld [vmem:[%s235 + $0x1708] sm:$0xff]
        %v1037 = vld [vmem:[%s235 + $0x1710] sm:$0xff]
        %v1038 = vld [vmem:[%s235 + $0x1718] sm:$0xff]
        %v1039 = vld [vmem:[%s235 + $0x1720] sm:$0xff]
        %v1040 = vld [vmem:[%s235 + $0x1728] sm:$0xff]
        %v1041 = vld [vmem:[%s235 + $0x1730] sm:$0xff]
        %v1042 = vld [vmem:[%s235 + $0x1738] sm:$0xff]
        %v1043 = vld [vmem:[%s235 + $0x1740] sm:$0xff]
        %v1044 = vld [vmem:[%s235 + $0x1748] sm:$0xff]
        %v1045 = vld [vmem:[%s235 + $0x1750] sm:$0xff]
        %v1046 = vld [vmem:[%s235 + $0x1758] sm:$0xff]
        %v1047 = vld [vmem:[%s235 + $0x1760] sm:$0xff]
        %v1048 = vld [vmem:[%s235 + $0x1768] sm:$0xff]
        %v1049 = vld [vmem:[%s235 + $0x1770] sm:$0xff]
        %v1050 = vld [vmem:[%s235 + $0x1778] sm:$0xff]
        %v1051 = vld [vmem:[%s235 + $0x1780] sm:$0xff]
        %v1052 = vld [vmem:[%s235 + $0x1788] sm:$0xff]
        %v1053 = vld [vmem:[%s235 + $0x1790] sm:$0xff]
        %v1054 = vld [vmem:[%s235 + $0x1798] sm:$0xff]
        %v1055 = vld [vmem:[%s235 + $0x17a0] sm:$0xff]
        %v1056 = vld [vmem:[%s235 + $0x17a8] sm:$0xff]
        %v1057 = vld [vmem:[%s235 + $0x17b0] sm:$0xff]
        %v1058 = vld [vmem:[%s235 + $0x17b8] sm:$0xff]
        %v1059 = vld [vmem:[%s235 + $0x17c0] sm:$0xff]
        %v1060 = vld [vmem:[%s235 + $0x17c8] sm:$0xff]
        %v1061 = vld [vmem:[%s235 + $0x17d0] sm:$0xff]
        %v1062 = vld [vmem:[%s235 + $0x17d8] sm:$0xff]
        %v1063 = vld [vmem:[%s235 + $0x17e0] sm:$0xff]
        %v1064 = vld [vmem:[%s235 + $0x17e8] sm:$0xff]
        %v1065 = vld [vmem:[%s235 + $0x17f0] sm:$0xff]
        %v1066 = vld [vmem:[%s235 + $0x17f8] sm:$0xff]
        %v1067 = vld [vmem:[%s284] sm:$0xff]
        %v1068 = vld [vmem:[%s284 + $0x8] sm:$0xff]
        %v1069 = vld [vmem:[%s284 + $0x10] sm:$0xff]
        %v1070 = vld [vmem:[%s284 + $0x18] sm:$0xff]
        %v1071 = vld [vmem:[%s284 + $0x20] sm:$0xff]
        %v1072 = vld [vmem:[%s284 + $0x28] sm:$0xff]
        %v1073 = vld [vmem:[%s284 + $0x30] sm:$0xff]
        %v1074 = vld [vmem:[%s284 + $0x38] sm:$0xff]
        %v1075 = vld [vmem:[%s284 + $0x40] sm:$0xff]
        %v1076 = vld [vmem:[%s284 + $0x48] sm:$0xff]
        %v1077 = vld [vmem:[%s284 + $0x50] sm:$0xff]
        %v1078 = vld [vmem:[%s284 + $0x58] sm:$0xff]
        %v1079 = vld [vmem:[%s284 + $0x60] sm:$0xff]
        %v1080 = vld [vmem:[%s284 + $0x68] sm:$0xff]
        %v1081 = vld [vmem:[%s284 + $0x70] sm:$0xff]
        %v1082 = vld [vmem:[%s284 + $0x78] sm:$0xff]
        %v1083 = vld [vmem:[%s284 + $0x80] sm:$0xff]
        %v1084 = vld [vmem:[%s284 + $0x88] sm:$0xff]
        %v1085 = vld [vmem:[%s284 + $0x90] sm:$0xff]
        %v1086 = vld [vmem:[%s284 + $0x98] sm:$0xff]
        %v1087 = vld [vmem:[%s284 + $0xa0] sm:$0xff]
        %v1088 = vld [vmem:[%s284 + $0xa8] sm:$0xff]
        %v1089 = vld [vmem:[%s284 + $0xb0] sm:$0xff]
        %v1090 = vld [vmem:[%s284 + $0xb8] sm:$0xff]
        %v1091 = vld [vmem:[%s284 + $0xc0] sm:$0xff]
        %v1092 = vld [vmem:[%s284 + $0xc8] sm:$0xff]
        %v1093 = vld [vmem:[%s284 + $0xd0] sm:$0xff]
        %v1094 = vld [vmem:[%s284 + $0xd8] sm:$0xff]
        %v1095 = vld [vmem:[%s284 + $0xe0] sm:$0xff]
        %v1096 = vld [vmem:[%s284 + $0xe8] sm:$0xff]
        %v1097 = vld [vmem:[%s284 + $0xf0] sm:$0xff]
        %v1098 = vld [vmem:[%s284 + $0xf8] sm:$0xff]
        %v1099 = vld [vmem:[%s284 + $0x100] sm:$0xff]
        %v1100 = vld [vmem:[%s284 + $0x108] sm:$0xff]
        %v1101 = vld [vmem:[%s284 + $0x110] sm:$0xff]
        %v1102 = vld [vmem:[%s284 + $0x118] sm:$0xff]
        %v1103 = vld [vmem:[%s284 + $0x120] sm:$0xff]
        %v1104 = vld [vmem:[%s284 + $0x128] sm:$0xff]
        %v1105 = vld [vmem:[%s284 + $0x130] sm:$0xff]
        %v1106 = vld [vmem:[%s284 + $0x138] sm:$0xff]
        %v1107 = vld [vmem:[%s284 + $0x140] sm:$0xff]
        %v1108 = vld [vmem:[%s284 + $0x148] sm:$0xff]
        %v1109 = vld [vmem:[%s284 + $0x150] sm:$0xff]
        %v1110 = vld [vmem:[%s284 + $0x158] sm:$0xff]
        %v1111 = vld [vmem:[%s284 + $0x160] sm:$0xff]
        %v1112 = vld [vmem:[%s284 + $0x168] sm:$0xff]
        %v1113 = vld [vmem:[%s284 + $0x170] sm:$0xff]
        %v1114 = vld [vmem:[%s284 + $0x178] sm:$0xff]
        %v1115 = vld [vmem:[%s284 + $0x180] sm:$0xff]
        %v1116 = vld [vmem:[%s284 + $0x188] sm:$0xff]
        %v1117 = vld [vmem:[%s284 + $0x190] sm:$0xff]
        %v1118 = vld [vmem:[%s284 + $0x198] sm:$0xff]
        %v1119 = vld [vmem:[%s284 + $0x1a0] sm:$0xff]
        %v1120 = vld [vmem:[%s284 + $0x1a8] sm:$0xff]
        %v1121 = vld [vmem:[%s284 + $0x1b0] sm:$0xff]
        %v1122 = vld [vmem:[%s284 + $0x1b8] sm:$0xff]
        %v1123 = vld [vmem:[%s284 + $0x1c0] sm:$0xff]
        %v1124 = vld [vmem:[%s284 + $0x1c8] sm:$0xff]
        %v1125 = vld [vmem:[%s284 + $0x1d0] sm:$0xff]
        %v1126 = vld [vmem:[%s284 + $0x1d8] sm:$0xff]
        %v1127 = vld [vmem:[%s284 + $0x1e0] sm:$0xff]
        %v1128 = vld [vmem:[%s284 + $0x1e8] sm:$0xff]
        %v1129 = vld [vmem:[%s284 + $0x1f0] sm:$0xff]
        %v1130 = vld [vmem:[%s284 + $0x1f8] sm:$0xff]
        %v1131 = vld [vmem:[%s284 + $0x200] sm:$0xff]
        %v1132 = vld [vmem:[%s284 + $0x208] sm:$0xff]
        %v1133 = vld [vmem:[%s284 + $0x210] sm:$0xff]
        %v1134 = vld [vmem:[%s284 + $0x218] sm:$0xff]
        %v1135 = vld [vmem:[%s284 + $0x220] sm:$0xff]
        %v1136 = vld [vmem:[%s284 + $0x228] sm:$0xff]
        %v1137 = vld [vmem:[%s284 + $0x230] sm:$0xff]
        %v1138 = vld [vmem:[%s284 + $0x238] sm:$0xff]
        %v1139 = vld [vmem:[%s284 + $0x240] sm:$0xff]
        %v1140 = vld [vmem:[%s284 + $0x248] sm:$0xff]
        %v1141 = vld [vmem:[%s284 + $0x250] sm:$0xff]
        %v1142 = vld [vmem:[%s284 + $0x258] sm:$0xff]
        %v1143 = vld [vmem:[%s284 + $0x260] sm:$0xff]
        %v1144 = vld [vmem:[%s284 + $0x268] sm:$0xff]
        %v1145 = vld [vmem:[%s284 + $0x270] sm:$0xff]
        %v1146 = vld [vmem:[%s284 + $0x278] sm:$0xff]
        %v1147 = vld [vmem:[%s284 + $0x280] sm:$0xff]
        %v1148 = vld [vmem:[%s284 + $0x288] sm:$0xff]
        %v1149 = vld [vmem:[%s284 + $0x290] sm:$0xff]
        %v1150 = vld [vmem:[%s284 + $0x298] sm:$0xff]
        %v1151 = vld [vmem:[%s284 + $0x2a0] sm:$0xff]
        %v1152 = vld [vmem:[%s284 + $0x2a8] sm:$0xff]
        %v1153 = vld [vmem:[%s284 + $0x2b0] sm:$0xff]
        %v1154 = vld [vmem:[%s284 + $0x2b8] sm:$0xff]
        %v1155 = vld [vmem:[%s284 + $0x2c0] sm:$0xff]
        %v1156 = vld [vmem:[%s284 + $0x2c8] sm:$0xff]
        %v1157 = vld [vmem:[%s284 + $0x2d0] sm:$0xff]
        %v1158 = vld [vmem:[%s284 + $0x2d8] sm:$0xff]
        %v1159 = vld [vmem:[%s284 + $0x2e0] sm:$0xff]
        %v1160 = vld [vmem:[%s284 + $0x2e8] sm:$0xff]
        %v1161 = vld [vmem:[%s284 + $0x2f0] sm:$0xff]
        %v1162 = vld [vmem:[%s284 + $0x2f8] sm:$0xff]
        %v1163 = vld [vmem:[%s284 + $0x300] sm:$0xff]
        %v1164 = vld [vmem:[%s284 + $0x308] sm:$0xff]
        %v1165 = vld [vmem:[%s284 + $0x310] sm:$0xff]
        %v1166 = vld [vmem:[%s284 + $0x318] sm:$0xff]
        %v1167 = vld [vmem:[%s284 + $0x320] sm:$0xff]
        %v1168 = vld [vmem:[%s284 + $0x328] sm:$0xff]
        %v1169 = vld [vmem:[%s284 + $0x330] sm:$0xff]
        %v1170 = vld [vmem:[%s284 + $0x338] sm:$0xff]
        %v1171 = vld [vmem:[%s284 + $0x340] sm:$0xff]
        %v1172 = vld [vmem:[%s284 + $0x348] sm:$0xff]
        %v1173 = vld [vmem:[%s284 + $0x350] sm:$0xff]
        %v1174 = vld [vmem:[%s284 + $0x358] sm:$0xff]
        %v1175 = vld [vmem:[%s284 + $0x360] sm:$0xff]
        %v1176 = vld [vmem:[%s284 + $0x368] sm:$0xff]
        %v1177 = vld [vmem:[%s284 + $0x370] sm:$0xff]
        %v1178 = vld [vmem:[%s284 + $0x378] sm:$0xff]
        %v1179 = vld [vmem:[%s284 + $0x380] sm:$0xff]
        %v1180 = vld [vmem:[%s284 + $0x388] sm:$0xff]
        %v1181 = vld [vmem:[%s284 + $0x390] sm:$0xff]
        %v1182 = vld [vmem:[%s284 + $0x398] sm:$0xff]
        %v1183 = vld [vmem:[%s284 + $0x3a0] sm:$0xff]
        %v1184 = vld [vmem:[%s284 + $0x3a8] sm:$0xff]
        %v1185 = vld [vmem:[%s284 + $0x3b0] sm:$0xff]
        %v1186 = vld [vmem:[%s284 + $0x3b8] sm:$0xff]
        %v1187 = vld [vmem:[%s284 + $0x3c0] sm:$0xff]
        %v1188 = vld [vmem:[%s284 + $0x3c8] sm:$0xff]
        %v1189 = vld [vmem:[%s284 + $0x3d0] sm:$0xff]
        %v1190 = vld [vmem:[%s284 + $0x3d8] sm:$0xff]
        %v1191 = vld [vmem:[%s284 + $0x3e0] sm:$0xff]
        %v1192 = vld [vmem:[%s284 + $0x3e8] sm:$0xff]
        %v1193 = vld [vmem:[%s284 + $0x3f0] sm:$0xff]
        %v1194 = vld [vmem:[%s284 + $0x3f8] sm:$0xff]
        %v1195 = vld [vmem:[%s284 + $0x400] sm:$0xff]
        %v1196 = vld [vmem:[%s284 + $0x408] sm:$0xff]
        %v1197 = vld [vmem:[%s284 + $0x410] sm:$0xff]
        %v1198 = vld [vmem:[%s284 + $0x418] sm:$0xff]
        %v1199 = vld [vmem:[%s284 + $0x420] sm:$0xff]
        %v1200 = vld [vmem:[%s284 + $0x428] sm:$0xff]
        %v1201 = vld [vmem:[%s284 + $0x430] sm:$0xff]
        %v1202 = vld [vmem:[%s284 + $0x438] sm:$0xff]
        %v1203 = vld [vmem:[%s284 + $0x440] sm:$0xff]
        %v1204 = vld [vmem:[%s284 + $0x448] sm:$0xff]
        %v1205 = vld [vmem:[%s284 + $0x450] sm:$0xff]
        %v1206 = vld [vmem:[%s284 + $0x458] sm:$0xff]
        %v1207 = vld [vmem:[%s284 + $0x460] sm:$0xff]
        %v1208 = vld [vmem:[%s284 + $0x468] sm:$0xff]
        %v1209 = vld [vmem:[%s284 + $0x470] sm:$0xff]
        %v1210 = vld [vmem:[%s284 + $0x478] sm:$0xff]
        %v1211 = vld [vmem:[%s284 + $0x480] sm:$0xff]
        %v1212 = vld [vmem:[%s284 + $0x488] sm:$0xff]
        %v1213 = vld [vmem:[%s284 + $0x490] sm:$0xff]
        %v1214 = vld [vmem:[%s284 + $0x498] sm:$0xff]
        %v1215 = vld [vmem:[%s284 + $0x4a0] sm:$0xff]
        %v1216 = vld [vmem:[%s284 + $0x4a8] sm:$0xff]
        %v1217 = vld [vmem:[%s284 + $0x4b0] sm:$0xff]
        %v1218 = vld [vmem:[%s284 + $0x4b8] sm:$0xff]
        %v1219 = vld [vmem:[%s284 + $0x4c0] sm:$0xff]
        %v1220 = vld [vmem:[%s284 + $0x4c8] sm:$0xff]
        %v1221 = vld [vmem:[%s284 + $0x4d0] sm:$0xff]
        %v1222 = vld [vmem:[%s284 + $0x4d8] sm:$0xff]
        %v1223 = vld [vmem:[%s284 + $0x4e0] sm:$0xff]
        %v1224 = vld [vmem:[%s284 + $0x4e8] sm:$0xff]
        %v1225 = vld [vmem:[%s284 + $0x4f0] sm:$0xff]
        %v1226 = vld [vmem:[%s284 + $0x4f8] sm:$0xff]
        %v1227 = vld [vmem:[%s284 + $0x500] sm:$0xff]
        %v1228 = vld [vmem:[%s284 + $0x508] sm:$0xff]
        %v1229 = vld [vmem:[%s284 + $0x510] sm:$0xff]
        %v1230 = vld [vmem:[%s284 + $0x518] sm:$0xff]
        %v1231 = vld [vmem:[%s284 + $0x520] sm:$0xff]
        %v1232 = vld [vmem:[%s284 + $0x528] sm:$0xff]
        %v1233 = vld [vmem:[%s284 + $0x530] sm:$0xff]
        %v1234 = vld [vmem:[%s284 + $0x538] sm:$0xff]
        %v1235 = vld [vmem:[%s284 + $0x540] sm:$0xff]
        %v1236 = vld [vmem:[%s284 + $0x548] sm:$0xff]
        %v1237 = vld [vmem:[%s284 + $0x550] sm:$0xff]
        %v1238 = vld [vmem:[%s284 + $0x558] sm:$0xff]
        %v1239 = vld [vmem:[%s284 + $0x560] sm:$0xff]
        %v1240 = vld [vmem:[%s284 + $0x568] sm:$0xff]
        %v1241 = vld [vmem:[%s284 + $0x570] sm:$0xff]
        %v1242 = vld [vmem:[%s284 + $0x578] sm:$0xff]
        %v1243 = vld [vmem:[%s284 + $0x580] sm:$0xff]
        %v1244 = vld [vmem:[%s284 + $0x588] sm:$0xff]
        %v1245 = vld [vmem:[%s284 + $0x590] sm:$0xff]
        %v1246 = vld [vmem:[%s284 + $0x598] sm:$0xff]
        %v1247 = vld [vmem:[%s284 + $0x5a0] sm:$0xff]
        %v1248 = vld [vmem:[%s284 + $0x5a8] sm:$0xff]
        %v1249 = vld [vmem:[%s284 + $0x5b0] sm:$0xff]
        %v1250 = vld [vmem:[%s284 + $0x5b8] sm:$0xff]
        %v1251 = vld [vmem:[%s284 + $0x5c0] sm:$0xff]
        %v1252 = vld [vmem:[%s284 + $0x5c8] sm:$0xff]
        %v1253 = vld [vmem:[%s284 + $0x5d0] sm:$0xff]
        %v1254 = vld [vmem:[%s284 + $0x5d8] sm:$0xff]
        %v1255 = vld [vmem:[%s284 + $0x5e0] sm:$0xff]
        %v1256 = vld [vmem:[%s284 + $0x5e8] sm:$0xff]
        %v1257 = vld [vmem:[%s284 + $0x5f0] sm:$0xff]
        %v1258 = vld [vmem:[%s284 + $0x5f8] sm:$0xff]
        %v1259 = vld [vmem:[%s284 + $0x600] sm:$0xff]
        %v1260 = vld [vmem:[%s284 + $0x608] sm:$0xff]
        %v1261 = vld [vmem:[%s284 + $0x610] sm:$0xff]
        %v1262 = vld [vmem:[%s284 + $0x618] sm:$0xff]
        %v1263 = vld [vmem:[%s284 + $0x620] sm:$0xff]
        %v1264 = vld [vmem:[%s284 + $0x628] sm:$0xff]
        %v1265 = vld [vmem:[%s284 + $0x630] sm:$0xff]
        %v1266 = vld [vmem:[%s284 + $0x638] sm:$0xff]
        %v1267 = vld [vmem:[%s284 + $0x640] sm:$0xff]
        %v1268 = vld [vmem:[%s284 + $0x648] sm:$0xff]
        %v1269 = vld [vmem:[%s284 + $0x650] sm:$0xff]
        %v1270 = vld [vmem:[%s284 + $0x658] sm:$0xff]
        %v1271 = vld [vmem:[%s284 + $0x660] sm:$0xff]
        %v1272 = vld [vmem:[%s284 + $0x668] sm:$0xff]
        %v1273 = vld [vmem:[%s284 + $0x670] sm:$0xff]
        %v1274 = vld [vmem:[%s284 + $0x678] sm:$0xff]
        %v1275 = vld [vmem:[%s284 + $0x680] sm:$0xff]
        %v1276 = vld [vmem:[%s284 + $0x688] sm:$0xff]
        %v1277 = vld [vmem:[%s284 + $0x690] sm:$0xff]
        %v1278 = vld [vmem:[%s284 + $0x698] sm:$0xff]
        %v1279 = vld [vmem:[%s284 + $0x6a0] sm:$0xff]
        %v1280 = vld [vmem:[%s284 + $0x6a8] sm:$0xff]
        %v1281 = vld [vmem:[%s284 + $0x6b0] sm:$0xff]
        %v1282 = vld [vmem:[%s284 + $0x6b8] sm:$0xff]
        %v1283 = vld [vmem:[%s284 + $0x6c0] sm:$0xff]
        %v1284 = vld [vmem:[%s284 + $0x6c8] sm:$0xff]
        %v1285 = vld [vmem:[%s284 + $0x6d0] sm:$0xff]
        %v1286 = vld [vmem:[%s284 + $0x6d8] sm:$0xff]
        %v1287 = vld [vmem:[%s284 + $0x6e0] sm:$0xff]
        %v1288 = vld [vmem:[%s284 + $0x6e8] sm:$0xff]
        %v1289 = vld [vmem:[%s284 + $0x6f0] sm:$0xff]
        %v1290 = vld [vmem:[%s284 + $0x6f8] sm:$0xff]
        %v1291 = vld [vmem:[%s284 + $0x700] sm:$0xff]
        %v1292 = vld [vmem:[%s284 + $0x708] sm:$0xff]
        %v1293 = vld [vmem:[%s284 + $0x710] sm:$0xff]
        %v1294 = vld [vmem:[%s284 + $0x718] sm:$0xff]
        %v1295 = vld [vmem:[%s284 + $0x720] sm:$0xff]
        %v1296 = vld [vmem:[%s284 + $0x728] sm:$0xff]
        %v1297 = vld [vmem:[%s284 + $0x730] sm:$0xff]
        %v1298 = vld [vmem:[%s284 + $0x738] sm:$0xff]
        %v1299 = vld [vmem:[%s284 + $0x740] sm:$0xff]
        %v1300 = vld [vmem:[%s284 + $0x748] sm:$0xff]
        %v1301 = vld [vmem:[%s284 + $0x750] sm:$0xff]
        %v1302 = vld [vmem:[%s284 + $0x758] sm:$0xff]
        %v1303 = vld [vmem:[%s284 + $0x760] sm:$0xff]
        %v1304 = vld [vmem:[%s284 + $0x768] sm:$0xff]
        %v1305 = vld [vmem:[%s284 + $0x770] sm:$0xff]
        %v1306 = vld [vmem:[%s284 + $0x778] sm:$0xff]
        %v1307 = vld [vmem:[%s284 + $0x780] sm:$0xff]
        %v1308 = vld [vmem:[%s284 + $0x788] sm:$0xff]
        %v1309 = vld [vmem:[%s284 + $0x790] sm:$0xff]
        %v1310 = vld [vmem:[%s284 + $0x798] sm:$0xff]
        %v1311 = vld [vmem:[%s284 + $0x7a0] sm:$0xff]
        %v1312 = vld [vmem:[%s284 + $0x7a8] sm:$0xff]
        %v1313 = vld [vmem:[%s284 + $0x7b0] sm:$0xff]
        %v1314 = vld [vmem:[%s284 + $0x7b8] sm:$0xff]
        %v1315 = vld [vmem:[%s284 + $0x7c0] sm:$0xff]
        %v1316 = vld [vmem:[%s284 + $0x7c8] sm:$0xff]
        %v1317 = vld [vmem:[%s284 + $0x7d0] sm:$0xff]
        %v1318 = vld [vmem:[%s284 + $0x7d8] sm:$0xff]
        %v1319 = vld [vmem:[%s284 + $0x7e0] sm:$0xff]
        %v1320 = vld [vmem:[%s284 + $0x7e8] sm:$0xff]
        %v1321 = vld [vmem:[%s284 + $0x7f0] sm:$0xff]
        %v1322 = vld [vmem:[%s284 + $0x7f8] sm:$0xff]
        %v1323 = vld [vmem:[%s284 + $0x800] sm:$0xff]
        %v1324 = vld [vmem:[%s284 + $0x808] sm:$0xff]
        %v1325 = vld [vmem:[%s284 + $0x810] sm:$0xff]
        %v1326 = vld [vmem:[%s284 + $0x818] sm:$0xff]
        %v1327 = vld [vmem:[%s284 + $0x820] sm:$0xff]
        %v1328 = vld [vmem:[%s284 + $0x828] sm:$0xff]
        %v1329 = vld [vmem:[%s284 + $0x830] sm:$0xff]
        %v1330 = vld [vmem:[%s284 + $0x838] sm:$0xff]
        %v1331 = vld [vmem:[%s284 + $0x840] sm:$0xff]
        %v1332 = vld [vmem:[%s284 + $0x848] sm:$0xff]
        %v1333 = vld [vmem:[%s284 + $0x850] sm:$0xff]
        %v1334 = vld [vmem:[%s284 + $0x858] sm:$0xff]
        %v1335 = vld [vmem:[%s284 + $0x860] sm:$0xff]
        %v1336 = vld [vmem:[%s284 + $0x868] sm:$0xff]
        %v1337 = vld [vmem:[%s284 + $0x870] sm:$0xff]
        %v1338 = vld [vmem:[%s284 + $0x878] sm:$0xff]
        %v1339 = vld [vmem:[%s284 + $0x880] sm:$0xff]
        %v1340 = vld [vmem:[%s284 + $0x888] sm:$0xff]
        %v1341 = vld [vmem:[%s284 + $0x890] sm:$0xff]
        %v1342 = vld [vmem:[%s284 + $0x898] sm:$0xff]
        %v1343 = vld [vmem:[%s284 + $0x8a0] sm:$0xff]
        %v1344 = vld [vmem:[%s284 + $0x8a8] sm:$0xff]
        %v1345 = vld [vmem:[%s284 + $0x8b0] sm:$0xff]
        %v1346 = vld [vmem:[%s284 + $0x8b8] sm:$0xff]
        %v1347 = vld [vmem:[%s284 + $0x8c0] sm:$0xff]
        %v1348 = vld [vmem:[%s284 + $0x8c8] sm:$0xff]
        %v1349 = vld [vmem:[%s284 + $0x8d0] sm:$0xff]
        %v1350 = vld [vmem:[%s284 + $0x8d8] sm:$0xff]
        %v1351 = vld [vmem:[%s284 + $0x8e0] sm:$0xff]
        %v1352 = vld [vmem:[%s284 + $0x8e8] sm:$0xff]
        %v1353 = vld [vmem:[%s284 + $0x8f0] sm:$0xff]
        %v1354 = vld [vmem:[%s284 + $0x8f8] sm:$0xff]
        %v1355 = vld [vmem:[%s284 + $0x900] sm:$0xff]
        %v1356 = vld [vmem:[%s284 + $0x908] sm:$0xff]
        %v1357 = vld [vmem:[%s284 + $0x910] sm:$0xff]
        %v1358 = vld [vmem:[%s284 + $0x918] sm:$0xff]
        %v1359 = vld [vmem:[%s284 + $0x920] sm:$0xff]
        %v1360 = vld [vmem:[%s284 + $0x928] sm:$0xff]
        %v1361 = vld [vmem:[%s284 + $0x930] sm:$0xff]
        %v1362 = vld [vmem:[%s284 + $0x938] sm:$0xff]
        %v1363 = vld [vmem:[%s284 + $0x940] sm:$0xff]
        %v1364 = vld [vmem:[%s284 + $0x948] sm:$0xff]
        %v1365 = vld [vmem:[%s284 + $0x950] sm:$0xff]
        %v1366 = vld [vmem:[%s284 + $0x958] sm:$0xff]
        %v1367 = vld [vmem:[%s284 + $0x960] sm:$0xff]
        %v1368 = vld [vmem:[%s284 + $0x968] sm:$0xff]
        %v1369 = vld [vmem:[%s284 + $0x970] sm:$0xff]
        %v1370 = vld [vmem:[%s284 + $0x978] sm:$0xff]
        %v1371 = vld [vmem:[%s284 + $0x980] sm:$0xff]
        %v1372 = vld [vmem:[%s284 + $0x988] sm:$0xff]
        %v1373 = vld [vmem:[%s284 + $0x990] sm:$0xff]
        %v1374 = vld [vmem:[%s284 + $0x998] sm:$0xff]
        %v1375 = vld [vmem:[%s284 + $0x9a0] sm:$0xff]
        %v1376 = vld [vmem:[%s284 + $0x9a8] sm:$0xff]
        %v1377 = vld [vmem:[%s284 + $0x9b0] sm:$0xff]
        %v1378 = vld [vmem:[%s284 + $0x9b8] sm:$0xff]
        %v1379 = vld [vmem:[%s284 + $0x9c0] sm:$0xff]
        %v1380 = vld [vmem:[%s284 + $0x9c8] sm:$0xff]
        %v1381 = vld [vmem:[%s284 + $0x9d0] sm:$0xff]
        %v1382 = vld [vmem:[%s284 + $0x9d8] sm:$0xff]
        %v1383 = vld [vmem:[%s284 + $0x9e0] sm:$0xff]
        %v1384 = vld [vmem:[%s284 + $0x9e8] sm:$0xff]
        %v1385 = vld [vmem:[%s284 + $0x9f0] sm:$0xff]
        %v1386 = vld [vmem:[%s284 + $0x9f8] sm:$0xff]
        %v1387 = vld [vmem:[%s284 + $0xa00] sm:$0xff]
        %v1388 = vld [vmem:[%s284 + $0xa08] sm:$0xff]
        %v1389 = vld [vmem:[%s284 + $0xa10] sm:$0xff]
        %v1390 = vld [vmem:[%s284 + $0xa18] sm:$0xff]
        %v1391 = vld [vmem:[%s284 + $0xa20] sm:$0xff]
        %v1392 = vld [vmem:[%s284 + $0xa28] sm:$0xff]
        %v1393 = vld [vmem:[%s284 + $0xa30] sm:$0xff]
        %v1394 = vld [vmem:[%s284 + $0xa38] sm:$0xff]
        %v1395 = vld [vmem:[%s284 + $0xa40] sm:$0xff]
        %v1396 = vld [vmem:[%s284 + $0xa48] sm:$0xff]
        %v1397 = vld [vmem:[%s284 + $0xa50] sm:$0xff]
        %v1398 = vld [vmem:[%s284 + $0xa58] sm:$0xff]
        %v1399 = vld [vmem:[%s284 + $0xa60] sm:$0xff]
        %v1400 = vld [vmem:[%s284 + $0xa68] sm:$0xff]
        %v1401 = vld [vmem:[%s284 + $0xa70] sm:$0xff]
        %v1402 = vld [vmem:[%s284 + $0xa78] sm:$0xff]
        %v1403 = vld [vmem:[%s284 + $0xa80] sm:$0xff]
        %v1404 = vld [vmem:[%s284 + $0xa88] sm:$0xff]
        %v1405 = vld [vmem:[%s284 + $0xa90] sm:$0xff]
        %v1406 = vld [vmem:[%s284 + $0xa98] sm:$0xff]
        %v1407 = vld [vmem:[%s284 + $0xaa0] sm:$0xff]
        %v1408 = vld [vmem:[%s284 + $0xaa8] sm:$0xff]
        %v1409 = vld [vmem:[%s284 + $0xab0] sm:$0xff]
        %v1410 = vld [vmem:[%s284 + $0xab8] sm:$0xff]
        %v1411 = vld [vmem:[%s284 + $0xac0] sm:$0xff]
        %v1412 = vld [vmem:[%s284 + $0xac8] sm:$0xff]
        %v1413 = vld [vmem:[%s284 + $0xad0] sm:$0xff]
        %v1414 = vld [vmem:[%s284 + $0xad8] sm:$0xff]
        %v1415 = vld [vmem:[%s284 + $0xae0] sm:$0xff]
        %v1416 = vld [vmem:[%s284 + $0xae8] sm:$0xff]
        %v1417 = vld [vmem:[%s284 + $0xaf0] sm:$0xff]
        %v1418 = vld [vmem:[%s284 + $0xaf8] sm:$0xff]
        %v1419 = vld [vmem:[%s284 + $0xb00] sm:$0xff]
        %v1420 = vld [vmem:[%s284 + $0xb08] sm:$0xff]
        %v1421 = vld [vmem:[%s284 + $0xb10] sm:$0xff]
        %v1422 = vld [vmem:[%s284 + $0xb18] sm:$0xff]
        %v1423 = vld [vmem:[%s284 + $0xb20] sm:$0xff]
        %v1424 = vld [vmem:[%s284 + $0xb28] sm:$0xff]
        %v1425 = vld [vmem:[%s284 + $0xb30] sm:$0xff]
        %v1426 = vld [vmem:[%s284 + $0xb38] sm:$0xff]
        %v1427 = vld [vmem:[%s284 + $0xb40] sm:$0xff]
        %v1428 = vld [vmem:[%s284 + $0xb48] sm:$0xff]
        %v1429 = vld [vmem:[%s284 + $0xb50] sm:$0xff]
        %v1430 = vld [vmem:[%s284 + $0xb58] sm:$0xff]
        %v1431 = vld [vmem:[%s284 + $0xb60] sm:$0xff]
        %v1432 = vld [vmem:[%s284 + $0xb68] sm:$0xff]
        %v1433 = vld [vmem:[%s284 + $0xb70] sm:$0xff]
        %v1434 = vld [vmem:[%s284 + $0xb78] sm:$0xff]
        %v1435 = vld [vmem:[%s284 + $0xb80] sm:$0xff]
        %v1436 = vld [vmem:[%s284 + $0xb88] sm:$0xff]
        %v1437 = vld [vmem:[%s284 + $0xb90] sm:$0xff]
        %v1438 = vld [vmem:[%s284 + $0xb98] sm:$0xff]
        %v1439 = vld [vmem:[%s284 + $0xba0] sm:$0xff]
        %v1440 = vld [vmem:[%s284 + $0xba8] sm:$0xff]
        %v1441 = vld [vmem:[%s284 + $0xbb0] sm:$0xff]
        %v1442 = vld [vmem:[%s284 + $0xbb8] sm:$0xff]
        %v1443 = vld [vmem:[%s284 + $0xbc0] sm:$0xff]
        %v1444 = vld [vmem:[%s284 + $0xbc8] sm:$0xff]
        %v1445 = vld [vmem:[%s284 + $0xbd0] sm:$0xff]
        %v1446 = vld [vmem:[%s284 + $0xbd8] sm:$0xff]
        %v1447 = vld [vmem:[%s284 + $0xbe0] sm:$0xff]
        %v1448 = vld [vmem:[%s284 + $0xbe8] sm:$0xff]
        %v1449 = vld [vmem:[%s284 + $0xbf0] sm:$0xff]
        %v1450 = vld [vmem:[%s284 + $0xbf8] sm:$0xff]
        %v1451 = vld [vmem:[#allocation2] sm:$0xff]
        %v1452 = vld [vmem:[#allocation2 + $0x8] sm:$0xff]
        %1454 = vset.pattern.permute.xlu0 0
        %1455 = vperm.xlu0 %1454, %v1067
        %v1456 = vpop.permute.xlu0 %1455
        %1459 = vset.pattern.permute.xlu0 0
        %1460 = vperm.xlu0 %1459, %v1068
        %v1461 = vpop.permute.xlu0 %1460
        %1464 = vset.pattern.permute.xlu0 0
        %1465 = vperm.xlu0 %1464, %v1069
        %v1466 = vpop.permute.xlu0 %1465
        %1469 = vset.pattern.permute.xlu0 0
        %1470 = vperm.xlu0 %1469, %v1070
        %v1471 = vpop.permute.xlu0 %1470
        %1474 = vset.pattern.permute.xlu0 0
        %1475 = vperm.xlu0 %1474, %v1071
        %v1476 = vpop.permute.xlu0 %1475
        %1479 = vset.pattern.permute.xlu0 0
        %1480 = vperm.xlu0 %1479, %v1072
        %v1481 = vpop.permute.xlu0 %1480
        %1484 = vset.pattern.permute.xlu0 0
        %1485 = vperm.xlu0 %1484, %v1073
        %v1486 = vpop.permute.xlu0 %1485
        %1489 = vset.pattern.permute.xlu0 0
        %1490 = vperm.xlu0 %1489, %v1074
        %v1491 = vpop.permute.xlu0 %1490
        %1494 = vset.pattern.permute.xlu0 0
        %1495 = vperm.xlu0 %1494, %v1075
        %v1496 = vpop.permute.xlu0 %1495
        %1499 = vset.pattern.permute.xlu0 0
        %1500 = vperm.xlu0 %1499, %v1076
        %v1501 = vpop.permute.xlu0 %1500
        %1504 = vset.pattern.permute.xlu0 0
        %1505 = vperm.xlu0 %1504, %v1077
        %v1506 = vpop.permute.xlu0 %1505
        %1509 = vset.pattern.permute.xlu0 0
        %1510 = vperm.xlu0 %1509, %v1078
        %v1511 = vpop.permute.xlu0 %1510
        %1514 = vset.pattern.permute.xlu0 0
        %1515 = vperm.xlu0 %1514, %v1079
        %v1516 = vpop.permute.xlu0 %1515
        %1519 = vset.pattern.permute.xlu0 0
        %1520 = vperm.xlu0 %1519, %v1080
        %v1521 = vpop.permute.xlu0 %1520
        %1524 = vset.pattern.permute.xlu0 0
        %1525 = vperm.xlu0 %1524, %v1081
        %v1526 = vpop.permute.xlu0 %1525
        %1529 = vset.pattern.permute.xlu0 0
        %1530 = vperm.xlu0 %1529, %v1082
        %v1531 = vpop.permute.xlu0 %1530
        %1534 = vset.pattern.permute.xlu0 0
        %1535 = vperm.xlu0 %1534, %v1083
        %v1536 = vpop.permute.xlu0 %1535
        %1539 = vset.pattern.permute.xlu0 0
        %1540 = vperm.xlu0 %1539, %v1084
        %v1541 = vpop.permute.xlu0 %1540
        %1544 = vset.pattern.permute.xlu0 0
        %1545 = vperm.xlu0 %1544, %v1085
        %v1546 = vpop.permute.xlu0 %1545
        %1549 = vset.pattern.permute.xlu0 0
        %1550 = vperm.xlu0 %1549, %v1086
        %v1551 = vpop.permute.xlu0 %1550
        %1554 = vset.pattern.permute.xlu0 0
        %1555 = vperm.xlu0 %1554, %v1087
        %v1556 = vpop.permute.xlu0 %1555
        %1559 = vset.pattern.permute.xlu0 0
        %1560 = vperm.xlu0 %1559, %v1088
        %v1561 = vpop.permute.xlu0 %1560
        %1564 = vset.pattern.permute.xlu0 0
        %1565 = vperm.xlu0 %1564, %v1089
        %v1566 = vpop.permute.xlu0 %1565
        %1569 = vset.pattern.permute.xlu0 0
        %1570 = vperm.xlu0 %1569, %v1090
        %v1571 = vpop.permute.xlu0 %1570
        %1574 = vset.pattern.permute.xlu0 0
        %1575 = vperm.xlu0 %1574, %v1091
        %v1576 = vpop.permute.xlu0 %1575
        %1579 = vset.pattern.permute.xlu0 0
        %1580 = vperm.xlu0 %1579, %v1092
        %v1581 = vpop.permute.xlu0 %1580
        %1584 = vset.pattern.permute.xlu0 0
        %1585 = vperm.xlu0 %1584, %v1093
        %v1586 = vpop.permute.xlu0 %1585
        %1589 = vset.pattern.permute.xlu0 0
        %1590 = vperm.xlu0 %1589, %v1094
        %v1591 = vpop.permute.xlu0 %1590
        %1594 = vset.pattern.permute.xlu0 0
        %1595 = vperm.xlu0 %1594, %v1095
        %v1596 = vpop.permute.xlu0 %1595
        %1599 = vset.pattern.permute.xlu0 0
        %1600 = vperm.xlu0 %1599, %v1096
        %v1601 = vpop.permute.xlu0 %1600
        %1604 = vset.pattern.permute.xlu0 0
        %1605 = vperm.xlu0 %1604, %v1097
        %v1606 = vpop.permute.xlu0 %1605
        %1609 = vset.pattern.permute.xlu0 0
        %1610 = vperm.xlu0 %1609, %v1098
        %v1611 = vpop.permute.xlu0 %1610
        %1614 = vset.pattern.permute.xlu0 0
        %1615 = vperm.xlu0 %1614, %v1099
        %v1616 = vpop.permute.xlu0 %1615
        %1619 = vset.pattern.permute.xlu0 0
        %1620 = vperm.xlu0 %1619, %v1100
        %v1621 = vpop.permute.xlu0 %1620
        %1624 = vset.pattern.permute.xlu0 0
        %1625 = vperm.xlu0 %1624, %v1101
        %v1626 = vpop.permute.xlu0 %1625
        %1629 = vset.pattern.permute.xlu0 0
        %1630 = vperm.xlu0 %1629, %v1102
        %v1631 = vpop.permute.xlu0 %1630
        %1634 = vset.pattern.permute.xlu0 0
        %1635 = vperm.xlu0 %1634, %v1103
        %v1636 = vpop.permute.xlu0 %1635
        %1639 = vset.pattern.permute.xlu0 0
        %1640 = vperm.xlu0 %1639, %v1104
        %v1641 = vpop.permute.xlu0 %1640
        %1644 = vset.pattern.permute.xlu0 0
        %1645 = vperm.xlu0 %1644, %v1105
        %v1646 = vpop.permute.xlu0 %1645
        %1649 = vset.pattern.permute.xlu0 0
        %1650 = vperm.xlu0 %1649, %v1106
        %v1651 = vpop.permute.xlu0 %1650
        %1654 = vset.pattern.permute.xlu0 0
        %1655 = vperm.xlu0 %1654, %v1107
        %v1656 = vpop.permute.xlu0 %1655
        %1659 = vset.pattern.permute.xlu0 0
        %1660 = vperm.xlu0 %1659, %v1108
        %v1661 = vpop.permute.xlu0 %1660
        %1664 = vset.pattern.permute.xlu0 0
        %1665 = vperm.xlu0 %1664, %v1109
        %v1666 = vpop.permute.xlu0 %1665
        %1669 = vset.pattern.permute.xlu0 0
        %1670 = vperm.xlu0 %1669, %v1110
        %v1671 = vpop.permute.xlu0 %1670
        %1674 = vset.pattern.permute.xlu0 0
        %1675 = vperm.xlu0 %1674, %v1111
        %v1676 = vpop.permute.xlu0 %1675
        %1679 = vset.pattern.permute.xlu0 0
        %1680 = vperm.xlu0 %1679, %v1112
        %v1681 = vpop.permute.xlu0 %1680
        %1684 = vset.pattern.permute.xlu0 0
        %1685 = vperm.xlu0 %1684, %v1113
        %v1686 = vpop.permute.xlu0 %1685
        %1689 = vset.pattern.permute.xlu0 0
        %1690 = vperm.xlu0 %1689, %v1114
        %v1691 = vpop.permute.xlu0 %1690
        %1694 = vset.pattern.permute.xlu0 0
        %1695 = vperm.xlu0 %1694, %v1115
        %v1696 = vpop.permute.xlu0 %1695
        %1699 = vset.pattern.permute.xlu0 0
        %1700 = vperm.xlu0 %1699, %v1116
        %v1701 = vpop.permute.xlu0 %1700
        %1704 = vset.pattern.permute.xlu0 0
        %1705 = vperm.xlu0 %1704, %v1117
        %v1706 = vpop.permute.xlu0 %1705
        %1709 = vset.pattern.permute.xlu0 0
        %1710 = vperm.xlu0 %1709, %v1118
        %v1711 = vpop.permute.xlu0 %1710
        %1714 = vset.pattern.permute.xlu0 0
        %1715 = vperm.xlu0 %1714, %v1119
        %v1716 = vpop.permute.xlu0 %1715
        %1719 = vset.pattern.permute.xlu0 0
        %1720 = vperm.xlu0 %1719, %v1120
        %v1721 = vpop.permute.xlu0 %1720
        %1724 = vset.pattern.permute.xlu0 0
        %1725 = vperm.xlu0 %1724, %v1121
        %v1726 = vpop.permute.xlu0 %1725
        %1729 = vset.pattern.permute.xlu0 0
        %1730 = vperm.xlu0 %1729, %v1122
        %v1731 = vpop.permute.xlu0 %1730
        %1734 = vset.pattern.permute.xlu0 0
        %1735 = vperm.xlu0 %1734, %v1123
        %v1736 = vpop.permute.xlu0 %1735
        %1739 = vset.pattern.permute.xlu0 0
        %1740 = vperm.xlu0 %1739, %v1124
        %v1741 = vpop.permute.xlu0 %1740
        %1744 = vset.pattern.permute.xlu0 0
        %1745 = vperm.xlu0 %1744, %v1125
        %v1746 = vpop.permute.xlu0 %1745
        %1749 = vset.pattern.permute.xlu0 0
        %1750 = vperm.xlu0 %1749, %v1126
        %v1751 = vpop.permute.xlu0 %1750
        %1754 = vset.pattern.permute.xlu0 0
        %1755 = vperm.xlu0 %1754, %v1127
        %v1756 = vpop.permute.xlu0 %1755
        %1759 = vset.pattern.permute.xlu0 0
        %1760 = vperm.xlu0 %1759, %v1128
        %v1761 = vpop.permute.xlu0 %1760
        %1764 = vset.pattern.permute.xlu0 0
        %1765 = vperm.xlu0 %1764, %v1129
        %v1766 = vpop.permute.xlu0 %1765
        %1769 = vset.pattern.permute.xlu0 0
        %1770 = vperm.xlu0 %1769, %v1130
        %v1771 = vpop.permute.xlu0 %1770
        %1774 = vset.pattern.permute.xlu0 0
        %1775 = vperm.xlu0 %1774, %v1131
        %v1776 = vpop.permute.xlu0 %1775
        %1779 = vset.pattern.permute.xlu0 0
        %1780 = vperm.xlu0 %1779, %v1132
        %v1781 = vpop.permute.xlu0 %1780
        %1784 = vset.pattern.permute.xlu0 0
        %1785 = vperm.xlu0 %1784, %v1133
        %v1786 = vpop.permute.xlu0 %1785
        %1789 = vset.pattern.permute.xlu0 0
        %1790 = vperm.xlu0 %1789, %v1134
        %v1791 = vpop.permute.xlu0 %1790
        %1794 = vset.pattern.permute.xlu0 0
        %1795 = vperm.xlu0 %1794, %v1135
        %v1796 = vpop.permute.xlu0 %1795
        %1799 = vset.pattern.permute.xlu0 0
        %1800 = vperm.xlu0 %1799, %v1136
        %v1801 = vpop.permute.xlu0 %1800
        %1804 = vset.pattern.permute.xlu0 0
        %1805 = vperm.xlu0 %1804, %v1137
        %v1806 = vpop.permute.xlu0 %1805
        %1809 = vset.pattern.permute.xlu0 0
        %1810 = vperm.xlu0 %1809, %v1138
        %v1811 = vpop.permute.xlu0 %1810
        %1814 = vset.pattern.permute.xlu0 0
        %1815 = vperm.xlu0 %1814, %v1139
        %v1816 = vpop.permute.xlu0 %1815
        %1819 = vset.pattern.permute.xlu0 0
        %1820 = vperm.xlu0 %1819, %v1140
        %v1821 = vpop.permute.xlu0 %1820
        %1824 = vset.pattern.permute.xlu0 0
        %1825 = vperm.xlu0 %1824, %v1141
        %v1826 = vpop.permute.xlu0 %1825
        %1829 = vset.pattern.permute.xlu0 0
        %1830 = vperm.xlu0 %1829, %v1142
        %v1831 = vpop.permute.xlu0 %1830
        %1834 = vset.pattern.permute.xlu0 0
        %1835 = vperm.xlu0 %1834, %v1143
        %v1836 = vpop.permute.xlu0 %1835
        %1839 = vset.pattern.permute.xlu0 0
        %1840 = vperm.xlu0 %1839, %v1144
        %v1841 = vpop.permute.xlu0 %1840
        %1844 = vset.pattern.permute.xlu0 0
        %1845 = vperm.xlu0 %1844, %v1145
        %v1846 = vpop.permute.xlu0 %1845
        %1849 = vset.pattern.permute.xlu0 0
        %1850 = vperm.xlu0 %1849, %v1146
        %v1851 = vpop.permute.xlu0 %1850
        %1854 = vset.pattern.permute.xlu0 0
        %1855 = vperm.xlu0 %1854, %v1147
        %v1856 = vpop.permute.xlu0 %1855
        %1859 = vset.pattern.permute.xlu0 0
        %1860 = vperm.xlu0 %1859, %v1148
        %v1861 = vpop.permute.xlu0 %1860
        %1864 = vset.pattern.permute.xlu0 0
        %1865 = vperm.xlu0 %1864, %v1149
        %v1866 = vpop.permute.xlu0 %1865
        %1869 = vset.pattern.permute.xlu0 0
        %1870 = vperm.xlu0 %1869, %v1150
        %v1871 = vpop.permute.xlu0 %1870
        %1874 = vset.pattern.permute.xlu0 0
        %1875 = vperm.xlu0 %1874, %v1151
        %v1876 = vpop.permute.xlu0 %1875
        %1879 = vset.pattern.permute.xlu0 0
        %1880 = vperm.xlu0 %1879, %v1152
        %v1881 = vpop.permute.xlu0 %1880
        %1884 = vset.pattern.permute.xlu0 0
        %1885 = vperm.xlu0 %1884, %v1153
        %v1886 = vpop.permute.xlu0 %1885
        %1889 = vset.pattern.permute.xlu0 0
        %1890 = vperm.xlu0 %1889, %v1154
        %v1891 = vpop.permute.xlu0 %1890
        %1894 = vset.pattern.permute.xlu0 0
        %1895 = vperm.xlu0 %1894, %v1155
        %v1896 = vpop.permute.xlu0 %1895
        %1899 = vset.pattern.permute.xlu0 0
        %1900 = vperm.xlu0 %1899, %v1156
        %v1901 = vpop.permute.xlu0 %1900
        %1904 = vset.pattern.permute.xlu0 0
        %1905 = vperm.xlu0 %1904, %v1157
        %v1906 = vpop.permute.xlu0 %1905
        %1909 = vset.pattern.permute.xlu0 0
        %1910 = vperm.xlu0 %1909, %v1158
        %v1911 = vpop.permute.xlu0 %1910
        %1914 = vset.pattern.permute.xlu0 0
        %1915 = vperm.xlu0 %1914, %v1159
        %v1916 = vpop.permute.xlu0 %1915
        %1919 = vset.pattern.permute.xlu0 0
        %1920 = vperm.xlu0 %1919, %v1160
        %v1921 = vpop.permute.xlu0 %1920
        %1924 = vset.pattern.permute.xlu0 0
        %1925 = vperm.xlu0 %1924, %v1161
        %v1926 = vpop.permute.xlu0 %1925
        %1929 = vset.pattern.permute.xlu0 0
        %1930 = vperm.xlu0 %1929, %v1162
        %v1931 = vpop.permute.xlu0 %1930
        %1934 = vset.pattern.permute.xlu0 0
        %1935 = vperm.xlu0 %1934, %v1163
        %v1936 = vpop.permute.xlu0 %1935
        %1939 = vset.pattern.permute.xlu0 0
        %1940 = vperm.xlu0 %1939, %v1164
        %v1941 = vpop.permute.xlu0 %1940
        %1944 = vset.pattern.permute.xlu0 0
        %1945 = vperm.xlu0 %1944, %v1165
        %v1946 = vpop.permute.xlu0 %1945
        %1949 = vset.pattern.permute.xlu0 0
        %1950 = vperm.xlu0 %1949, %v1166
        %v1951 = vpop.permute.xlu0 %1950
        %1954 = vset.pattern.permute.xlu0 0
        %1955 = vperm.xlu0 %1954, %v1167
        %v1956 = vpop.permute.xlu0 %1955
        %1959 = vset.pattern.permute.xlu0 0
        %1960 = vperm.xlu0 %1959, %v1168
        %v1961 = vpop.permute.xlu0 %1960
        %1964 = vset.pattern.permute.xlu0 0
        %1965 = vperm.xlu0 %1964, %v1169
        %v1966 = vpop.permute.xlu0 %1965
        %1969 = vset.pattern.permute.xlu0 0
        %1970 = vperm.xlu0 %1969, %v1170
        %v1971 = vpop.permute.xlu0 %1970
        %1974 = vset.pattern.permute.xlu0 0
        %1975 = vperm.xlu0 %1974, %v1171
        %v1976 = vpop.permute.xlu0 %1975
        %1979 = vset.pattern.permute.xlu0 0
        %1980 = vperm.xlu0 %1979, %v1172
        %v1981 = vpop.permute.xlu0 %1980
        %1984 = vset.pattern.permute.xlu0 0
        %1985 = vperm.xlu0 %1984, %v1173
        %v1986 = vpop.permute.xlu0 %1985
        %1989 = vset.pattern.permute.xlu0 0
        %1990 = vperm.xlu0 %1989, %v1174
        %v1991 = vpop.permute.xlu0 %1990
        %1994 = vset.pattern.permute.xlu0 0
        %1995 = vperm.xlu0 %1994, %v1175
        %v1996 = vpop.permute.xlu0 %1995
        %1999 = vset.pattern.permute.xlu0 0
        %2000 = vperm.xlu0 %1999, %v1176
        %v2001 = vpop.permute.xlu0 %2000
        %2004 = vset.pattern.permute.xlu0 0
        %2005 = vperm.xlu0 %2004, %v1177
        %v2006 = vpop.permute.xlu0 %2005
        %2009 = vset.pattern.permute.xlu0 0
        %2010 = vperm.xlu0 %2009, %v1178
        %v2011 = vpop.permute.xlu0 %2010
        %2014 = vset.pattern.permute.xlu0 0
        %2015 = vperm.xlu0 %2014, %v1179
        %v2016 = vpop.permute.xlu0 %2015
        %2019 = vset.pattern.permute.xlu0 0
        %2020 = vperm.xlu0 %2019, %v1180
        %v2021 = vpop.permute.xlu0 %2020
        %2024 = vset.pattern.permute.xlu0 0
        %2025 = vperm.xlu0 %2024, %v1181
        %v2026 = vpop.permute.xlu0 %2025
        %2029 = vset.pattern.permute.xlu0 0
        %2030 = vperm.xlu0 %2029, %v1182
        %v2031 = vpop.permute.xlu0 %2030
        %2034 = vset.pattern.permute.xlu0 0
        %2035 = vperm.xlu0 %2034, %v1183
        %v2036 = vpop.permute.xlu0 %2035
        %2039 = vset.pattern.permute.xlu0 0
        %2040 = vperm.xlu0 %2039, %v1184
        %v2041 = vpop.permute.xlu0 %2040
        %2044 = vset.pattern.permute.xlu0 0
        %2045 = vperm.xlu0 %2044, %v1185
        %v2046 = vpop.permute.xlu0 %2045
        %2049 = vset.pattern.permute.xlu0 0
        %2050 = vperm.xlu0 %2049, %v1186
        %v2051 = vpop.permute.xlu0 %2050
        %2054 = vset.pattern.permute.xlu0 0
        %2055 = vperm.xlu0 %2054, %v1187
        %v2056 = vpop.permute.xlu0 %2055
        %2059 = vset.pattern.permute.xlu0 0
        %2060 = vperm.xlu0 %2059, %v1188
        %v2061 = vpop.permute.xlu0 %2060
        %2064 = vset.pattern.permute.xlu0 0
        %2065 = vperm.xlu0 %2064, %v1189
        %v2066 = vpop.permute.xlu0 %2065
        %2069 = vset.pattern.permute.xlu0 0
        %2070 = vperm.xlu0 %2069, %v1190
        %v2071 = vpop.permute.xlu0 %2070
        %2074 = vset.pattern.permute.xlu0 0
        %2075 = vperm.xlu0 %2074, %v1191
        %v2076 = vpop.permute.xlu0 %2075
        %2079 = vset.pattern.permute.xlu0 0
        %2080 = vperm.xlu0 %2079, %v1192
        %v2081 = vpop.permute.xlu0 %2080
        %2084 = vset.pattern.permute.xlu0 0
        %2085 = vperm.xlu0 %2084, %v1193
        %v2086 = vpop.permute.xlu0 %2085
        %2089 = vset.pattern.permute.xlu0 0
        %2090 = vperm.xlu0 %2089, %v1194
        %v2091 = vpop.permute.xlu0 %2090
        %2094 = vset.pattern.permute.xlu0 0
        %2095 = vperm.xlu0 %2094, %v1195
        %v2096 = vpop.permute.xlu0 %2095
        %2099 = vset.pattern.permute.xlu0 0
        %2100 = vperm.xlu0 %2099, %v1196
        %v2101 = vpop.permute.xlu0 %2100
        %2104 = vset.pattern.permute.xlu0 0
        %2105 = vperm.xlu0 %2104, %v1197
        %v2106 = vpop.permute.xlu0 %2105
        %2109 = vset.pattern.permute.xlu0 0
        %2110 = vperm.xlu0 %2109, %v1198
        %v2111 = vpop.permute.xlu0 %2110
        %2114 = vset.pattern.permute.xlu0 0
        %2115 = vperm.xlu0 %2114, %v1199
        %v2116 = vpop.permute.xlu0 %2115
        %2119 = vset.pattern.permute.xlu0 0
        %2120 = vperm.xlu0 %2119, %v1200
        %v2121 = vpop.permute.xlu0 %2120
        %2124 = vset.pattern.permute.xlu0 0
        %2125 = vperm.xlu0 %2124, %v1201
        %v2126 = vpop.permute.xlu0 %2125
        %2129 = vset.pattern.permute.xlu0 0
        %2130 = vperm.xlu0 %2129, %v1202
        %v2131 = vpop.permute.xlu0 %2130
        %2134 = vset.pattern.permute.xlu0 0
        %2135 = vperm.xlu0 %2134, %v1203
        %v2136 = vpop.permute.xlu0 %2135
        %2139 = vset.pattern.permute.xlu0 0
        %2140 = vperm.xlu0 %2139, %v1204
        %v2141 = vpop.permute.xlu0 %2140
        %2144 = vset.pattern.permute.xlu0 0
        %2145 = vperm.xlu0 %2144, %v1205
        %v2146 = vpop.permute.xlu0 %2145
        %2149 = vset.pattern.permute.xlu0 0
        %2150 = vperm.xlu0 %2149, %v1206
        %v2151 = vpop.permute.xlu0 %2150
        %2154 = vset.pattern.permute.xlu0 0
        %2155 = vperm.xlu0 %2154, %v1207
        %v2156 = vpop.permute.xlu0 %2155
        %2159 = vset.pattern.permute.xlu0 0
        %2160 = vperm.xlu0 %2159, %v1208
        %v2161 = vpop.permute.xlu0 %2160
        %2164 = vset.pattern.permute.xlu0 0
        %2165 = vperm.xlu0 %2164, %v1209
        %v2166 = vpop.permute.xlu0 %2165
        %2169 = vset.pattern.permute.xlu0 0
        %2170 = vperm.xlu0 %2169, %v1210
        %v2171 = vpop.permute.xlu0 %2170
        %2174 = vset.pattern.permute.xlu0 0
        %2175 = vperm.xlu0 %2174, %v1211
        %v2176 = vpop.permute.xlu0 %2175
        %2179 = vset.pattern.permute.xlu0 0
        %2180 = vperm.xlu0 %2179, %v1212
        %v2181 = vpop.permute.xlu0 %2180
        %2184 = vset.pattern.permute.xlu0 0
        %2185 = vperm.xlu0 %2184, %v1213
        %v2186 = vpop.permute.xlu0 %2185
        %2189 = vset.pattern.permute.xlu0 0
        %2190 = vperm.xlu0 %2189, %v1214
        %v2191 = vpop.permute.xlu0 %2190
        %2194 = vset.pattern.permute.xlu0 0
        %2195 = vperm.xlu0 %2194, %v1215
        %v2196 = vpop.permute.xlu0 %2195
        %2199 = vset.pattern.permute.xlu0 0
        %2200 = vperm.xlu0 %2199, %v1216
        %v2201 = vpop.permute.xlu0 %2200
        %2204 = vset.pattern.permute.xlu0 0
        %2205 = vperm.xlu0 %2204, %v1217
        %v2206 = vpop.permute.xlu0 %2205
        %2209 = vset.pattern.permute.xlu0 0
        %2210 = vperm.xlu0 %2209, %v1218
        %v2211 = vpop.permute.xlu0 %2210
        %2214 = vset.pattern.permute.xlu0 0
        %2215 = vperm.xlu0 %2214, %v1219
        %v2216 = vpop.permute.xlu0 %2215
        %2219 = vset.pattern.permute.xlu0 0
        %2220 = vperm.xlu0 %2219, %v1220
        %v2221 = vpop.permute.xlu0 %2220
        %2224 = vset.pattern.permute.xlu0 0
        %2225 = vperm.xlu0 %2224, %v1221
        %v2226 = vpop.permute.xlu0 %2225
        %2229 = vset.pattern.permute.xlu0 0
        %2230 = vperm.xlu0 %2229, %v1222
        %v2231 = vpop.permute.xlu0 %2230
        %2234 = vset.pattern.permute.xlu0 0
        %2235 = vperm.xlu0 %2234, %v1223
        %v2236 = vpop.permute.xlu0 %2235
        %2239 = vset.pattern.permute.xlu0 0
        %2240 = vperm.xlu0 %2239, %v1224
        %v2241 = vpop.permute.xlu0 %2240
        %2244 = vset.pattern.permute.xlu0 0
        %2245 = vperm.xlu0 %2244, %v1225
        %v2246 = vpop.permute.xlu0 %2245
        %2249 = vset.pattern.permute.xlu0 0
        %2250 = vperm.xlu0 %2249, %v1226
        %v2251 = vpop.permute.xlu0 %2250
        %2254 = vset.pattern.permute.xlu0 0
        %2255 = vperm.xlu0 %2254, %v1227
        %v2256 = vpop.permute.xlu0 %2255
        %2259 = vset.pattern.permute.xlu0 0
        %2260 = vperm.xlu0 %2259, %v1228
        %v2261 = vpop.permute.xlu0 %2260
        %2264 = vset.pattern.permute.xlu0 0
        %2265 = vperm.xlu0 %2264, %v1229
        %v2266 = vpop.permute.xlu0 %2265
        %2269 = vset.pattern.permute.xlu0 0
        %2270 = vperm.xlu0 %2269, %v1230
        %v2271 = vpop.permute.xlu0 %2270
        %2274 = vset.pattern.permute.xlu0 0
        %2275 = vperm.xlu0 %2274, %v1231
        %v2276 = vpop.permute.xlu0 %2275
        %2279 = vset.pattern.permute.xlu0 0
        %2280 = vperm.xlu0 %2279, %v1232
        %v2281 = vpop.permute.xlu0 %2280
        %2284 = vset.pattern.permute.xlu0 0
        %2285 = vperm.xlu0 %2284, %v1233
        %v2286 = vpop.permute.xlu0 %2285
        %2289 = vset.pattern.permute.xlu0 0
        %2290 = vperm.xlu0 %2289, %v1234
        %v2291 = vpop.permute.xlu0 %2290
        %2294 = vset.pattern.permute.xlu0 0
        %2295 = vperm.xlu0 %2294, %v1235
        %v2296 = vpop.permute.xlu0 %2295
        %2299 = vset.pattern.permute.xlu0 0
        %2300 = vperm.xlu0 %2299, %v1236
        %v2301 = vpop.permute.xlu0 %2300
        %2304 = vset.pattern.permute.xlu0 0
        %2305 = vperm.xlu0 %2304, %v1237
        %v2306 = vpop.permute.xlu0 %2305
        %2309 = vset.pattern.permute.xlu0 0
        %2310 = vperm.xlu0 %2309, %v1238
        %v2311 = vpop.permute.xlu0 %2310
        %2314 = vset.pattern.permute.xlu0 0
        %2315 = vperm.xlu0 %2314, %v1239
        %v2316 = vpop.permute.xlu0 %2315
        %2319 = vset.pattern.permute.xlu0 0
        %2320 = vperm.xlu0 %2319, %v1240
        %v2321 = vpop.permute.xlu0 %2320
        %2324 = vset.pattern.permute.xlu0 0
        %2325 = vperm.xlu0 %2324, %v1241
        %v2326 = vpop.permute.xlu0 %2325
        %2329 = vset.pattern.permute.xlu0 0
        %2330 = vperm.xlu0 %2329, %v1242
        %v2331 = vpop.permute.xlu0 %2330
        %2334 = vset.pattern.permute.xlu0 0
        %2335 = vperm.xlu0 %2334, %v1243
        %v2336 = vpop.permute.xlu0 %2335
        %2339 = vset.pattern.permute.xlu0 0
        %2340 = vperm.xlu0 %2339, %v1244
        %v2341 = vpop.permute.xlu0 %2340
        %2344 = vset.pattern.permute.xlu0 0
        %2345 = vperm.xlu0 %2344, %v1245
        %v2346 = vpop.permute.xlu0 %2345
        %2349 = vset.pattern.permute.xlu0 0
        %2350 = vperm.xlu0 %2349, %v1246
        %v2351 = vpop.permute.xlu0 %2350
        %2354 = vset.pattern.permute.xlu0 0
        %2355 = vperm.xlu0 %2354, %v1247
        %v2356 = vpop.permute.xlu0 %2355
        %2359 = vset.pattern.permute.xlu0 0
        %2360 = vperm.xlu0 %2359, %v1248
        %v2361 = vpop.permute.xlu0 %2360
        %2364 = vset.pattern.permute.xlu0 0
        %2365 = vperm.xlu0 %2364, %v1249
        %v2366 = vpop.permute.xlu0 %2365
        %2369 = vset.pattern.permute.xlu0 0
        %2370 = vperm.xlu0 %2369, %v1250
        %v2371 = vpop.permute.xlu0 %2370
        %2374 = vset.pattern.permute.xlu0 0
        %2375 = vperm.xlu0 %2374, %v1251
        %v2376 = vpop.permute.xlu0 %2375
        %2379 = vset.pattern.permute.xlu0 0
        %2380 = vperm.xlu0 %2379, %v1252
        %v2381 = vpop.permute.xlu0 %2380
        %2384 = vset.pattern.permute.xlu0 0
        %2385 = vperm.xlu0 %2384, %v1253
        %v2386 = vpop.permute.xlu0 %2385
        %2389 = vset.pattern.permute.xlu0 0
        %2390 = vperm.xlu0 %2389, %v1254
        %v2391 = vpop.permute.xlu0 %2390
        %2394 = vset.pattern.permute.xlu0 0
        %2395 = vperm.xlu0 %2394, %v1255
        %v2396 = vpop.permute.xlu0 %2395
        %2399 = vset.pattern.permute.xlu0 0
        %2400 = vperm.xlu0 %2399, %v1256
        %v2401 = vpop.permute.xlu0 %2400
        %2404 = vset.pattern.permute.xlu0 0
        %2405 = vperm.xlu0 %2404, %v1257
        %v2406 = vpop.permute.xlu0 %2405
        %2409 = vset.pattern.permute.xlu0 0
        %2410 = vperm.xlu0 %2409, %v1258
        %v2411 = vpop.permute.xlu0 %2410
        %2414 = vset.pattern.permute.xlu0 0
        %2415 = vperm.xlu0 %2414, %v1259
        %v2416 = vpop.permute.xlu0 %2415
        %2419 = vset.pattern.permute.xlu0 0
        %2420 = vperm.xlu0 %2419, %v1260
        %v2421 = vpop.permute.xlu0 %2420
        %2424 = vset.pattern.permute.xlu0 0
        %2425 = vperm.xlu0 %2424, %v1261
        %v2426 = vpop.permute.xlu0 %2425
        %2429 = vset.pattern.permute.xlu0 0
        %2430 = vperm.xlu0 %2429, %v1262
        %v2431 = vpop.permute.xlu0 %2430
        %2434 = vset.pattern.permute.xlu0 0
        %2435 = vperm.xlu0 %2434, %v1263
        %v2436 = vpop.permute.xlu0 %2435
        %2439 = vset.pattern.permute.xlu0 0
        %2440 = vperm.xlu0 %2439, %v1264
        %v2441 = vpop.permute.xlu0 %2440
        %2444 = vset.pattern.permute.xlu0 0
        %2445 = vperm.xlu0 %2444, %v1265
        %v2446 = vpop.permute.xlu0 %2445
        %2449 = vset.pattern.permute.xlu0 0
        %2450 = vperm.xlu0 %2449, %v1266
        %v2451 = vpop.permute.xlu0 %2450
        %2454 = vset.pattern.permute.xlu0 0
        %2455 = vperm.xlu0 %2454, %v1267
        %v2456 = vpop.permute.xlu0 %2455
        %2459 = vset.pattern.permute.xlu0 0
        %2460 = vperm.xlu0 %2459, %v1268
        %v2461 = vpop.permute.xlu0 %2460
        %2464 = vset.pattern.permute.xlu0 0
        %2465 = vperm.xlu0 %2464, %v1269
        %v2466 = vpop.permute.xlu0 %2465
        %2469 = vset.pattern.permute.xlu0 0
        %2470 = vperm.xlu0 %2469, %v1270
        %v2471 = vpop.permute.xlu0 %2470
        %2474 = vset.pattern.permute.xlu0 0
        %2475 = vperm.xlu0 %2474, %v1271
        %v2476 = vpop.permute.xlu0 %2475
        %2479 = vset.pattern.permute.xlu0 0
        %2480 = vperm.xlu0 %2479, %v1272
        %v2481 = vpop.permute.xlu0 %2480
        %2484 = vset.pattern.permute.xlu0 0
        %2485 = vperm.xlu0 %2484, %v1273
        %v2486 = vpop.permute.xlu0 %2485
        %2489 = vset.pattern.permute.xlu0 0
        %2490 = vperm.xlu0 %2489, %v1274
        %v2491 = vpop.permute.xlu0 %2490
        %2494 = vset.pattern.permute.xlu0 0
        %2495 = vperm.xlu0 %2494, %v1275
        %v2496 = vpop.permute.xlu0 %2495
        %2499 = vset.pattern.permute.xlu0 0
        %2500 = vperm.xlu0 %2499, %v1276
        %v2501 = vpop.permute.xlu0 %2500
        %2504 = vset.pattern.permute.xlu0 0
        %2505 = vperm.xlu0 %2504, %v1277
        %v2506 = vpop.permute.xlu0 %2505
        %2509 = vset.pattern.permute.xlu0 0
        %2510 = vperm.xlu0 %2509, %v1278
        %v2511 = vpop.permute.xlu0 %2510
        %2514 = vset.pattern.permute.xlu0 0
        %2515 = vperm.xlu0 %2514, %v1279
        %v2516 = vpop.permute.xlu0 %2515
        %2519 = vset.pattern.permute.xlu0 0
        %2520 = vperm.xlu0 %2519, %v1280
        %v2521 = vpop.permute.xlu0 %2520
        %2524 = vset.pattern.permute.xlu0 0
        %2525 = vperm.xlu0 %2524, %v1281
        %v2526 = vpop.permute.xlu0 %2525
        %2529 = vset.pattern.permute.xlu0 0
        %2530 = vperm.xlu0 %2529, %v1282
        %v2531 = vpop.permute.xlu0 %2530
        %2534 = vset.pattern.permute.xlu0 0
        %2535 = vperm.xlu0 %2534, %v1283
        %v2536 = vpop.permute.xlu0 %2535
        %2539 = vset.pattern.permute.xlu0 0
        %2540 = vperm.xlu0 %2539, %v1284
        %v2541 = vpop.permute.xlu0 %2540
        %2544 = vset.pattern.permute.xlu0 0
        %2545 = vperm.xlu0 %2544, %v1285
        %v2546 = vpop.permute.xlu0 %2545
        %2549 = vset.pattern.permute.xlu0 0
        %2550 = vperm.xlu0 %2549, %v1286
        %v2551 = vpop.permute.xlu0 %2550
        %2554 = vset.pattern.permute.xlu0 0
        %2555 = vperm.xlu0 %2554, %v1287
        %v2556 = vpop.permute.xlu0 %2555
        %2559 = vset.pattern.permute.xlu0 0
        %2560 = vperm.xlu0 %2559, %v1288
        %v2561 = vpop.permute.xlu0 %2560
        %2564 = vset.pattern.permute.xlu0 0
        %2565 = vperm.xlu0 %2564, %v1289
        %v2566 = vpop.permute.xlu0 %2565
        %2569 = vset.pattern.permute.xlu0 0
        %2570 = vperm.xlu0 %2569, %v1290
        %v2571 = vpop.permute.xlu0 %2570
        %2574 = vset.pattern.permute.xlu0 0
        %2575 = vperm.xlu0 %2574, %v1291
        %v2576 = vpop.permute.xlu0 %2575
        %2579 = vset.pattern.permute.xlu0 0
        %2580 = vperm.xlu0 %2579, %v1292
        %v2581 = vpop.permute.xlu0 %2580
        %2584 = vset.pattern.permute.xlu0 0
        %2585 = vperm.xlu0 %2584, %v1293
        %v2586 = vpop.permute.xlu0 %2585
        %2589 = vset.pattern.permute.xlu0 0
        %2590 = vperm.xlu0 %2589, %v1294
        %v2591 = vpop.permute.xlu0 %2590
        %2594 = vset.pattern.permute.xlu0 0
        %2595 = vperm.xlu0 %2594, %v1295
        %v2596 = vpop.permute.xlu0 %2595
        %2599 = vset.pattern.permute.xlu0 0
        %2600 = vperm.xlu0 %2599, %v1296
        %v2601 = vpop.permute.xlu0 %2600
        %2604 = vset.pattern.permute.xlu0 0
        %2605 = vperm.xlu0 %2604, %v1297
        %v2606 = vpop.permute.xlu0 %2605
        %2609 = vset.pattern.permute.xlu0 0
        %2610 = vperm.xlu0 %2609, %v1298
        %v2611 = vpop.permute.xlu0 %2610
        %2614 = vset.pattern.permute.xlu0 0
        %2615 = vperm.xlu0 %2614, %v1299
        %v2616 = vpop.permute.xlu0 %2615
        %2619 = vset.pattern.permute.xlu0 0
        %2620 = vperm.xlu0 %2619, %v1300
        %v2621 = vpop.permute.xlu0 %2620
        %2624 = vset.pattern.permute.xlu0 0
        %2625 = vperm.xlu0 %2624, %v1301
        %v2626 = vpop.permute.xlu0 %2625
        %2629 = vset.pattern.permute.xlu0 0
        %2630 = vperm.xlu0 %2629, %v1302
        %v2631 = vpop.permute.xlu0 %2630
        %2634 = vset.pattern.permute.xlu0 0
        %2635 = vperm.xlu0 %2634, %v1303
        %v2636 = vpop.permute.xlu0 %2635
        %2639 = vset.pattern.permute.xlu0 0
        %2640 = vperm.xlu0 %2639, %v1304
        %v2641 = vpop.permute.xlu0 %2640
        %2644 = vset.pattern.permute.xlu0 0
        %2645 = vperm.xlu0 %2644, %v1305
        %v2646 = vpop.permute.xlu0 %2645
        %2649 = vset.pattern.permute.xlu0 0
        %2650 = vperm.xlu0 %2649, %v1306
        %v2651 = vpop.permute.xlu0 %2650
        %2654 = vset.pattern.permute.xlu0 0
        %2655 = vperm.xlu0 %2654, %v1307
        %v2656 = vpop.permute.xlu0 %2655
        %2659 = vset.pattern.permute.xlu0 0
        %2660 = vperm.xlu0 %2659, %v1308
        %v2661 = vpop.permute.xlu0 %2660
        %2664 = vset.pattern.permute.xlu0 0
        %2665 = vperm.xlu0 %2664, %v1309
        %v2666 = vpop.permute.xlu0 %2665
        %2669 = vset.pattern.permute.xlu0 0
        %2670 = vperm.xlu0 %2669, %v1310
        %v2671 = vpop.permute.xlu0 %2670
        %2674 = vset.pattern.permute.xlu0 0
        %2675 = vperm.xlu0 %2674, %v1311
        %v2676 = vpop.permute.xlu0 %2675
        %2679 = vset.pattern.permute.xlu0 0
        %2680 = vperm.xlu0 %2679, %v1312
        %v2681 = vpop.permute.xlu0 %2680
        %2684 = vset.pattern.permute.xlu0 0
        %2685 = vperm.xlu0 %2684, %v1313
        %v2686 = vpop.permute.xlu0 %2685
        %2689 = vset.pattern.permute.xlu0 0
        %2690 = vperm.xlu0 %2689, %v1314
        %v2691 = vpop.permute.xlu0 %2690
        %2694 = vset.pattern.permute.xlu0 0
        %2695 = vperm.xlu0 %2694, %v1315
        %v2696 = vpop.permute.xlu0 %2695
        %2699 = vset.pattern.permute.xlu0 0
        %2700 = vperm.xlu0 %2699, %v1316
        %v2701 = vpop.permute.xlu0 %2700
        %2704 = vset.pattern.permute.xlu0 0
        %2705 = vperm.xlu0 %2704, %v1317
        %v2706 = vpop.permute.xlu0 %2705
        %2709 = vset.pattern.permute.xlu0 0
        %2710 = vperm.xlu0 %2709, %v1318
        %v2711 = vpop.permute.xlu0 %2710
        %2714 = vset.pattern.permute.xlu0 0
        %2715 = vperm.xlu0 %2714, %v1319
        %v2716 = vpop.permute.xlu0 %2715
        %2719 = vset.pattern.permute.xlu0 0
        %2720 = vperm.xlu0 %2719, %v1320
        %v2721 = vpop.permute.xlu0 %2720
        %2724 = vset.pattern.permute.xlu0 0
        %2725 = vperm.xlu0 %2724, %v1321
        %v2726 = vpop.permute.xlu0 %2725
        %2729 = vset.pattern.permute.xlu0 0
        %2730 = vperm.xlu0 %2729, %v1322
        %v2731 = vpop.permute.xlu0 %2730
        %2734 = vset.pattern.permute.xlu0 0
        %2735 = vperm.xlu0 %2734, %v1323
        %v2736 = vpop.permute.xlu0 %2735
        %2739 = vset.pattern.permute.xlu0 0
        %2740 = vperm.xlu0 %2739, %v1324
        %v2741 = vpop.permute.xlu0 %2740
        %2744 = vset.pattern.permute.xlu0 0
        %2745 = vperm.xlu0 %2744, %v1325
        %v2746 = vpop.permute.xlu0 %2745
        %2749 = vset.pattern.permute.xlu0 0
        %2750 = vperm.xlu0 %2749, %v1326
        %v2751 = vpop.permute.xlu0 %2750
        %2754 = vset.pattern.permute.xlu0 0
        %2755 = vperm.xlu0 %2754, %v1327
        %v2756 = vpop.permute.xlu0 %2755
        %2759 = vset.pattern.permute.xlu0 0
        %2760 = vperm.xlu0 %2759, %v1328
        %v2761 = vpop.permute.xlu0 %2760
        %2764 = vset.pattern.permute.xlu0 0
        %2765 = vperm.xlu0 %2764, %v1329
        %v2766 = vpop.permute.xlu0 %2765
        %2769 = vset.pattern.permute.xlu0 0
        %2770 = vperm.xlu0 %2769, %v1330
        %v2771 = vpop.permute.xlu0 %2770
        %2774 = vset.pattern.permute.xlu0 0
        %2775 = vperm.xlu0 %2774, %v1331
        %v2776 = vpop.permute.xlu0 %2775
        %2779 = vset.pattern.permute.xlu0 0
        %2780 = vperm.xlu0 %2779, %v1332
        %v2781 = vpop.permute.xlu0 %2780
        %2784 = vset.pattern.permute.xlu0 0
        %2785 = vperm.xlu0 %2784, %v1333
        %v2786 = vpop.permute.xlu0 %2785
        %2789 = vset.pattern.permute.xlu0 0
        %2790 = vperm.xlu0 %2789, %v1334
        %v2791 = vpop.permute.xlu0 %2790
        %2794 = vset.pattern.permute.xlu0 0
        %2795 = vperm.xlu0 %2794, %v1335
        %v2796 = vpop.permute.xlu0 %2795
        %2799 = vset.pattern.permute.xlu0 0
        %2800 = vperm.xlu0 %2799, %v1336
        %v2801 = vpop.permute.xlu0 %2800
        %2804 = vset.pattern.permute.xlu0 0
        %2805 = vperm.xlu0 %2804, %v1337
        %v2806 = vpop.permute.xlu0 %2805
        %2809 = vset.pattern.permute.xlu0 0
        %2810 = vperm.xlu0 %2809, %v1338
        %v2811 = vpop.permute.xlu0 %2810
        %2814 = vset.pattern.permute.xlu0 0
        %2815 = vperm.xlu0 %2814, %v1339
        %v2816 = vpop.permute.xlu0 %2815
        %2819 = vset.pattern.permute.xlu0 0
        %2820 = vperm.xlu0 %2819, %v1340
        %v2821 = vpop.permute.xlu0 %2820
        %2824 = vset.pattern.permute.xlu0 0
        %2825 = vperm.xlu0 %2824, %v1341
        %v2826 = vpop.permute.xlu0 %2825
        %2829 = vset.pattern.permute.xlu0 0
        %2830 = vperm.xlu0 %2829, %v1342
        %v2831 = vpop.permute.xlu0 %2830
        %2834 = vset.pattern.permute.xlu0 0
        %2835 = vperm.xlu0 %2834, %v1343
        %v2836 = vpop.permute.xlu0 %2835
        %2839 = vset.pattern.permute.xlu0 0
        %2840 = vperm.xlu0 %2839, %v1344
        %v2841 = vpop.permute.xlu0 %2840
        %2844 = vset.pattern.permute.xlu0 0
        %2845 = vperm.xlu0 %2844, %v1345
        %v2846 = vpop.permute.xlu0 %2845
        %2849 = vset.pattern.permute.xlu0 0
        %2850 = vperm.xlu0 %2849, %v1346
        %v2851 = vpop.permute.xlu0 %2850
        %2854 = vset.pattern.permute.xlu0 0
        %2855 = vperm.xlu0 %2854, %v1347
        %v2856 = vpop.permute.xlu0 %2855
        %2859 = vset.pattern.permute.xlu0 0
        %2860 = vperm.xlu0 %2859, %v1348
        %v2861 = vpop.permute.xlu0 %2860
        %2864 = vset.pattern.permute.xlu0 0
        %2865 = vperm.xlu0 %2864, %v1349
        %v2866 = vpop.permute.xlu0 %2865
        %2869 = vset.pattern.permute.xlu0 0
        %2870 = vperm.xlu0 %2869, %v1350
        %v2871 = vpop.permute.xlu0 %2870
        %2874 = vset.pattern.permute.xlu0 0
        %2875 = vperm.xlu0 %2874, %v1351
        %v2876 = vpop.permute.xlu0 %2875
        %2879 = vset.pattern.permute.xlu0 0
        %2880 = vperm.xlu0 %2879, %v1352
        %v2881 = vpop.permute.xlu0 %2880
        %2884 = vset.pattern.permute.xlu0 0
        %2885 = vperm.xlu0 %2884, %v1353
        %v2886 = vpop.permute.xlu0 %2885
        %2889 = vset.pattern.permute.xlu0 0
        %2890 = vperm.xlu0 %2889, %v1354
        %v2891 = vpop.permute.xlu0 %2890
        %2894 = vset.pattern.permute.xlu0 0
        %2895 = vperm.xlu0 %2894, %v1355
        %v2896 = vpop.permute.xlu0 %2895
        %2899 = vset.pattern.permute.xlu0 0
        %2900 = vperm.xlu0 %2899, %v1356
        %v2901 = vpop.permute.xlu0 %2900
        %2904 = vset.pattern.permute.xlu0 0
        %2905 = vperm.xlu0 %2904, %v1357
        %v2906 = vpop.permute.xlu0 %2905
        %2909 = vset.pattern.permute.xlu0 0
        %2910 = vperm.xlu0 %2909, %v1358
        %v2911 = vpop.permute.xlu0 %2910
        %2914 = vset.pattern.permute.xlu0 0
        %2915 = vperm.xlu0 %2914, %v1359
        %v2916 = vpop.permute.xlu0 %2915
        %2919 = vset.pattern.permute.xlu0 0
        %2920 = vperm.xlu0 %2919, %v1360
        %v2921 = vpop.permute.xlu0 %2920
        %2924 = vset.pattern.permute.xlu0 0
        %2925 = vperm.xlu0 %2924, %v1361
        %v2926 = vpop.permute.xlu0 %2925
        %2929 = vset.pattern.permute.xlu0 0
        %2930 = vperm.xlu0 %2929, %v1362
        %v2931 = vpop.permute.xlu0 %2930
        %2934 = vset.pattern.permute.xlu0 0
        %2935 = vperm.xlu0 %2934, %v1363
        %v2936 = vpop.permute.xlu0 %2935
        %2939 = vset.pattern.permute.xlu0 0
        %2940 = vperm.xlu0 %2939, %v1364
        %v2941 = vpop.permute.xlu0 %2940
        %2944 = vset.pattern.permute.xlu0 0
        %2945 = vperm.xlu0 %2944, %v1365
        %v2946 = vpop.permute.xlu0 %2945
        %2949 = vset.pattern.permute.xlu0 0
        %2950 = vperm.xlu0 %2949, %v1366
        %v2951 = vpop.permute.xlu0 %2950
        %2954 = vset.pattern.permute.xlu0 0
        %2955 = vperm.xlu0 %2954, %v1367
        %v2956 = vpop.permute.xlu0 %2955
        %2959 = vset.pattern.permute.xlu0 0
        %2960 = vperm.xlu0 %2959, %v1368
        %v2961 = vpop.permute.xlu0 %2960
        %2964 = vset.pattern.permute.xlu0 0
        %2965 = vperm.xlu0 %2964, %v1369
        %v2966 = vpop.permute.xlu0 %2965
        %2969 = vset.pattern.permute.xlu0 0
        %2970 = vperm.xlu0 %2969, %v1370
        %v2971 = vpop.permute.xlu0 %2970
        %2974 = vset.pattern.permute.xlu0 0
        %2975 = vperm.xlu0 %2974, %v1371
        %v2976 = vpop.permute.xlu0 %2975
        %2979 = vset.pattern.permute.xlu0 0
        %2980 = vperm.xlu0 %2979, %v1372
        %v2981 = vpop.permute.xlu0 %2980
        %2984 = vset.pattern.permute.xlu0 0
        %2985 = vperm.xlu0 %2984, %v1373
        %v2986 = vpop.permute.xlu0 %2985
        %2989 = vset.pattern.permute.xlu0 0
        %2990 = vperm.xlu0 %2989, %v1374
        %v2991 = vpop.permute.xlu0 %2990
        %2994 = vset.pattern.permute.xlu0 0
        %2995 = vperm.xlu0 %2994, %v1375
        %v2996 = vpop.permute.xlu0 %2995
        %2999 = vset.pattern.permute.xlu0 0
        %3000 = vperm.xlu0 %2999, %v1376
        %v3001 = vpop.permute.xlu0 %3000
        %3004 = vset.pattern.permute.xlu0 0
        %3005 = vperm.xlu0 %3004, %v1377
        %v3006 = vpop.permute.xlu0 %3005
        %3009 = vset.pattern.permute.xlu0 0
        %3010 = vperm.xlu0 %3009, %v1378
        %v3011 = vpop.permute.xlu0 %3010
        %3014 = vset.pattern.permute.xlu0 0
        %3015 = vperm.xlu0 %3014, %v1379
        %v3016 = vpop.permute.xlu0 %3015
        %3019 = vset.pattern.permute.xlu0 0
        %3020 = vperm.xlu0 %3019, %v1380
        %v3021 = vpop.permute.xlu0 %3020
        %3024 = vset.pattern.permute.xlu0 0
        %3025 = vperm.xlu0 %3024, %v1381
        %v3026 = vpop.permute.xlu0 %3025
        %3029 = vset.pattern.permute.xlu0 0
        %3030 = vperm.xlu0 %3029, %v1382
        %v3031 = vpop.permute.xlu0 %3030
        %3034 = vset.pattern.permute.xlu0 0
        %3035 = vperm.xlu0 %3034, %v1383
        %v3036 = vpop.permute.xlu0 %3035
        %3039 = vset.pattern.permute.xlu0 0
        %3040 = vperm.xlu0 %3039, %v1384
        %v3041 = vpop.permute.xlu0 %3040
        %3044 = vset.pattern.permute.xlu0 0
        %3045 = vperm.xlu0 %3044, %v1385
        %v3046 = vpop.permute.xlu0 %3045
        %3049 = vset.pattern.permute.xlu0 0
        %3050 = vperm.xlu0 %3049, %v1386
        %v3051 = vpop.permute.xlu0 %3050
        %3054 = vset.pattern.permute.xlu0 0
        %3055 = vperm.xlu0 %3054, %v1387
        %v3056 = vpop.permute.xlu0 %3055
        %3059 = vset.pattern.permute.xlu0 0
        %3060 = vperm.xlu0 %3059, %v1388
        %v3061 = vpop.permute.xlu0 %3060
        %3064 = vset.pattern.permute.xlu0 0
        %3065 = vperm.xlu0 %3064, %v1389
        %v3066 = vpop.permute.xlu0 %3065
        %3069 = vset.pattern.permute.xlu0 0
        %3070 = vperm.xlu0 %3069, %v1390
        %v3071 = vpop.permute.xlu0 %3070
        %3074 = vset.pattern.permute.xlu0 0
        %3075 = vperm.xlu0 %3074, %v1391
        %v3076 = vpop.permute.xlu0 %3075
        %3079 = vset.pattern.permute.xlu0 0
        %3080 = vperm.xlu0 %3079, %v1392
        %v3081 = vpop.permute.xlu0 %3080
        %3084 = vset.pattern.permute.xlu0 0
        %3085 = vperm.xlu0 %3084, %v1393
        %v3086 = vpop.permute.xlu0 %3085
        %3089 = vset.pattern.permute.xlu0 0
        %3090 = vperm.xlu0 %3089, %v1394
        %v3091 = vpop.permute.xlu0 %3090
        %3094 = vset.pattern.permute.xlu0 0
        %3095 = vperm.xlu0 %3094, %v1395
        %v3096 = vpop.permute.xlu0 %3095
        %3099 = vset.pattern.permute.xlu0 0
        %3100 = vperm.xlu0 %3099, %v1396
        %v3101 = vpop.permute.xlu0 %3100
        %3104 = vset.pattern.permute.xlu0 0
        %3105 = vperm.xlu0 %3104, %v1397
        %v3106 = vpop.permute.xlu0 %3105
        %3109 = vset.pattern.permute.xlu0 0
        %3110 = vperm.xlu0 %3109, %v1398
        %v3111 = vpop.permute.xlu0 %3110
        %3114 = vset.pattern.permute.xlu0 0
        %3115 = vperm.xlu0 %3114, %v1399
        %v3116 = vpop.permute.xlu0 %3115
        %3119 = vset.pattern.permute.xlu0 0
        %3120 = vperm.xlu0 %3119, %v1400
        %v3121 = vpop.permute.xlu0 %3120
        %3124 = vset.pattern.permute.xlu0 0
        %3125 = vperm.xlu0 %3124, %v1401
        %v3126 = vpop.permute.xlu0 %3125
        %3129 = vset.pattern.permute.xlu0 0
        %3130 = vperm.xlu0 %3129, %v1402
        %v3131 = vpop.permute.xlu0 %3130
        %3134 = vset.pattern.permute.xlu0 0
        %3135 = vperm.xlu0 %3134, %v1403
        %v3136 = vpop.permute.xlu0 %3135
        %3139 = vset.pattern.permute.xlu0 0
        %3140 = vperm.xlu0 %3139, %v1404
        %v3141 = vpop.permute.xlu0 %3140
        %3144 = vset.pattern.permute.xlu0 0
        %3145 = vperm.xlu0 %3144, %v1405
        %v3146 = vpop.permute.xlu0 %3145
        %3149 = vset.pattern.permute.xlu0 0
        %3150 = vperm.xlu0 %3149, %v1406
        %v3151 = vpop.permute.xlu0 %3150
        %3154 = vset.pattern.permute.xlu0 0
        %3155 = vperm.xlu0 %3154, %v1407
        %v3156 = vpop.permute.xlu0 %3155
        %3159 = vset.pattern.permute.xlu0 0
        %3160 = vperm.xlu0 %3159, %v1408
        %v3161 = vpop.permute.xlu0 %3160
        %3164 = vset.pattern.permute.xlu0 0
        %3165 = vperm.xlu0 %3164, %v1409
        %v3166 = vpop.permute.xlu0 %3165
        %3169 = vset.pattern.permute.xlu0 0
        %3170 = vperm.xlu0 %3169, %v1410
        %v3171 = vpop.permute.xlu0 %3170
        %3174 = vset.pattern.permute.xlu0 0
        %3175 = vperm.xlu0 %3174, %v1411
        %v3176 = vpop.permute.xlu0 %3175
        %3179 = vset.pattern.permute.xlu0 0
        %3180 = vperm.xlu0 %3179, %v1412
        %v3181 = vpop.permute.xlu0 %3180
        %3184 = vset.pattern.permute.xlu0 0
        %3185 = vperm.xlu0 %3184, %v1413
        %v3186 = vpop.permute.xlu0 %3185
        %3189 = vset.pattern.permute.xlu0 0
        %3190 = vperm.xlu0 %3189, %v1414
        %v3191 = vpop.permute.xlu0 %3190
        %3194 = vset.pattern.permute.xlu0 0
        %3195 = vperm.xlu0 %3194, %v1415
        %v3196 = vpop.permute.xlu0 %3195
        %3199 = vset.pattern.permute.xlu0 0
        %3200 = vperm.xlu0 %3199, %v1416
        %v3201 = vpop.permute.xlu0 %3200
        %3204 = vset.pattern.permute.xlu0 0
        %3205 = vperm.xlu0 %3204, %v1417
        %v3206 = vpop.permute.xlu0 %3205
        %3209 = vset.pattern.permute.xlu0 0
        %3210 = vperm.xlu0 %3209, %v1418
        %v3211 = vpop.permute.xlu0 %3210
        %3214 = vset.pattern.permute.xlu0 0
        %3215 = vperm.xlu0 %3214, %v1419
        %v3216 = vpop.permute.xlu0 %3215
        %3219 = vset.pattern.permute.xlu0 0
        %3220 = vperm.xlu0 %3219, %v1420
        %v3221 = vpop.permute.xlu0 %3220
        %3224 = vset.pattern.permute.xlu0 0
        %3225 = vperm.xlu0 %3224, %v1421
        %v3226 = vpop.permute.xlu0 %3225
        %3229 = vset.pattern.permute.xlu0 0
        %3230 = vperm.xlu0 %3229, %v1422
        %v3231 = vpop.permute.xlu0 %3230
        %3234 = vset.pattern.permute.xlu0 0
        %3235 = vperm.xlu0 %3234, %v1423
        %v3236 = vpop.permute.xlu0 %3235
        %3239 = vset.pattern.permute.xlu0 0
        %3240 = vperm.xlu0 %3239, %v1424
        %v3241 = vpop.permute.xlu0 %3240
        %3244 = vset.pattern.permute.xlu0 0
        %3245 = vperm.xlu0 %3244, %v1425
        %v3246 = vpop.permute.xlu0 %3245
        %3249 = vset.pattern.permute.xlu0 0
        %3250 = vperm.xlu0 %3249, %v1426
        %v3251 = vpop.permute.xlu0 %3250
        %3254 = vset.pattern.permute.xlu0 0
        %3255 = vperm.xlu0 %3254, %v1427
        %v3256 = vpop.permute.xlu0 %3255
        %3259 = vset.pattern.permute.xlu0 0
        %3260 = vperm.xlu0 %3259, %v1428
        %v3261 = vpop.permute.xlu0 %3260
        %3264 = vset.pattern.permute.xlu0 0
        %3265 = vperm.xlu0 %3264, %v1429
        %v3266 = vpop.permute.xlu0 %3265
        %3269 = vset.pattern.permute.xlu0 0
        %3270 = vperm.xlu0 %3269, %v1430
        %v3271 = vpop.permute.xlu0 %3270
        %3274 = vset.pattern.permute.xlu0 0
        %3275 = vperm.xlu0 %3274, %v1431
        %v3276 = vpop.permute.xlu0 %3275
        %3279 = vset.pattern.permute.xlu0 0
        %3280 = vperm.xlu0 %3279, %v1432
        %v3281 = vpop.permute.xlu0 %3280
        %3284 = vset.pattern.permute.xlu0 0
        %3285 = vperm.xlu0 %3284, %v1433
        %v3286 = vpop.permute.xlu0 %3285
        %3289 = vset.pattern.permute.xlu0 0
        %3290 = vperm.xlu0 %3289, %v1434
        %v3291 = vpop.permute.xlu0 %3290
        %3294 = vset.pattern.permute.xlu0 0
        %3295 = vperm.xlu0 %3294, %v1435
        %v3296 = vpop.permute.xlu0 %3295
        %3299 = vset.pattern.permute.xlu0 0
        %3300 = vperm.xlu0 %3299, %v1436
        %v3301 = vpop.permute.xlu0 %3300
        %3304 = vset.pattern.permute.xlu0 0
        %3305 = vperm.xlu0 %3304, %v1437
        %v3306 = vpop.permute.xlu0 %3305
        %3309 = vset.pattern.permute.xlu0 0
        %3310 = vperm.xlu0 %3309, %v1438
        %v3311 = vpop.permute.xlu0 %3310
        %3314 = vset.pattern.permute.xlu0 0
        %3315 = vperm.xlu0 %3314, %v1439
        %v3316 = vpop.permute.xlu0 %3315
        %3319 = vset.pattern.permute.xlu0 0
        %3320 = vperm.xlu0 %3319, %v1440
        %v3321 = vpop.permute.xlu0 %3320
        %3324 = vset.pattern.permute.xlu0 0
        %3325 = vperm.xlu0 %3324, %v1441
        %v3326 = vpop.permute.xlu0 %3325
        %3329 = vset.pattern.permute.xlu0 0
        %3330 = vperm.xlu0 %3329, %v1442
        %v3331 = vpop.permute.xlu0 %3330
        %3334 = vset.pattern.permute.xlu0 0
        %3335 = vperm.xlu0 %3334, %v1443
        %v3336 = vpop.permute.xlu0 %3335
        %3339 = vset.pattern.permute.xlu0 0
        %3340 = vperm.xlu0 %3339, %v1444
        %v3341 = vpop.permute.xlu0 %3340
        %3344 = vset.pattern.permute.xlu0 0
        %3345 = vperm.xlu0 %3344, %v1445
        %v3346 = vpop.permute.xlu0 %3345
        %3349 = vset.pattern.permute.xlu0 0
        %3350 = vperm.xlu0 %3349, %v1446
        %v3351 = vpop.permute.xlu0 %3350
        %3354 = vset.pattern.permute.xlu0 0
        %3355 = vperm.xlu0 %3354, %v1447
        %v3356 = vpop.permute.xlu0 %3355
        %3359 = vset.pattern.permute.xlu0 0
        %3360 = vperm.xlu0 %3359, %v1448
        %v3361 = vpop.permute.xlu0 %3360
        %3364 = vset.pattern.permute.xlu0 0
        %3365 = vperm.xlu0 %3364, %v1449
        %v3366 = vpop.permute.xlu0 %3365
        %3369 = vset.pattern.permute.xlu0 0
        %3370 = vperm.xlu0 %3369, %v1450
        %v3371 = vpop.permute.xlu0 %3370
        %v3373 = vmul.f32 %v299, %v1456
        %v3374 = vmul.f32 %v300, %v1456
        %v3375 = vmul.f32 %v301, %v1461
        %v3376 = vmul.f32 %v302, %v1461
        %v3377 = vmul.f32 %v303, %v1466
        %v3378 = vmul.f32 %v304, %v1466
        %v3379 = vmul.f32 %v305, %v1471
        %v3380 = vmul.f32 %v306, %v1471
        %v3381 = vmul.f32 %v307, %v1476
        %v3382 = vmul.f32 %v308, %v1476
        %v3383 = vmul.f32 %v309, %v1481
        %v3384 = vmul.f32 %v310, %v1481
        %v3385 = vmul.f32 %v311, %v1486
        %v3386 = vmul.f32 %v312, %v1486
        %v3387 = vmul.f32 %v313, %v1491
        %v3388 = vmul.f32 %v314, %v1491
        %v3389 = vmul.f32 %v315, %v1496
        %v3390 = vmul.f32 %v316, %v1496
        %v3391 = vmul.f32 %v317, %v1501
        %v3392 = vmul.f32 %v318, %v1501
        %v3393 = vmul.f32 %v319, %v1506
        %v3394 = vmul.f32 %v320, %v1506
        %v3395 = vmul.f32 %v321, %v1511
        %v3396 = vmul.f32 %v322, %v1511
        %v3397 = vmul.f32 %v323, %v1516
        %v3398 = vmul.f32 %v324, %v1516
        %v3399 = vmul.f32 %v325, %v1521
        %v3400 = vmul.f32 %v326, %v1521
        %v3401 = vmul.f32 %v327, %v1526
        %v3402 = vmul.f32 %v328, %v1526
        %v3403 = vmul.f32 %v329, %v1531
        %v3404 = vmul.f32 %v330, %v1531
        %v3405 = vmul.f32 %v331, %v1536
        %v3406 = vmul.f32 %v332, %v1536
        %v3407 = vmul.f32 %v333, %v1541
        %v3408 = vmul.f32 %v334, %v1541
        %v3409 = vmul.f32 %v335, %v1546
        %v3410 = vmul.f32 %v336, %v1546
        %v3411 = vmul.f32 %v337, %v1551
        %v3412 = vmul.f32 %v338, %v1551
        %v3413 = vmul.f32 %v339, %v1556
        %v3414 = vmul.f32 %v340, %v1556
        %v3415 = vmul.f32 %v341, %v1561
        %v3416 = vmul.f32 %v342, %v1561
        %v3417 = vmul.f32 %v343, %v1566
        %v3418 = vmul.f32 %v344, %v1566
        %v3419 = vmul.f32 %v345, %v1571
        %v3420 = vmul.f32 %v346, %v1571
        %v3421 = vmul.f32 %v347, %v1576
        %v3422 = vmul.f32 %v348, %v1576
        %v3423 = vmul.f32 %v349, %v1581
        %v3424 = vmul.f32 %v350, %v1581
        %v3425 = vmul.f32 %v351, %v1586
        %v3426 = vmul.f32 %v352, %v1586
        %v3427 = vmul.f32 %v353, %v1591
        %v3428 = vmul.f32 %v354, %v1591
        %v3429 = vmul.f32 %v355, %v1596
        %v3430 = vmul.f32 %v356, %v1596
        %v3431 = vmul.f32 %v357, %v1601
        %v3432 = vmul.f32 %v358, %v1601
        %v3433 = vmul.f32 %v359, %v1606
        %v3434 = vmul.f32 %v360, %v1606
        %v3435 = vmul.f32 %v361, %v1611
        %v3436 = vmul.f32 %v362, %v1611
        %v3437 = vmul.f32 %v363, %v1616
        %v3438 = vmul.f32 %v364, %v1616
        %v3439 = vmul.f32 %v365, %v1621
        %v3440 = vmul.f32 %v366, %v1621
        %v3441 = vmul.f32 %v367, %v1626
        %v3442 = vmul.f32 %v368, %v1626
        %v3443 = vmul.f32 %v369, %v1631
        %v3444 = vmul.f32 %v370, %v1631
        %v3445 = vmul.f32 %v371, %v1636
        %v3446 = vmul.f32 %v372, %v1636
        %v3447 = vmul.f32 %v373, %v1641
        %v3448 = vmul.f32 %v374, %v1641
        %v3449 = vmul.f32 %v375, %v1646
        %v3450 = vmul.f32 %v376, %v1646
        %v3451 = vmul.f32 %v377, %v1651
        %v3452 = vmul.f32 %v378, %v1651
        %v3453 = vmul.f32 %v379, %v1656
        %v3454 = vmul.f32 %v380, %v1656
        %v3455 = vmul.f32 %v381, %v1661
        %v3456 = vmul.f32 %v382, %v1661
        %v3457 = vmul.f32 %v383, %v1666
        %v3458 = vmul.f32 %v384, %v1666
        %v3459 = vmul.f32 %v385, %v1671
        %v3460 = vmul.f32 %v386, %v1671
        %v3461 = vmul.f32 %v387, %v1676
        %v3462 = vmul.f32 %v388, %v1676
        %v3463 = vmul.f32 %v389, %v1681
        %v3464 = vmul.f32 %v390, %v1681
        %v3465 = vmul.f32 %v391, %v1686
        %v3466 = vmul.f32 %v392, %v1686
        %v3467 = vmul.f32 %v393, %v1691
        %v3468 = vmul.f32 %v394, %v1691
        %v3469 = vmul.f32 %v395, %v1696
        %v3470 = vmul.f32 %v396, %v1696
        %v3471 = vmul.f32 %v397, %v1701
        %v3472 = vmul.f32 %v398, %v1701
        %v3473 = vmul.f32 %v399, %v1706
        %v3474 = vmul.f32 %v400, %v1706
        %v3475 = vmul.f32 %v401, %v1711
        %v3476 = vmul.f32 %v402, %v1711
        %v3477 = vmul.f32 %v403, %v1716
        %v3478 = vmul.f32 %v404, %v1716
        %v3479 = vmul.f32 %v405, %v1721
        %v3480 = vmul.f32 %v406, %v1721
        %v3481 = vmul.f32 %v407, %v1726
        %v3482 = vmul.f32 %v408, %v1726
        %v3483 = vmul.f32 %v409, %v1731
        %v3484 = vmul.f32 %v410, %v1731
        %v3485 = vmul.f32 %v411, %v1736
        %v3486 = vmul.f32 %v412, %v1736
        %v3487 = vmul.f32 %v413, %v1741
        %v3488 = vmul.f32 %v414, %v1741
        %v3489 = vmul.f32 %v415, %v1746
        %v3490 = vmul.f32 %v416, %v1746
        %v3491 = vmul.f32 %v417, %v1751
        %v3492 = vmul.f32 %v418, %v1751
        %v3493 = vmul.f32 %v419, %v1756
        %v3494 = vmul.f32 %v420, %v1756
        %v3495 = vmul.f32 %v421, %v1761
        %v3496 = vmul.f32 %v422, %v1761
        %v3497 = vmul.f32 %v423, %v1766
        %v3498 = vmul.f32 %v424, %v1766
        %v3499 = vmul.f32 %v425, %v1771
        %v3500 = vmul.f32 %v426, %v1771
        %v3501 = vmul.f32 %v427, %v1776
        %v3502 = vmul.f32 %v428, %v1776
        %v3503 = vmul.f32 %v429, %v1781
        %v3504 = vmul.f32 %v430, %v1781
        %v3505 = vmul.f32 %v431, %v1786
        %v3506 = vmul.f32 %v432, %v1786
        %v3507 = vmul.f32 %v433, %v1791
        %v3508 = vmul.f32 %v434, %v1791
        %v3509 = vmul.f32 %v435, %v1796
        %v3510 = vmul.f32 %v436, %v1796
        %v3511 = vmul.f32 %v437, %v1801
        %v3512 = vmul.f32 %v438, %v1801
        %v3513 = vmul.f32 %v439, %v1806
        %v3514 = vmul.f32 %v440, %v1806
        %v3515 = vmul.f32 %v441, %v1811
        %v3516 = vmul.f32 %v442, %v1811
        %v3517 = vmul.f32 %v443, %v1816
        %v3518 = vmul.f32 %v444, %v1816
        %v3519 = vmul.f32 %v445, %v1821
        %v3520 = vmul.f32 %v446, %v1821
        %v3521 = vmul.f32 %v447, %v1826
        %v3522 = vmul.f32 %v448, %v1826
        %v3523 = vmul.f32 %v449, %v1831
        %v3524 = vmul.f32 %v450, %v1831
        %v3525 = vmul.f32 %v451, %v1836
        %v3526 = vmul.f32 %v452, %v1836
        %v3527 = vmul.f32 %v453, %v1841
        %v3528 = vmul.f32 %v454, %v1841
        %v3529 = vmul.f32 %v455, %v1846
        %v3530 = vmul.f32 %v456, %v1846
        %v3531 = vmul.f32 %v457, %v1851
        %v3532 = vmul.f32 %v458, %v1851
        %v3533 = vmul.f32 %v459, %v1856
        %v3534 = vmul.f32 %v460, %v1856
        %v3535 = vmul.f32 %v461, %v1861
        %v3536 = vmul.f32 %v462, %v1861
        %v3537 = vmul.f32 %v463, %v1866
        %v3538 = vmul.f32 %v464, %v1866
        %v3539 = vmul.f32 %v465, %v1871
        %v3540 = vmul.f32 %v466, %v1871
        %v3541 = vmul.f32 %v467, %v1876
        %v3542 = vmul.f32 %v468, %v1876
        %v3543 = vmul.f32 %v469, %v1881
        %v3544 = vmul.f32 %v470, %v1881
        %v3545 = vmul.f32 %v471, %v1886
        %v3546 = vmul.f32 %v472, %v1886
        %v3547 = vmul.f32 %v473, %v1891
        %v3548 = vmul.f32 %v474, %v1891
        %v3549 = vmul.f32 %v475, %v1896
        %v3550 = vmul.f32 %v476, %v1896
        %v3551 = vmul.f32 %v477, %v1901
        %v3552 = vmul.f32 %v478, %v1901
        %v3553 = vmul.f32 %v479, %v1906
        %v3554 = vmul.f32 %v480, %v1906
        %v3555 = vmul.f32 %v481, %v1911
        %v3556 = vmul.f32 %v482, %v1911
        %v3557 = vmul.f32 %v483, %v1916
        %v3558 = vmul.f32 %v484, %v1916
        %v3559 = vmul.f32 %v485, %v1921
        %v3560 = vmul.f32 %v486, %v1921
        %v3561 = vmul.f32 %v487, %v1926
        %v3562 = vmul.f32 %v488, %v1926
        %v3563 = vmul.f32 %v489, %v1931
        %v3564 = vmul.f32 %v490, %v1931
        %v3565 = vmul.f32 %v491, %v1936
        %v3566 = vmul.f32 %v492, %v1936
        %v3567 = vmul.f32 %v493, %v1941
        %v3568 = vmul.f32 %v494, %v1941
        %v3569 = vmul.f32 %v495, %v1946
        %v3570 = vmul.f32 %v496, %v1946
        %v3571 = vmul.f32 %v497, %v1951
        %v3572 = vmul.f32 %v498, %v1951
        %v3573 = vmul.f32 %v499, %v1956
        %v3574 = vmul.f32 %v500, %v1956
        %v3575 = vmul.f32 %v501, %v1961
        %v3576 = vmul.f32 %v502, %v1961
        %v3577 = vmul.f32 %v503, %v1966
        %v3578 = vmul.f32 %v504, %v1966
        %v3579 = vmul.f32 %v505, %v1971
        %v3580 = vmul.f32 %v506, %v1971
        %v3581 = vmul.f32 %v507, %v1976
        %v3582 = vmul.f32 %v508, %v1976
        %v3583 = vmul.f32 %v509, %v1981
        %v3584 = vmul.f32 %v510, %v1981
        %v3585 = vmul.f32 %v511, %v1986
        %v3586 = vmul.f32 %v512, %v1986
        %v3587 = vmul.f32 %v513, %v1991
        %v3588 = vmul.f32 %v514, %v1991
        %v3589 = vmul.f32 %v515, %v1996
        %v3590 = vmul.f32 %v516, %v1996
        %v3591 = vmul.f32 %v517, %v2001
        %v3592 = vmul.f32 %v518, %v2001
        %v3593 = vmul.f32 %v519, %v2006
        %v3594 = vmul.f32 %v520, %v2006
        %v3595 = vmul.f32 %v521, %v2011
        %v3596 = vmul.f32 %v522, %v2011
        %v3597 = vmul.f32 %v523, %v2016
        %v3598 = vmul.f32 %v524, %v2016
        %v3599 = vmul.f32 %v525, %v2021
        %v3600 = vmul.f32 %v526, %v2021
        %v3601 = vmul.f32 %v527, %v2026
        %v3602 = vmul.f32 %v528, %v2026
        %v3603 = vmul.f32 %v529, %v2031
        %v3604 = vmul.f32 %v530, %v2031
        %v3605 = vmul.f32 %v531, %v2036
        %v3606 = vmul.f32 %v532, %v2036
        %v3607 = vmul.f32 %v533, %v2041
        %v3608 = vmul.f32 %v534, %v2041
        %v3609 = vmul.f32 %v535, %v2046
        %v3610 = vmul.f32 %v536, %v2046
        %v3611 = vmul.f32 %v537, %v2051
        %v3612 = vmul.f32 %v538, %v2051
        %v3613 = vmul.f32 %v539, %v2056
        %v3614 = vmul.f32 %v540, %v2056
        %v3615 = vmul.f32 %v541, %v2061
        %v3616 = vmul.f32 %v542, %v2061
        %v3617 = vmul.f32 %v543, %v2066
        %v3618 = vmul.f32 %v544, %v2066
        %v3619 = vmul.f32 %v545, %v2071
        %v3620 = vmul.f32 %v546, %v2071
        %v3621 = vmul.f32 %v547, %v2076
        %v3622 = vmul.f32 %v548, %v2076
        %v3623 = vmul.f32 %v549, %v2081
        %v3624 = vmul.f32 %v550, %v2081
        %v3625 = vmul.f32 %v551, %v2086
        %v3626 = vmul.f32 %v552, %v2086
        %v3627 = vmul.f32 %v553, %v2091
        %v3628 = vmul.f32 %v554, %v2091
        %v3629 = vmul.f32 %v555, %v2096
        %v3630 = vmul.f32 %v556, %v2096
        %v3631 = vmul.f32 %v557, %v2101
        %v3632 = vmul.f32 %v558, %v2101
        %v3633 = vmul.f32 %v559, %v2106
        %v3634 = vmul.f32 %v560, %v2106
        %v3635 = vmul.f32 %v561, %v2111
        %v3636 = vmul.f32 %v562, %v2111
        %v3637 = vmul.f32 %v563, %v2116
        %v3638 = vmul.f32 %v564, %v2116
        %v3639 = vmul.f32 %v565, %v2121
        %v3640 = vmul.f32 %v566, %v2121
        %v3641 = vmul.f32 %v567, %v2126
        %v3642 = vmul.f32 %v568, %v2126
        %v3643 = vmul.f32 %v569, %v2131
        %v3644 = vmul.f32 %v570, %v2131
        %v3645 = vmul.f32 %v571, %v2136
        %v3646 = vmul.f32 %v572, %v2136
        %v3647 = vmul.f32 %v573, %v2141
        %v3648 = vmul.f32 %v574, %v2141
        %v3649 = vmul.f32 %v575, %v2146
        %v3650 = vmul.f32 %v576, %v2146
        %v3651 = vmul.f32 %v577, %v2151
        %v3652 = vmul.f32 %v578, %v2151
        %v3653 = vmul.f32 %v579, %v2156
        %v3654 = vmul.f32 %v580, %v2156
        %v3655 = vmul.f32 %v581, %v2161
        %v3656 = vmul.f32 %v582, %v2161
        %v3657 = vmul.f32 %v583, %v2166
        %v3658 = vmul.f32 %v584, %v2166
        %v3659 = vmul.f32 %v585, %v2171
        %v3660 = vmul.f32 %v586, %v2171
        %v3661 = vmul.f32 %v587, %v2176
        %v3662 = vmul.f32 %v588, %v2176
        %v3663 = vmul.f32 %v589, %v2181
        %v3664 = vmul.f32 %v590, %v2181
        %v3665 = vmul.f32 %v591, %v2186
        %v3666 = vmul.f32 %v592, %v2186
        %v3667 = vmul.f32 %v593, %v2191
        %v3668 = vmul.f32 %v594, %v2191
        %v3669 = vmul.f32 %v595, %v2196
        %v3670 = vmul.f32 %v596, %v2196
        %v3671 = vmul.f32 %v597, %v2201
        %v3672 = vmul.f32 %v598, %v2201
        %v3673 = vmul.f32 %v599, %v2206
        %v3674 = vmul.f32 %v600, %v2206
        %v3675 = vmul.f32 %v601, %v2211
        %v3676 = vmul.f32 %v602, %v2211
        %v3677 = vmul.f32 %v603, %v2216
        %v3678 = vmul.f32 %v604, %v2216
        %v3679 = vmul.f32 %v605, %v2221
        %v3680 = vmul.f32 %v606, %v2221
        %v3681 = vmul.f32 %v607, %v2226
        %v3682 = vmul.f32 %v608, %v2226
        %v3683 = vmul.f32 %v609, %v2231
        %v3684 = vmul.f32 %v610, %v2231
        %v3685 = vmul.f32 %v611, %v2236
        %v3686 = vmul.f32 %v612, %v2236
        %v3687 = vmul.f32 %v613, %v2241
        %v3688 = vmul.f32 %v614, %v2241
        %v3689 = vmul.f32 %v615, %v2246
        %v3690 = vmul.f32 %v616, %v2246
        %v3691 = vmul.f32 %v617, %v2251
        %v3692 = vmul.f32 %v618, %v2251
        %v3693 = vmul.f32 %v619, %v2256
        %v3694 = vmul.f32 %v620, %v2256
        %v3695 = vmul.f32 %v621, %v2261
        %v3696 = vmul.f32 %v622, %v2261
        %v3697 = vmul.f32 %v623, %v2266
        %v3698 = vmul.f32 %v624, %v2266
        %v3699 = vmul.f32 %v625, %v2271
        %v3700 = vmul.f32 %v626, %v2271
        %v3701 = vmul.f32 %v627, %v2276
        %v3702 = vmul.f32 %v628, %v2276
        %v3703 = vmul.f32 %v629, %v2281
        %v3704 = vmul.f32 %v630, %v2281
        %v3705 = vmul.f32 %v631, %v2286
        %v3706 = vmul.f32 %v632, %v2286
        %v3707 = vmul.f32 %v633, %v2291
        %v3708 = vmul.f32 %v634, %v2291
        %v3709 = vmul.f32 %v635, %v2296
        %v3710 = vmul.f32 %v636, %v2296
        %v3711 = vmul.f32 %v637, %v2301
        %v3712 = vmul.f32 %v638, %v2301
        %v3713 = vmul.f32 %v639, %v2306
        %v3714 = vmul.f32 %v640, %v2306
        %v3715 = vmul.f32 %v641, %v2311
        %v3716 = vmul.f32 %v642, %v2311
        %v3717 = vmul.f32 %v643, %v2316
        %v3718 = vmul.f32 %v644, %v2316
        %v3719 = vmul.f32 %v645, %v2321
        %v3720 = vmul.f32 %v646, %v2321
        %v3721 = vmul.f32 %v647, %v2326
        %v3722 = vmul.f32 %v648, %v2326
        %v3723 = vmul.f32 %v649, %v2331
        %v3724 = vmul.f32 %v650, %v2331
        %v3725 = vmul.f32 %v651, %v2336
        %v3726 = vmul.f32 %v652, %v2336
        %v3727 = vmul.f32 %v653, %v2341
        %v3728 = vmul.f32 %v654, %v2341
        %v3729 = vmul.f32 %v655, %v2346
        %v3730 = vmul.f32 %v656, %v2346
        %v3731 = vmul.f32 %v657, %v2351
        %v3732 = vmul.f32 %v658, %v2351
        %v3733 = vmul.f32 %v659, %v2356
        %v3734 = vmul.f32 %v660, %v2356
        %v3735 = vmul.f32 %v661, %v2361
        %v3736 = vmul.f32 %v662, %v2361
        %v3737 = vmul.f32 %v663, %v2366
        %v3738 = vmul.f32 %v664, %v2366
        %v3739 = vmul.f32 %v665, %v2371
        %v3740 = vmul.f32 %v666, %v2371
        %v3741 = vmul.f32 %v667, %v2376
        %v3742 = vmul.f32 %v668, %v2376
        %v3743 = vmul.f32 %v669, %v2381
        %v3744 = vmul.f32 %v670, %v2381
        %v3745 = vmul.f32 %v671, %v2386
        %v3746 = vmul.f32 %v672, %v2386
        %v3747 = vmul.f32 %v673, %v2391
        %v3748 = vmul.f32 %v674, %v2391
        %v3749 = vmul.f32 %v675, %v2396
        %v3750 = vmul.f32 %v676, %v2396
        %v3751 = vmul.f32 %v677, %v2401
        %v3752 = vmul.f32 %v678, %v2401
        %v3753 = vmul.f32 %v679, %v2406
        %v3754 = vmul.f32 %v680, %v2406
        %v3755 = vmul.f32 %v681, %v2411
        %v3756 = vmul.f32 %v682, %v2411
        %v3757 = vmul.f32 %v683, %v2416
        %v3758 = vmul.f32 %v684, %v2416
        %v3759 = vmul.f32 %v685, %v2421
        %v3760 = vmul.f32 %v686, %v2421
        %v3761 = vmul.f32 %v687, %v2426
        %v3762 = vmul.f32 %v688, %v2426
        %v3763 = vmul.f32 %v689, %v2431
        %v3764 = vmul.f32 %v690, %v2431
        %v3765 = vmul.f32 %v691, %v2436
        %v3766 = vmul.f32 %v692, %v2436
        %v3767 = vmul.f32 %v693, %v2441
        %v3768 = vmul.f32 %v694, %v2441
        %v3769 = vmul.f32 %v695, %v2446
        %v3770 = vmul.f32 %v696, %v2446
        %v3771 = vmul.f32 %v697, %v2451
        %v3772 = vmul.f32 %v698, %v2451
        %v3773 = vmul.f32 %v699, %v2456
        %v3774 = vmul.f32 %v700, %v2456
        %v3775 = vmul.f32 %v701, %v2461
        %v3776 = vmul.f32 %v702, %v2461
        %v3777 = vmul.f32 %v703, %v2466
        %v3778 = vmul.f32 %v704, %v2466
        %v3779 = vmul.f32 %v705, %v2471
        %v3780 = vmul.f32 %v706, %v2471
        %v3781 = vmul.f32 %v707, %v2476
        %v3782 = vmul.f32 %v708, %v2476
        %v3783 = vmul.f32 %v709, %v2481
        %v3784 = vmul.f32 %v710, %v2481
        %v3785 = vmul.f32 %v711, %v2486
        %v3786 = vmul.f32 %v712, %v2486
        %v3787 = vmul.f32 %v713, %v2491
        %v3788 = vmul.f32 %v714, %v2491
        %v3789 = vmul.f32 %v715, %v2496
        %v3790 = vmul.f32 %v716, %v2496
        %v3791 = vmul.f32 %v717, %v2501
        %v3792 = vmul.f32 %v718, %v2501
        %v3793 = vmul.f32 %v719, %v2506
        %v3794 = vmul.f32 %v720, %v2506
        %v3795 = vmul.f32 %v721, %v2511
        %v3796 = vmul.f32 %v722, %v2511
        %v3797 = vmul.f32 %v723, %v2516
        %v3798 = vmul.f32 %v724, %v2516
        %v3799 = vmul.f32 %v725, %v2521
        %v3800 = vmul.f32 %v726, %v2521
        %v3801 = vmul.f32 %v727, %v2526
        %v3802 = vmul.f32 %v728, %v2526
        %v3803 = vmul.f32 %v729, %v2531
        %v3804 = vmul.f32 %v730, %v2531
        %v3805 = vmul.f32 %v731, %v2536
        %v3806 = vmul.f32 %v732, %v2536
        %v3807 = vmul.f32 %v733, %v2541
        %v3808 = vmul.f32 %v734, %v2541
        %v3809 = vmul.f32 %v735, %v2546
        %v3810 = vmul.f32 %v736, %v2546
        %v3811 = vmul.f32 %v737, %v2551
        %v3812 = vmul.f32 %v738, %v2551
        %v3813 = vmul.f32 %v739, %v2556
        %v3814 = vmul.f32 %v740, %v2556
        %v3815 = vmul.f32 %v741, %v2561
        %v3816 = vmul.f32 %v742, %v2561
        %v3817 = vmul.f32 %v743, %v2566
        %v3818 = vmul.f32 %v744, %v2566
        %v3819 = vmul.f32 %v745, %v2571
        %v3820 = vmul.f32 %v746, %v2571
        %v3821 = vmul.f32 %v747, %v2576
        %v3822 = vmul.f32 %v748, %v2576
        %v3823 = vmul.f32 %v749, %v2581
        %v3824 = vmul.f32 %v750, %v2581
        %v3825 = vmul.f32 %v751, %v2586
        %v3826 = vmul.f32 %v752, %v2586
        %v3827 = vmul.f32 %v753, %v2591
        %v3828 = vmul.f32 %v754, %v2591
        %v3829 = vmul.f32 %v755, %v2596
        %v3830 = vmul.f32 %v756, %v2596
        %v3831 = vmul.f32 %v757, %v2601
        %v3832 = vmul.f32 %v758, %v2601
        %v3833 = vmul.f32 %v759, %v2606
        %v3834 = vmul.f32 %v760, %v2606
        %v3835 = vmul.f32 %v761, %v2611
        %v3836 = vmul.f32 %v762, %v2611
        %v3837 = vmul.f32 %v763, %v2616
        %v3838 = vmul.f32 %v764, %v2616
        %v3839 = vmul.f32 %v765, %v2621
        %v3840 = vmul.f32 %v766, %v2621
        %v3841 = vmul.f32 %v767, %v2626
        %v3842 = vmul.f32 %v768, %v2626
        %v3843 = vmul.f32 %v769, %v2631
        %v3844 = vmul.f32 %v770, %v2631
        %v3845 = vmul.f32 %v771, %v2636
        %v3846 = vmul.f32 %v772, %v2636
        %v3847 = vmul.f32 %v773, %v2641
        %v3848 = vmul.f32 %v774, %v2641
        %v3849 = vmul.f32 %v775, %v2646
        %v3850 = vmul.f32 %v776, %v2646
        %v3851 = vmul.f32 %v777, %v2651
        %v3852 = vmul.f32 %v778, %v2651
        %v3853 = vmul.f32 %v779, %v2656
        %v3854 = vmul.f32 %v780, %v2656
        %v3855 = vmul.f32 %v781, %v2661
        %v3856 = vmul.f32 %v782, %v2661
        %v3857 = vmul.f32 %v783, %v2666
        %v3858 = vmul.f32 %v784, %v2666
        %v3859 = vmul.f32 %v785, %v2671
        %v3860 = vmul.f32 %v786, %v2671
        %v3861 = vmul.f32 %v787, %v2676
        %v3862 = vmul.f32 %v788, %v2676
        %v3863 = vmul.f32 %v789, %v2681
        %v3864 = vmul.f32 %v790, %v2681
        %v3865 = vmul.f32 %v791, %v2686
        %v3866 = vmul.f32 %v792, %v2686
        %v3867 = vmul.f32 %v793, %v2691
        %v3868 = vmul.f32 %v794, %v2691
        %v3869 = vmul.f32 %v795, %v2696
        %v3870 = vmul.f32 %v796, %v2696
        %v3871 = vmul.f32 %v797, %v2701
        %v3872 = vmul.f32 %v798, %v2701
        %v3873 = vmul.f32 %v799, %v2706
        %v3874 = vmul.f32 %v800, %v2706
        %v3875 = vmul.f32 %v801, %v2711
        %v3876 = vmul.f32 %v802, %v2711
        %v3877 = vmul.f32 %v803, %v2716
        %v3878 = vmul.f32 %v804, %v2716
        %v3879 = vmul.f32 %v805, %v2721
        %v3880 = vmul.f32 %v806, %v2721
        %v3881 = vmul.f32 %v807, %v2726
        %v3882 = vmul.f32 %v808, %v2726
        %v3883 = vmul.f32 %v809, %v2731
        %v3884 = vmul.f32 %v810, %v2731
        %v3885 = vmul.f32 %v811, %v2736
        %v3886 = vmul.f32 %v812, %v2736
        %v3887 = vmul.f32 %v813, %v2741
        %v3888 = vmul.f32 %v814, %v2741
        %v3889 = vmul.f32 %v815, %v2746
        %v3890 = vmul.f32 %v816, %v2746
        %v3891 = vmul.f32 %v817, %v2751
        %v3892 = vmul.f32 %v818, %v2751
        %v3893 = vmul.f32 %v819, %v2756
        %v3894 = vmul.f32 %v820, %v2756
        %v3895 = vmul.f32 %v821, %v2761
        %v3896 = vmul.f32 %v822, %v2761
        %v3897 = vmul.f32 %v823, %v2766
        %v3898 = vmul.f32 %v824, %v2766
        %v3899 = vmul.f32 %v825, %v2771
        %v3900 = vmul.f32 %v826, %v2771
        %v3901 = vmul.f32 %v827, %v2776
        %v3902 = vmul.f32 %v828, %v2776
        %v3903 = vmul.f32 %v829, %v2781
        %v3904 = vmul.f32 %v830, %v2781
        %v3905 = vmul.f32 %v831, %v2786
        %v3906 = vmul.f32 %v832, %v2786
        %v3907 = vmul.f32 %v833, %v2791
        %v3908 = vmul.f32 %v834, %v2791
        %v3909 = vmul.f32 %v835, %v2796
        %v3910 = vmul.f32 %v836, %v2796
        %v3911 = vmul.f32 %v837, %v2801
        %v3912 = vmul.f32 %v838, %v2801
        %v3913 = vmul.f32 %v839, %v2806
        %v3914 = vmul.f32 %v840, %v2806
        %v3915 = vmul.f32 %v841, %v2811
        %v3916 = vmul.f32 %v842, %v2811
        %v3917 = vmul.f32 %v843, %v2816
        %v3918 = vmul.f32 %v844, %v2816
        %v3919 = vmul.f32 %v845, %v2821
        %v3920 = vmul.f32 %v846, %v2821
        %v3921 = vmul.f32 %v847, %v2826
        %v3922 = vmul.f32 %v848, %v2826
        %v3923 = vmul.f32 %v849, %v2831
        %v3924 = vmul.f32 %v850, %v2831
        %v3925 = vmul.f32 %v851, %v2836
        %v3926 = vmul.f32 %v852, %v2836
        %v3927 = vmul.f32 %v853, %v2841
        %v3928 = vmul.f32 %v854, %v2841
        %v3929 = vmul.f32 %v855, %v2846
        %v3930 = vmul.f32 %v856, %v2846
        %v3931 = vmul.f32 %v857, %v2851
        %v3932 = vmul.f32 %v858, %v2851
        %v3933 = vmul.f32 %v859, %v2856
        %v3934 = vmul.f32 %v860, %v2856
        %v3935 = vmul.f32 %v861, %v2861
        %v3936 = vmul.f32 %v862, %v2861
        %v3937 = vmul.f32 %v863, %v2866
        %v3938 = vmul.f32 %v864, %v2866
        %v3939 = vmul.f32 %v865, %v2871
        %v3940 = vmul.f32 %v866, %v2871
        %v3941 = vmul.f32 %v867, %v2876
        %v3942 = vmul.f32 %v868, %v2876
        %v3943 = vmul.f32 %v869, %v2881
        %v3944 = vmul.f32 %v870, %v2881
        %v3945 = vmul.f32 %v871, %v2886
        %v3946 = vmul.f32 %v872, %v2886
        %v3947 = vmul.f32 %v873, %v2891
        %v3948 = vmul.f32 %v874, %v2891
        %v3949 = vmul.f32 %v875, %v2896
        %v3950 = vmul.f32 %v876, %v2896
        %v3951 = vmul.f32 %v877, %v2901
        %v3952 = vmul.f32 %v878, %v2901
        %v3953 = vmul.f32 %v879, %v2906
        %v3954 = vmul.f32 %v880, %v2906
        %v3955 = vmul.f32 %v881, %v2911
        %v3956 = vmul.f32 %v882, %v2911
        %v3957 = vmul.f32 %v883, %v2916
        %v3958 = vmul.f32 %v884, %v2916
        %v3959 = vmul.f32 %v885, %v2921
        %v3960 = vmul.f32 %v886, %v2921
        %v3961 = vmul.f32 %v887, %v2926
        %v3962 = vmul.f32 %v888, %v2926
        %v3963 = vmul.f32 %v889, %v2931
        %v3964 = vmul.f32 %v890, %v2931
        %v3965 = vmul.f32 %v891, %v2936
        %v3966 = vmul.f32 %v892, %v2936
        %v3967 = vmul.f32 %v893, %v2941
        %v3968 = vmul.f32 %v894, %v2941
        %v3969 = vmul.f32 %v895, %v2946
        %v3970 = vmul.f32 %v896, %v2946
        %v3971 = vmul.f32 %v897, %v2951
        %v3972 = vmul.f32 %v898, %v2951
        %v3973 = vmul.f32 %v899, %v2956
        %v3974 = vmul.f32 %v900, %v2956
        %v3975 = vmul.f32 %v901, %v2961
        %v3976 = vmul.f32 %v902, %v2961
        %v3977 = vmul.f32 %v903, %v2966
        %v3978 = vmul.f32 %v904, %v2966
        %v3979 = vmul.f32 %v905, %v2971
        %v3980 = vmul.f32 %v906, %v2971
        %v3981 = vmul.f32 %v907, %v2976
        %v3982 = vmul.f32 %v908, %v2976
        %v3983 = vmul.f32 %v909, %v2981
        %v3984 = vmul.f32 %v910, %v2981
        %v3985 = vmul.f32 %v911, %v2986
        %v3986 = vmul.f32 %v912, %v2986
        %v3987 = vmul.f32 %v913, %v2991
        %v3988 = vmul.f32 %v914, %v2991
        %v3989 = vmul.f32 %v915, %v2996
        %v3990 = vmul.f32 %v916, %v2996
        %v3991 = vmul.f32 %v917, %v3001
        %v3992 = vmul.f32 %v918, %v3001
        %v3993 = vmul.f32 %v919, %v3006
        %v3994 = vmul.f32 %v920, %v3006
        %v3995 = vmul.f32 %v921, %v3011
        %v3996 = vmul.f32 %v922, %v3011
        %v3997 = vmul.f32 %v923, %v3016
        %v3998 = vmul.f32 %v924, %v3016
        %v3999 = vmul.f32 %v925, %v3021
        %v4000 = vmul.f32 %v926, %v3021
        %v4001 = vmul.f32 %v927, %v3026
        %v4002 = vmul.f32 %v928, %v3026
        %v4003 = vmul.f32 %v929, %v3031
        %v4004 = vmul.f32 %v930, %v3031
        %v4005 = vmul.f32 %v931, %v3036
        %v4006 = vmul.f32 %v932, %v3036
        %v4007 = vmul.f32 %v933, %v3041
        %v4008 = vmul.f32 %v934, %v3041
        %v4009 = vmul.f32 %v935, %v3046
        %v4010 = vmul.f32 %v936, %v3046
        %v4011 = vmul.f32 %v937, %v3051
        %v4012 = vmul.f32 %v938, %v3051
        %v4013 = vmul.f32 %v939, %v3056
        %v4014 = vmul.f32 %v940, %v3056
        %v4015 = vmul.f32 %v941, %v3061
        %v4016 = vmul.f32 %v942, %v3061
        %v4017 = vmul.f32 %v943, %v3066
        %v4018 = vmul.f32 %v944, %v3066
        %v4019 = vmul.f32 %v945, %v3071
        %v4020 = vmul.f32 %v946, %v3071
        %v4021 = vmul.f32 %v947, %v3076
        %v4022 = vmul.f32 %v948, %v3076
        %v4023 = vmul.f32 %v949, %v3081
        %v4024 = vmul.f32 %v950, %v3081
        %v4025 = vmul.f32 %v951, %v3086
        %v4026 = vmul.f32 %v952, %v3086
        %v4027 = vmul.f32 %v953, %v3091
        %v4028 = vmul.f32 %v954, %v3091
        %v4029 = vmul.f32 %v955, %v3096
        %v4030 = vmul.f32 %v956, %v3096
        %v4031 = vmul.f32 %v957, %v3101
        %v4032 = vmul.f32 %v958, %v3101
        %v4033 = vmul.f32 %v959, %v3106
        %v4034 = vmul.f32 %v960, %v3106
        %v4035 = vmul.f32 %v961, %v3111
        %v4036 = vmul.f32 %v962, %v3111
        %v4037 = vmul.f32 %v963, %v3116
        %v4038 = vmul.f32 %v964, %v3116
        %v4039 = vmul.f32 %v965, %v3121
        %v4040 = vmul.f32 %v966, %v3121
        %v4041 = vmul.f32 %v967, %v3126
        %v4042 = vmul.f32 %v968, %v3126
        %v4043 = vmul.f32 %v969, %v3131
        %v4044 = vmul.f32 %v970, %v3131
        %v4045 = vmul.f32 %v971, %v3136
        %v4046 = vmul.f32 %v972, %v3136
        %v4047 = vmul.f32 %v973, %v3141
        %v4048 = vmul.f32 %v974, %v3141
        %v4049 = vmul.f32 %v975, %v3146
        %v4050 = vmul.f32 %v976, %v3146
        %v4051 = vmul.f32 %v977, %v3151
        %v4052 = vmul.f32 %v978, %v3151
        %v4053 = vmul.f32 %v979, %v3156
        %v4054 = vmul.f32 %v980, %v3156
        %v4055 = vmul.f32 %v981, %v3161
        %v4056 = vmul.f32 %v982, %v3161
        %v4057 = vmul.f32 %v983, %v3166
        %v4058 = vmul.f32 %v984, %v3166
        %v4059 = vmul.f32 %v985, %v3171
        %v4060 = vmul.f32 %v986, %v3171
        %v4061 = vmul.f32 %v987, %v3176
        %v4062 = vmul.f32 %v988, %v3176
        %v4063 = vmul.f32 %v989, %v3181
        %v4064 = vmul.f32 %v990, %v3181
        %v4065 = vmul.f32 %v991, %v3186
        %v4066 = vmul.f32 %v992, %v3186
        %v4067 = vmul.f32 %v993, %v3191
        %v4068 = vmul.f32 %v994, %v3191
        %v4069 = vmul.f32 %v995, %v3196
        %v4070 = vmul.f32 %v996, %v3196
        %v4071 = vmul.f32 %v997, %v3201
        %v4072 = vmul.f32 %v998, %v3201
        %v4073 = vmul.f32 %v999, %v3206
        %v4074 = vmul.f32 %v1000, %v3206
        %v4075 = vmul.f32 %v1001, %v3211
        %v4076 = vmul.f32 %v1002, %v3211
        %v4077 = vmul.f32 %v1003, %v3216
        %v4078 = vmul.f32 %v1004, %v3216
        %v4079 = vmul.f32 %v1005, %v3221
        %v4080 = vmul.f32 %v1006, %v3221
        %v4081 = vmul.f32 %v1007, %v3226
        %v4082 = vmul.f32 %v1008, %v3226
        %v4083 = vmul.f32 %v1009, %v3231
        %v4084 = vmul.f32 %v1010, %v3231
        %v4085 = vmul.f32 %v1011, %v3236
        %v4086 = vmul.f32 %v1012, %v3236
        %v4087 = vmul.f32 %v1013, %v3241
        %v4088 = vmul.f32 %v1014, %v3241
        %v4089 = vmul.f32 %v1015, %v3246
        %v4090 = vmul.f32 %v1016, %v3246
        %v4091 = vmul.f32 %v1017, %v3251
        %v4092 = vmul.f32 %v1018, %v3251
        %v4093 = vmul.f32 %v1019, %v3256
        %v4094 = vmul.f32 %v1020, %v3256
        %v4095 = vmul.f32 %v1021, %v3261
        %v4096 = vmul.f32 %v1022, %v3261
        %v4097 = vmul.f32 %v1023, %v3266
        %v4098 = vmul.f32 %v1024, %v3266
        %v4099 = vmul.f32 %v1025, %v3271
        %v4100 = vmul.f32 %v1026, %v3271
        %v4101 = vmul.f32 %v1027, %v3276
        %v4102 = vmul.f32 %v1028, %v3276
        %v4103 = vmul.f32 %v1029, %v3281
        %v4104 = vmul.f32 %v1030, %v3281
        %v4105 = vmul.f32 %v1031, %v3286
        %v4106 = vmul.f32 %v1032, %v3286
        %v4107 = vmul.f32 %v1033, %v3291
        %v4108 = vmul.f32 %v1034, %v3291
        %v4109 = vmul.f32 %v1035, %v3296
        %v4110 = vmul.f32 %v1036, %v3296
        %v4111 = vmul.f32 %v1037, %v3301
        %v4112 = vmul.f32 %v1038, %v3301
        %v4113 = vmul.f32 %v1039, %v3306
        %v4114 = vmul.f32 %v1040, %v3306
        %v4115 = vmul.f32 %v1041, %v3311
        %v4116 = vmul.f32 %v1042, %v3311
        %v4117 = vmul.f32 %v1043, %v3316
        %v4118 = vmul.f32 %v1044, %v3316
        %v4119 = vmul.f32 %v1045, %v3321
        %v4120 = vmul.f32 %v1046, %v3321
        %v4121 = vmul.f32 %v1047, %v3326
        %v4122 = vmul.f32 %v1048, %v3326
        %v4123 = vmul.f32 %v1049, %v3331
        %v4124 = vmul.f32 %v1050, %v3331
        %v4125 = vmul.f32 %v1051, %v3336
        %v4126 = vmul.f32 %v1052, %v3336
        %v4127 = vmul.f32 %v1053, %v3341
        %v4128 = vmul.f32 %v1054, %v3341
        %v4129 = vmul.f32 %v1055, %v3346
        %v4130 = vmul.f32 %v1056, %v3346
        %v4131 = vmul.f32 %v1057, %v3351
        %v4132 = vmul.f32 %v1058, %v3351
        %v4133 = vmul.f32 %v1059, %v3356
        %v4134 = vmul.f32 %v1060, %v3356
        %v4135 = vmul.f32 %v1061, %v3361
        %v4136 = vmul.f32 %v1062, %v3361
        %v4137 = vmul.f32 %v1063, %v3366
        %v4138 = vmul.f32 %v1064, %v3366
        %v4139 = vmul.f32 %v1065, %v3371
        %v4140 = vmul.f32 %v1066, %v3371
        %v4141 = vadd.f32 %v3373, %v3375
        %v4142 = vadd.f32 %v4141, %v3377
        %v4143 = vadd.f32 %v4142, %v3379
        %v4144 = vadd.f32 %v4143, %v3381
        %v4145 = vadd.f32 %v4144, %v3383
        %v4146 = vadd.f32 %v4145, %v3385
        %v4147 = vadd.f32 %v4146, %v3387
        %v4148 = vadd.f32 %v4147, %v3389
        %v4149 = vadd.f32 %v4148, %v3391
        %v4150 = vadd.f32 %v4149, %v3393
        %v4151 = vadd.f32 %v4150, %v3395
        %v4152 = vadd.f32 %v4151, %v3397
        %v4153 = vadd.f32 %v4152, %v3399
        %v4154 = vadd.f32 %v4153, %v3401
        %v4155 = vadd.f32 %v4154, %v3403
        %v4156 = vadd.f32 %v4155, %v3405
        %v4157 = vadd.f32 %v4156, %v3407
        %v4158 = vadd.f32 %v4157, %v3409
        %v4159 = vadd.f32 %v4158, %v3411
        %v4160 = vadd.f32 %v4159, %v3413
        %v4161 = vadd.f32 %v4160, %v3415
        %v4162 = vadd.f32 %v4161, %v3417
        %v4163 = vadd.f32 %v4162, %v3419
        %v4164 = vadd.f32 %v4163, %v3421
        %v4165 = vadd.f32 %v4164, %v3423
        %v4166 = vadd.f32 %v4165, %v3425
        %v4167 = vadd.f32 %v4166, %v3427
        %v4168 = vadd.f32 %v4167, %v3429
        %v4169 = vadd.f32 %v4168, %v3431
        %v4170 = vadd.f32 %v4169, %v3433
        %v4171 = vadd.f32 %v4170, %v3435
        %v4172 = vadd.f32 %v4171, %v3437
        %v4173 = vadd.f32 %v4172, %v3439
        %v4174 = vadd.f32 %v4173, %v3441
        %v4175 = vadd.f32 %v4174, %v3443
        %v4176 = vadd.f32 %v4175, %v3445
        %v4177 = vadd.f32 %v4176, %v3447
        %v4178 = vadd.f32 %v4177, %v3449
        %v4179 = vadd.f32 %v4178, %v3451
        %v4180 = vadd.f32 %v4179, %v3453
        %v4181 = vadd.f32 %v4180, %v3455
        %v4182 = vadd.f32 %v4181, %v3457
        %v4183 = vadd.f32 %v4182, %v3459
        %v4184 = vadd.f32 %v4183, %v3461
        %v4185 = vadd.f32 %v4184, %v3463
        %v4186 = vadd.f32 %v4185, %v3465
        %v4187 = vadd.f32 %v4186, %v3467
        %v4188 = vrot.slane %v4187, 4
        %v4189 = vadd.f32 %v4187, %v4188
        %v4190 = vrot.slane %v4189, 2
        %v4191 = vadd.f32 %v4189, %v4190
        %v4192 = vrot.slane %v4191, 1
        %v4193 = vadd.f32 %v4191, %v4192
        %v4194 = vadd.f32 %v3374, %v3376
        %v4195 = vadd.f32 %v4194, %v3378
        %v4196 = vadd.f32 %v4195, %v3380
        %v4197 = vadd.f32 %v4196, %v3382
        %v4198 = vadd.f32 %v4197, %v3384
        %v4199 = vadd.f32 %v4198, %v3386
        %v4200 = vadd.f32 %v4199, %v3388
        %v4201 = vadd.f32 %v4200, %v3390
        %v4202 = vadd.f32 %v4201, %v3392
        %v4203 = vadd.f32 %v4202, %v3394
        %v4204 = vadd.f32 %v4203, %v3396
        %v4205 = vadd.f32 %v4204, %v3398
        %v4206 = vadd.f32 %v4205, %v3400
        %v4207 = vadd.f32 %v4206, %v3402
        %v4208 = vadd.f32 %v4207, %v3404
        %v4209 = vadd.f32 %v4208, %v3406
        %v4210 = vadd.f32 %v4209, %v3408
        %v4211 = vadd.f32 %v4210, %v3410
        %v4212 = vadd.f32 %v4211, %v3412
        %v4213 = vadd.f32 %v4212, %v3414
        %v4214 = vadd.f32 %v4213, %v3416
        %v4215 = vadd.f32 %v4214, %v3418
        %v4216 = vadd.f32 %v4215, %v3420
        %v4217 = vadd.f32 %v4216, %v3422
        %v4218 = vadd.f32 %v4217, %v3424
        %v4219 = vadd.f32 %v4218, %v3426
        %v4220 = vadd.f32 %v4219, %v3428
        %v4221 = vadd.f32 %v4220, %v3430
        %v4222 = vadd.f32 %v4221, %v3432
        %v4223 = vadd.f32 %v4222, %v3434
        %v4224 = vadd.f32 %v4223, %v3436
        %v4225 = vadd.f32 %v4224, %v3438
        %v4226 = vadd.f32 %v4225, %v3440
        %v4227 = vadd.f32 %v4226, %v3442
        %v4228 = vadd.f32 %v4227, %v3444
        %v4229 = vadd.f32 %v4228, %v3446
        %v4230 = vadd.f32 %v4229, %v3448
        %v4231 = vadd.f32 %v4230, %v3450
        %v4232 = vadd.f32 %v4231, %v3452
        %v4233 = vadd.f32 %v4232, %v3454
        %v4234 = vadd.f32 %v4233, %v3456
        %v4235 = vadd.f32 %v4234, %v3458
        %v4236 = vadd.f32 %v4235, %v3460
        %v4237 = vadd.f32 %v4236, %v3462
        %v4238 = vadd.f32 %v4237, %v3464
        %v4239 = vadd.f32 %v4238, %v3466
        %v4240 = vadd.f32 %v4239, %v3468
        %v4241 = vrot.slane %v4240, 4
        %v4242 = vadd.f32 %v4240, %v4241
        %v4243 = vrot.slane %v4242, 2
        %v4244 = vadd.f32 %v4242, %v4243
        %v4245 = vrot.slane %v4244, 1
        %v4246 = vadd.f32 %v4244, %v4245
        %v4247 = vadd.f32 %v3469, %v3471
        %v4248 = vadd.f32 %v4247, %v3473
        %v4249 = vadd.f32 %v4248, %v3475
        %v4250 = vadd.f32 %v4249, %v3477
        %v4251 = vadd.f32 %v4250, %v3479
        %v4252 = vadd.f32 %v4251, %v3481
        %v4253 = vadd.f32 %v4252, %v3483
        %v4254 = vadd.f32 %v4253, %v3485
        %v4255 = vadd.f32 %v4254, %v3487
        %v4256 = vadd.f32 %v4255, %v3489
        %v4257 = vadd.f32 %v4256, %v3491
        %v4258 = vadd.f32 %v4257, %v3493
        %v4259 = vadd.f32 %v4258, %v3495
        %v4260 = vadd.f32 %v4259, %v3497
        %v4261 = vadd.f32 %v4260, %v3499
        %v4262 = vadd.f32 %v4261, %v3501
        %v4263 = vadd.f32 %v4262, %v3503
        %v4264 = vadd.f32 %v4263, %v3505
        %v4265 = vadd.f32 %v4264, %v3507
        %v4266 = vadd.f32 %v4265, %v3509
        %v4267 = vadd.f32 %v4266, %v3511
        %v4268 = vadd.f32 %v4267, %v3513
        %v4269 = vadd.f32 %v4268, %v3515
        %v4270 = vadd.f32 %v4269, %v3517
        %v4271 = vadd.f32 %v4270, %v3519
        %v4272 = vadd.f32 %v4271, %v3521
        %v4273 = vadd.f32 %v4272, %v3523
        %v4274 = vadd.f32 %v4273, %v3525
        %v4275 = vadd.f32 %v4274, %v3527
        %v4276 = vadd.f32 %v4275, %v3529
        %v4277 = vadd.f32 %v4276, %v3531
        %v4278 = vadd.f32 %v4277, %v3533
        %v4279 = vadd.f32 %v4278, %v3535
        %v4280 = vadd.f32 %v4279, %v3537
        %v4281 = vadd.f32 %v4280, %v3539
        %v4282 = vadd.f32 %v4281, %v3541
        %v4283 = vadd.f32 %v4282, %v3543
        %v4284 = vadd.f32 %v4283, %v3545
        %v4285 = vadd.f32 %v4284, %v3547
        %v4286 = vadd.f32 %v4285, %v3549
        %v4287 = vadd.f32 %v4286, %v3551
        %v4288 = vadd.f32 %v4287, %v3553
        %v4289 = vadd.f32 %v4288, %v3555
        %v4290 = vadd.f32 %v4289, %v3557
        %v4291 = vadd.f32 %v4290, %v3559
        %v4292 = vadd.f32 %v4291, %v3561
        %v4293 = vadd.f32 %v4292, %v3563
        %v4294 = vrot.slane %v4293, 4
        %v4295 = vadd.f32 %v4293, %v4294
        %v4296 = vrot.slane %v4295, 2
        %v4297 = vadd.f32 %v4295, %v4296
        %v4298 = vrot.slane %v4297, 1
        %v4299 = vadd.f32 %v4297, %v4298
        %v4300 = vadd.f32 %v3470, %v3472
        %v4301 = vadd.f32 %v4300, %v3474
        %v4302 = vadd.f32 %v4301, %v3476
        %v4303 = vadd.f32 %v4302, %v3478
        %v4304 = vadd.f32 %v4303, %v3480
        %v4305 = vadd.f32 %v4304, %v3482
        %v4306 = vadd.f32 %v4305, %v3484
        %v4307 = vadd.f32 %v4306, %v3486
        %v4308 = vadd.f32 %v4307, %v3488
        %v4309 = vadd.f32 %v4308, %v3490
        %v4310 = vadd.f32 %v4309, %v3492
        %v4311 = vadd.f32 %v4310, %v3494
        %v4312 = vadd.f32 %v4311, %v3496
        %v4313 = vadd.f32 %v4312, %v3498
        %v4314 = vadd.f32 %v4313, %v3500
        %v4315 = vadd.f32 %v4314, %v3502
        %v4316 = vadd.f32 %v4315, %v3504
        %v4317 = vadd.f32 %v4316, %v3506
        %v4318 = vadd.f32 %v4317, %v3508
        %v4319 = vadd.f32 %v4318, %v3510
        %v4320 = vadd.f32 %v4319, %v3512
        %v4321 = vadd.f32 %v4320, %v3514
        %v4322 = vadd.f32 %v4321, %v3516
        %v4323 = vadd.f32 %v4322, %v3518
        %v4324 = vadd.f32 %v4323, %v3520
        %v4325 = vadd.f32 %v4324, %v3522
        %v4326 = vadd.f32 %v4325, %v3524
        %v4327 = vadd.f32 %v4326, %v3526
        %v4328 = vadd.f32 %v4327, %v3528
        %v4329 = vadd.f32 %v4328, %v3530
        %v4330 = vadd.f32 %v4329, %v3532
        %v4331 = vadd.f32 %v4330, %v3534
        %v4332 = vadd.f32 %v4331, %v3536
        %v4333 = vadd.f32 %v4332, %v3538
        %v4334 = vadd.f32 %v4333, %v3540
        %v4335 = vadd.f32 %v4334, %v3542
        %v4336 = vadd.f32 %v4335, %v3544
        %v4337 = vadd.f32 %v4336, %v3546
        %v4338 = vadd.f32 %v4337, %v3548
        %v4339 = vadd.f32 %v4338, %v3550
        %v4340 = vadd.f32 %v4339, %v3552
        %v4341 = vadd.f32 %v4340, %v3554
        %v4342 = vadd.f32 %v4341, %v3556
        %v4343 = vadd.f32 %v4342, %v3558
        %v4344 = vadd.f32 %v4343, %v3560
        %v4345 = vadd.f32 %v4344, %v3562
        %v4346 = vadd.f32 %v4345, %v3564
        %v4347 = vrot.slane %v4346, 4
        %v4348 = vadd.f32 %v4346, %v4347
        %v4349 = vrot.slane %v4348, 2
        %v4350 = vadd.f32 %v4348, %v4349
        %v4351 = vrot.slane %v4350, 1
        %v4352 = vadd.f32 %v4350, %v4351
        %v4353 = vadd.f32 %v3565, %v3567
        %v4354 = vadd.f32 %v4353, %v3569
        %v4355 = vadd.f32 %v4354, %v3571
        %v4356 = vadd.f32 %v4355, %v3573
        %v4357 = vadd.f32 %v4356, %v3575
        %v4358 = vadd.f32 %v4357, %v3577
        %v4359 = vadd.f32 %v4358, %v3579
        %v4360 = vadd.f32 %v4359, %v3581
        %v4361 = vadd.f32 %v4360, %v3583
        %v4362 = vadd.f32 %v4361, %v3585
        %v4363 = vadd.f32 %v4362, %v3587
        %v4364 = vadd.f32 %v4363, %v3589
        %v4365 = vadd.f32 %v4364, %v3591
        %v4366 = vadd.f32 %v4365, %v3593
        %v4367 = vadd.f32 %v4366, %v3595
        %v4368 = vadd.f32 %v4367, %v3597
        %v4369 = vadd.f32 %v4368, %v3599
        %v4370 = vadd.f32 %v4369, %v3601
        %v4371 = vadd.f32 %v4370, %v3603
        %v4372 = vadd.f32 %v4371, %v3605
        %v4373 = vadd.f32 %v4372, %v3607
        %v4374 = vadd.f32 %v4373, %v3609
        %v4375 = vadd.f32 %v4374, %v3611
        %v4376 = vadd.f32 %v4375, %v3613
        %v4377 = vadd.f32 %v4376, %v3615
        %v4378 = vadd.f32 %v4377, %v3617
        %v4379 = vadd.f32 %v4378, %v3619
        %v4380 = vadd.f32 %v4379, %v3621
        %v4381 = vadd.f32 %v4380, %v3623
        %v4382 = vadd.f32 %v4381, %v3625
        %v4383 = vadd.f32 %v4382, %v3627
        %v4384 = vadd.f32 %v4383, %v3629
        %v4385 = vadd.f32 %v4384, %v3631
        %v4386 = vadd.f32 %v4385, %v3633
        %v4387 = vadd.f32 %v4386, %v3635
        %v4388 = vadd.f32 %v4387, %v3637
        %v4389 = vadd.f32 %v4388, %v3639
        %v4390 = vadd.f32 %v4389, %v3641
        %v4391 = vadd.f32 %v4390, %v3643
        %v4392 = vadd.f32 %v4391, %v3645
        %v4393 = vadd.f32 %v4392, %v3647
        %v4394 = vadd.f32 %v4393, %v3649
        %v4395 = vadd.f32 %v4394, %v3651
        %v4396 = vadd.f32 %v4395, %v3653
        %v4397 = vadd.f32 %v4396, %v3655
        %v4398 = vadd.f32 %v4397, %v3657
        %v4399 = vadd.f32 %v4398, %v3659
        %v4400 = vrot.slane %v4399, 4
        %v4401 = vadd.f32 %v4399, %v4400
        %v4402 = vrot.slane %v4401, 2
        %v4403 = vadd.f32 %v4401, %v4402
        %v4404 = vrot.slane %v4403, 1
        %v4405 = vadd.f32 %v4403, %v4404
        %v4406 = vadd.f32 %v3566, %v3568
        %v4407 = vadd.f32 %v4406, %v3570
        %v4408 = vadd.f32 %v4407, %v3572
        %v4409 = vadd.f32 %v4408, %v3574
        %v4410 = vadd.f32 %v4409, %v3576
        %v4411 = vadd.f32 %v4410, %v3578
        %v4412 = vadd.f32 %v4411, %v3580
        %v4413 = vadd.f32 %v4412, %v3582
        %v4414 = vadd.f32 %v4413, %v3584
        %v4415 = vadd.f32 %v4414, %v3586
        %v4416 = vadd.f32 %v4415, %v3588
        %v4417 = vadd.f32 %v4416, %v3590
        %v4418 = vadd.f32 %v4417, %v3592
        %v4419 = vadd.f32 %v4418, %v3594
        %v4420 = vadd.f32 %v4419, %v3596
        %v4421 = vadd.f32 %v4420, %v3598
        %v4422 = vadd.f32 %v4421, %v3600
        %v4423 = vadd.f32 %v4422, %v3602
        %v4424 = vadd.f32 %v4423, %v3604
        %v4425 = vadd.f32 %v4424, %v3606
        %v4426 = vadd.f32 %v4425, %v3608
        %v4427 = vadd.f32 %v4426, %v3610
        %v4428 = vadd.f32 %v4427, %v3612
        %v4429 = vadd.f32 %v4428, %v3614
        %v4430 = vadd.f32 %v4429, %v3616
        %v4431 = vadd.f32 %v4430, %v3618
        %v4432 = vadd.f32 %v4431, %v3620
        %v4433 = vadd.f32 %v4432, %v3622
        %v4434 = vadd.f32 %v4433, %v3624
        %v4435 = vadd.f32 %v4434, %v3626
        %v4436 = vadd.f32 %v4435, %v3628
        %v4437 = vadd.f32 %v4436, %v3630
        %v4438 = vadd.f32 %v4437, %v3632
        %v4439 = vadd.f32 %v4438, %v3634
        %v4440 = vadd.f32 %v4439, %v3636
        %v4441 = vadd.f32 %v4440, %v3638
        %v4442 = vadd.f32 %v4441, %v3640
        %v4443 = vadd.f32 %v4442, %v3642
        %v4444 = vadd.f32 %v4443, %v3644
        %v4445 = vadd.f32 %v4444, %v3646
        %v4446 = vadd.f32 %v4445, %v3648
        %v4447 = vadd.f32 %v4446, %v3650
        %v4448 = vadd.f32 %v4447, %v3652
        %v4449 = vadd.f32 %v4448, %v3654
        %v4450 = vadd.f32 %v4449, %v3656
        %v4451 = vadd.f32 %v4450, %v3658
        %v4452 = vadd.f32 %v4451, %v3660
        %v4453 = vrot.slane %v4452, 4
        %v4454 = vadd.f32 %v4452, %v4453
        %v4455 = vrot.slane %v4454, 2
        %v4456 = vadd.f32 %v4454, %v4455
        %v4457 = vrot.slane %v4456, 1
        %v4458 = vadd.f32 %v4456, %v4457
        %v4459 = vadd.f32 %v3661, %v3663
        %v4460 = vadd.f32 %v4459, %v3665
        %v4461 = vadd.f32 %v4460, %v3667
        %v4462 = vadd.f32 %v4461, %v3669
        %v4463 = vadd.f32 %v4462, %v3671
        %v4464 = vadd.f32 %v4463, %v3673
        %v4465 = vadd.f32 %v4464, %v3675
        %v4466 = vadd.f32 %v4465, %v3677
        %v4467 = vadd.f32 %v4466, %v3679
        %v4468 = vadd.f32 %v4467, %v3681
        %v4469 = vadd.f32 %v4468, %v3683
        %v4470 = vadd.f32 %v4469, %v3685
        %v4471 = vadd.f32 %v4470, %v3687
        %v4472 = vadd.f32 %v4471, %v3689
        %v4473 = vadd.f32 %v4472, %v3691
        %v4474 = vadd.f32 %v4473, %v3693
        %v4475 = vadd.f32 %v4474, %v3695
        %v4476 = vadd.f32 %v4475, %v3697
        %v4477 = vadd.f32 %v4476, %v3699
        %v4478 = vadd.f32 %v4477, %v3701
        %v4479 = vadd.f32 %v4478, %v3703
        %v4480 = vadd.f32 %v4479, %v3705
        %v4481 = vadd.f32 %v4480, %v3707
        %v4482 = vadd.f32 %v4481, %v3709
        %v4483 = vadd.f32 %v4482, %v3711
        %v4484 = vadd.f32 %v4483, %v3713
        %v4485 = vadd.f32 %v4484, %v3715
        %v4486 = vadd.f32 %v4485, %v3717
        %v4487 = vadd.f32 %v4486, %v3719
        %v4488 = vadd.f32 %v4487, %v3721
        %v4489 = vadd.f32 %v4488, %v3723
        %v4490 = vadd.f32 %v4489, %v3725
        %v4491 = vadd.f32 %v4490, %v3727
        %v4492 = vadd.f32 %v4491, %v3729
        %v4493 = vadd.f32 %v4492, %v3731
        %v4494 = vadd.f32 %v4493, %v3733
        %v4495 = vadd.f32 %v4494, %v3735
        %v4496 = vadd.f32 %v4495, %v3737
        %v4497 = vadd.f32 %v4496, %v3739
        %v4498 = vadd.f32 %v4497, %v3741
        %v4499 = vadd.f32 %v4498, %v3743
        %v4500 = vadd.f32 %v4499, %v3745
        %v4501 = vadd.f32 %v4500, %v3747
        %v4502 = vadd.f32 %v4501, %v3749
        %v4503 = vadd.f32 %v4502, %v3751
        %v4504 = vadd.f32 %v4503, %v3753
        %v4505 = vadd.f32 %v4504, %v3755
        %v4506 = vrot.slane %v4505, 4
        %v4507 = vadd.f32 %v4505, %v4506
        %v4508 = vrot.slane %v4507, 2
        %v4509 = vadd.f32 %v4507, %v4508
        %v4510 = vrot.slane %v4509, 1
        %v4511 = vadd.f32 %v4509, %v4510
        %v4512 = vadd.f32 %v3662, %v3664
        %v4513 = vadd.f32 %v4512, %v3666
        %v4514 = vadd.f32 %v4513, %v3668
        %v4515 = vadd.f32 %v4514, %v3670
        %v4516 = vadd.f32 %v4515, %v3672
        %v4517 = vadd.f32 %v4516, %v3674
        %v4518 = vadd.f32 %v4517, %v3676
        %v4519 = vadd.f32 %v4518, %v3678
        %v4520 = vadd.f32 %v4519, %v3680
        %v4521 = vadd.f32 %v4520, %v3682
        %v4522 = vadd.f32 %v4521, %v3684
        %v4523 = vadd.f32 %v4522, %v3686
        %v4524 = vadd.f32 %v4523, %v3688
        %v4525 = vadd.f32 %v4524, %v3690
        %v4526 = vadd.f32 %v4525, %v3692
        %v4527 = vadd.f32 %v4526, %v3694
        %v4528 = vadd.f32 %v4527, %v3696
        %v4529 = vadd.f32 %v4528, %v3698
        %v4530 = vadd.f32 %v4529, %v3700
        %v4531 = vadd.f32 %v4530, %v3702
        %v4532 = vadd.f32 %v4531, %v3704
        %v4533 = vadd.f32 %v4532, %v3706
        %v4534 = vadd.f32 %v4533, %v3708
        %v4535 = vadd.f32 %v4534, %v3710
        %v4536 = vadd.f32 %v4535, %v3712
        %v4537 = vadd.f32 %v4536, %v3714
        %v4538 = vadd.f32 %v4537, %v3716
        %v4539 = vadd.f32 %v4538, %v3718
        %v4540 = vadd.f32 %v4539, %v3720
        %v4541 = vadd.f32 %v4540, %v3722
        %v4542 = vadd.f32 %v4541, %v3724
        %v4543 = vadd.f32 %v4542, %v3726
        %v4544 = vadd.f32 %v4543, %v3728
        %v4545 = vadd.f32 %v4544, %v3730
        %v4546 = vadd.f32 %v4545, %v3732
        %v4547 = vadd.f32 %v4546, %v3734
        %v4548 = vadd.f32 %v4547, %v3736
        %v4549 = vadd.f32 %v4548, %v3738
        %v4550 = vadd.f32 %v4549, %v3740
        %v4551 = vadd.f32 %v4550, %v3742
        %v4552 = vadd.f32 %v4551, %v3744
        %v4553 = vadd.f32 %v4552, %v3746
        %v4554 = vadd.f32 %v4553, %v3748
        %v4555 = vadd.f32 %v4554, %v3750
        %v4556 = vadd.f32 %v4555, %v3752
        %v4557 = vadd.f32 %v4556, %v3754
        %v4558 = vadd.f32 %v4557, %v3756
        %v4559 = vrot.slane %v4558, 4
        %v4560 = vadd.f32 %v4558, %v4559
        %v4561 = vrot.slane %v4560, 2
        %v4562 = vadd.f32 %v4560, %v4561
        %v4563 = vrot.slane %v4562, 1
        %v4564 = vadd.f32 %v4562, %v4563
        %v4565 = vadd.f32 %v3757, %v3759
        %v4566 = vadd.f32 %v4565, %v3761
        %v4567 = vadd.f32 %v4566, %v3763
        %v4568 = vadd.f32 %v4567, %v3765
        %v4569 = vadd.f32 %v4568, %v3767
        %v4570 = vadd.f32 %v4569, %v3769
        %v4571 = vadd.f32 %v4570, %v3771
        %v4572 = vadd.f32 %v4571, %v3773
        %v4573 = vadd.f32 %v4572, %v3775
        %v4574 = vadd.f32 %v4573, %v3777
        %v4575 = vadd.f32 %v4574, %v3779
        %v4576 = vadd.f32 %v4575, %v3781
        %v4577 = vadd.f32 %v4576, %v3783
        %v4578 = vadd.f32 %v4577, %v3785
        %v4579 = vadd.f32 %v4578, %v3787
        %v4580 = vadd.f32 %v4579, %v3789
        %v4581 = vadd.f32 %v4580, %v3791
        %v4582 = vadd.f32 %v4581, %v3793
        %v4583 = vadd.f32 %v4582, %v3795
        %v4584 = vadd.f32 %v4583, %v3797
        %v4585 = vadd.f32 %v4584, %v3799
        %v4586 = vadd.f32 %v4585, %v3801
        %v4587 = vadd.f32 %v4586, %v3803
        %v4588 = vadd.f32 %v4587, %v3805
        %v4589 = vadd.f32 %v4588, %v3807
        %v4590 = vadd.f32 %v4589, %v3809
        %v4591 = vadd.f32 %v4590, %v3811
        %v4592 = vadd.f32 %v4591, %v3813
        %v4593 = vadd.f32 %v4592, %v3815
        %v4594 = vadd.f32 %v4593, %v3817
        %v4595 = vadd.f32 %v4594, %v3819
        %v4596 = vadd.f32 %v4595, %v3821
        %v4597 = vadd.f32 %v4596, %v3823
        %v4598 = vadd.f32 %v4597, %v3825
        %v4599 = vadd.f32 %v4598, %v3827
        %v4600 = vadd.f32 %v4599, %v3829
        %v4601 = vadd.f32 %v4600, %v3831
        %v4602 = vadd.f32 %v4601, %v3833
        %v4603 = vadd.f32 %v4602, %v3835
        %v4604 = vadd.f32 %v4603, %v3837
        %v4605 = vadd.f32 %v4604, %v3839
        %v4606 = vadd.f32 %v4605, %v3841
        %v4607 = vadd.f32 %v4606, %v3843
        %v4608 = vadd.f32 %v4607, %v3845
        %v4609 = vadd.f32 %v4608, %v3847
        %v4610 = vadd.f32 %v4609, %v3849
        %v4611 = vadd.f32 %v4610, %v3851
        %v4612 = vrot.slane %v4611, 4
        %v4613 = vadd.f32 %v4611, %v4612
        %v4614 = vrot.slane %v4613, 2
        %v4615 = vadd.f32 %v4613, %v4614
        %v4616 = vrot.slane %v4615, 1
        %v4617 = vadd.f32 %v4615, %v4616
        %v4618 = vadd.f32 %v3758, %v3760
        %v4619 = vadd.f32 %v4618, %v3762
        %v4620 = vadd.f32 %v4619, %v3764
        %v4621 = vadd.f32 %v4620, %v3766
        %v4622 = vadd.f32 %v4621, %v3768
        %v4623 = vadd.f32 %v4622, %v3770
        %v4624 = vadd.f32 %v4623, %v3772
        %v4625 = vadd.f32 %v4624, %v3774
        %v4626 = vadd.f32 %v4625, %v3776
        %v4627 = vadd.f32 %v4626, %v3778
        %v4628 = vadd.f32 %v4627, %v3780
        %v4629 = vadd.f32 %v4628, %v3782
        %v4630 = vadd.f32 %v4629, %v3784
        %v4631 = vadd.f32 %v4630, %v3786
        %v4632 = vadd.f32 %v4631, %v3788
        %v4633 = vadd.f32 %v4632, %v3790
        %v4634 = vadd.f32 %v4633, %v3792
        %v4635 = vadd.f32 %v4634, %v3794
        %v4636 = vadd.f32 %v4635, %v3796
        %v4637 = vadd.f32 %v4636, %v3798
        %v4638 = vadd.f32 %v4637, %v3800
        %v4639 = vadd.f32 %v4638, %v3802
        %v4640 = vadd.f32 %v4639, %v3804
        %v4641 = vadd.f32 %v4640, %v3806
        %v4642 = vadd.f32 %v4641, %v3808
        %v4643 = vadd.f32 %v4642, %v3810
        %v4644 = vadd.f32 %v4643, %v3812
        %v4645 = vadd.f32 %v4644, %v3814
        %v4646 = vadd.f32 %v4645, %v3816
        %v4647 = vadd.f32 %v4646, %v3818
        %v4648 = vadd.f32 %v4647, %v3820
        %v4649 = vadd.f32 %v4648, %v3822
        %v4650 = vadd.f32 %v4649, %v3824
        %v4651 = vadd.f32 %v4650, %v3826
        %v4652 = vadd.f32 %v4651, %v3828
        %v4653 = vadd.f32 %v4652, %v3830
        %v4654 = vadd.f32 %v4653, %v3832
        %v4655 = vadd.f32 %v4654, %v3834
        %v4656 = vadd.f32 %v4655, %v3836
        %v4657 = vadd.f32 %v4656, %v3838
        %v4658 = vadd.f32 %v4657, %v3840
        %v4659 = vadd.f32 %v4658, %v3842
        %v4660 = vadd.f32 %v4659, %v3844
        %v4661 = vadd.f32 %v4660, %v3846
        %v4662 = vadd.f32 %v4661, %v3848
        %v4663 = vadd.f32 %v4662, %v3850
        %v4664 = vadd.f32 %v4663, %v3852
        %v4665 = vrot.slane %v4664, 4
        %v4666 = vadd.f32 %v4664, %v4665
        %v4667 = vrot.slane %v4666, 2
        %v4668 = vadd.f32 %v4666, %v4667
        %v4669 = vrot.slane %v4668, 1
        %v4670 = vadd.f32 %v4668, %v4669
        %v4671 = vadd.f32 %v3853, %v3855
        %v4672 = vadd.f32 %v4671, %v3857
        %v4673 = vadd.f32 %v4672, %v3859
        %v4674 = vadd.f32 %v4673, %v3861
        %v4675 = vadd.f32 %v4674, %v3863
        %v4676 = vadd.f32 %v4675, %v3865
        %v4677 = vadd.f32 %v4676, %v3867
        %v4678 = vadd.f32 %v4677, %v3869
        %v4679 = vadd.f32 %v4678, %v3871
        %v4680 = vadd.f32 %v4679, %v3873
        %v4681 = vadd.f32 %v4680, %v3875
        %v4682 = vadd.f32 %v4681, %v3877
        %v4683 = vadd.f32 %v4682, %v3879
        %v4684 = vadd.f32 %v4683, %v3881
        %v4685 = vadd.f32 %v4684, %v3883
        %v4686 = vadd.f32 %v4685, %v3885
        %v4687 = vadd.f32 %v4686, %v3887
        %v4688 = vadd.f32 %v4687, %v3889
        %v4689 = vadd.f32 %v4688, %v3891
        %v4690 = vadd.f32 %v4689, %v3893
        %v4691 = vadd.f32 %v4690, %v3895
        %v4692 = vadd.f32 %v4691, %v3897
        %v4693 = vadd.f32 %v4692, %v3899
        %v4694 = vadd.f32 %v4693, %v3901
        %v4695 = vadd.f32 %v4694, %v3903
        %v4696 = vadd.f32 %v4695, %v3905
        %v4697 = vadd.f32 %v4696, %v3907
        %v4698 = vadd.f32 %v4697, %v3909
        %v4699 = vadd.f32 %v4698, %v3911
        %v4700 = vadd.f32 %v4699, %v3913
        %v4701 = vadd.f32 %v4700, %v3915
        %v4702 = vadd.f32 %v4701, %v3917
        %v4703 = vadd.f32 %v4702, %v3919
        %v4704 = vadd.f32 %v4703, %v3921
        %v4705 = vadd.f32 %v4704, %v3923
        %v4706 = vadd.f32 %v4705, %v3925
        %v4707 = vadd.f32 %v4706, %v3927
        %v4708 = vadd.f32 %v4707, %v3929
        %v4709 = vadd.f32 %v4708, %v3931
        %v4710 = vadd.f32 %v4709, %v3933
        %v4711 = vadd.f32 %v4710, %v3935
        %v4712 = vadd.f32 %v4711, %v3937
        %v4713 = vadd.f32 %v4712, %v3939
        %v4714 = vadd.f32 %v4713, %v3941
        %v4715 = vadd.f32 %v4714, %v3943
        %v4716 = vadd.f32 %v4715, %v3945
        %v4717 = vadd.f32 %v4716, %v3947
        %v4718 = vrot.slane %v4717, 4
        %v4719 = vadd.f32 %v4717, %v4718
        %v4720 = vrot.slane %v4719, 2
        %v4721 = vadd.f32 %v4719, %v4720
        %v4722 = vrot.slane %v4721, 1
        %v4723 = vadd.f32 %v4721, %v4722
        %v4724 = vadd.f32 %v3854, %v3856
        %v4725 = vadd.f32 %v4724, %v3858
        %v4726 = vadd.f32 %v4725, %v3860
        %v4727 = vadd.f32 %v4726, %v3862
        %v4728 = vadd.f32 %v4727, %v3864
        %v4729 = vadd.f32 %v4728, %v3866
        %v4730 = vadd.f32 %v4729, %v3868
        %v4731 = vadd.f32 %v4730, %v3870
        %v4732 = vadd.f32 %v4731, %v3872
        %v4733 = vadd.f32 %v4732, %v3874
        %v4734 = vadd.f32 %v4733, %v3876
        %v4735 = vadd.f32 %v4734, %v3878
        %v4736 = vadd.f32 %v4735, %v3880
        %v4737 = vadd.f32 %v4736, %v3882
        %v4738 = vadd.f32 %v4737, %v3884
        %v4739 = vadd.f32 %v4738, %v3886
        %v4740 = vadd.f32 %v4739, %v3888
        %v4741 = vadd.f32 %v4740, %v3890
        %v4742 = vadd.f32 %v4741, %v3892
        %v4743 = vadd.f32 %v4742, %v3894
        %v4744 = vadd.f32 %v4743, %v3896
        %v4745 = vadd.f32 %v4744, %v3898
        %v4746 = vadd.f32 %v4745, %v3900
        %v4747 = vadd.f32 %v4746, %v3902
        %v4748 = vadd.f32 %v4747, %v3904
        %v4749 = vadd.f32 %v4748, %v3906
        %v4750 = vadd.f32 %v4749, %v3908
        %v4751 = vadd.f32 %v4750, %v3910
        %v4752 = vadd.f32 %v4751, %v3912
        %v4753 = vadd.f32 %v4752, %v3914
        %v4754 = vadd.f32 %v4753, %v3916
        %v4755 = vadd.f32 %v4754, %v3918
        %v4756 = vadd.f32 %v4755, %v3920
        %v4757 = vadd.f32 %v4756, %v3922
        %v4758 = vadd.f32 %v4757, %v3924
        %v4759 = vadd.f32 %v4758, %v3926
        %v4760 = vadd.f32 %v4759, %v3928
        %v4761 = vadd.f32 %v4760, %v3930
        %v4762 = vadd.f32 %v4761, %v3932
        %v4763 = vadd.f32 %v4762, %v3934
        %v4764 = vadd.f32 %v4763, %v3936
        %v4765 = vadd.f32 %v4764, %v3938
        %v4766 = vadd.f32 %v4765, %v3940
        %v4767 = vadd.f32 %v4766, %v3942
        %v4768 = vadd.f32 %v4767, %v3944
        %v4769 = vadd.f32 %v4768, %v3946
        %v4770 = vadd.f32 %v4769, %v3948
        %v4771 = vrot.slane %v4770, 4
        %v4772 = vadd.f32 %v4770, %v4771
        %v4773 = vrot.slane %v4772, 2
        %v4774 = vadd.f32 %v4772, %v4773
        %v4775 = vrot.slane %v4774, 1
        %v4776 = vadd.f32 %v4774, %v4775
        %v4777 = vadd.f32 %v3949, %v3951
        %v4778 = vadd.f32 %v4777, %v3953
        %v4779 = vadd.f32 %v4778, %v3955
        %v4780 = vadd.f32 %v4779, %v3957
        %v4781 = vadd.f32 %v4780, %v3959
        %v4782 = vadd.f32 %v4781, %v3961
        %v4783 = vadd.f32 %v4782, %v3963
        %v4784 = vadd.f32 %v4783, %v3965
        %v4785 = vadd.f32 %v4784, %v3967
        %v4786 = vadd.f32 %v4785, %v3969
        %v4787 = vadd.f32 %v4786, %v3971
        %v4788 = vadd.f32 %v4787, %v3973
        %v4789 = vadd.f32 %v4788, %v3975
        %v4790 = vadd.f32 %v4789, %v3977
        %v4791 = vadd.f32 %v4790, %v3979
        %v4792 = vadd.f32 %v4791, %v3981
        %v4793 = vadd.f32 %v4792, %v3983
        %v4794 = vadd.f32 %v4793, %v3985
        %v4795 = vadd.f32 %v4794, %v3987
        %v4796 = vadd.f32 %v4795, %v3989
        %v4797 = vadd.f32 %v4796, %v3991
        %v4798 = vadd.f32 %v4797, %v3993
        %v4799 = vadd.f32 %v4798, %v3995
        %v4800 = vadd.f32 %v4799, %v3997
        %v4801 = vadd.f32 %v4800, %v3999
        %v4802 = vadd.f32 %v4801, %v4001
        %v4803 = vadd.f32 %v4802, %v4003
        %v4804 = vadd.f32 %v4803, %v4005
        %v4805 = vadd.f32 %v4804, %v4007
        %v4806 = vadd.f32 %v4805, %v4009
        %v4807 = vadd.f32 %v4806, %v4011
        %v4808 = vadd.f32 %v4807, %v4013
        %v4809 = vadd.f32 %v4808, %v4015
        %v4810 = vadd.f32 %v4809, %v4017
        %v4811 = vadd.f32 %v4810, %v4019
        %v4812 = vadd.f32 %v4811, %v4021
        %v4813 = vadd.f32 %v4812, %v4023
        %v4814 = vadd.f32 %v4813, %v4025
        %v4815 = vadd.f32 %v4814, %v4027
        %v4816 = vadd.f32 %v4815, %v4029
        %v4817 = vadd.f32 %v4816, %v4031
        %v4818 = vadd.f32 %v4817, %v4033
        %v4819 = vadd.f32 %v4818, %v4035
        %v4820 = vadd.f32 %v4819, %v4037
        %v4821 = vadd.f32 %v4820, %v4039
        %v4822 = vadd.f32 %v4821, %v4041
        %v4823 = vadd.f32 %v4822, %v4043
        %v4824 = vrot.slane %v4823, 4
        %v4825 = vadd.f32 %v4823, %v4824
        %v4826 = vrot.slane %v4825, 2
        %v4827 = vadd.f32 %v4825, %v4826
        %v4828 = vrot.slane %v4827, 1
        %v4829 = vadd.f32 %v4827, %v4828
        %v4830 = vadd.f32 %v3950, %v3952
        %v4831 = vadd.f32 %v4830, %v3954
        %v4832 = vadd.f32 %v4831, %v3956
        %v4833 = vadd.f32 %v4832, %v3958
        %v4834 = vadd.f32 %v4833, %v3960
        %v4835 = vadd.f32 %v4834, %v3962
        %v4836 = vadd.f32 %v4835, %v3964
        %v4837 = vadd.f32 %v4836, %v3966
        %v4838 = vadd.f32 %v4837, %v3968
        %v4839 = vadd.f32 %v4838, %v3970
        %v4840 = vadd.f32 %v4839, %v3972
        %v4841 = vadd.f32 %v4840, %v3974
        %v4842 = vadd.f32 %v4841, %v3976
        %v4843 = vadd.f32 %v4842, %v3978
        %v4844 = vadd.f32 %v4843, %v3980
        %v4845 = vadd.f32 %v4844, %v3982
        %v4846 = vadd.f32 %v4845, %v3984
        %v4847 = vadd.f32 %v4846, %v3986
        %v4848 = vadd.f32 %v4847, %v3988
        %v4849 = vadd.f32 %v4848, %v3990
        %v4850 = vadd.f32 %v4849, %v3992
        %v4851 = vadd.f32 %v4850, %v3994
        %v4852 = vadd.f32 %v4851, %v3996
        %v4853 = vadd.f32 %v4852, %v3998
        %v4854 = vadd.f32 %v4853, %v4000
        %v4855 = vadd.f32 %v4854, %v4002
        %v4856 = vadd.f32 %v4855, %v4004
        %v4857 = vadd.f32 %v4856, %v4006
        %v4858 = vadd.f32 %v4857, %v4008
        %v4859 = vadd.f32 %v4858, %v4010
        %v4860 = vadd.f32 %v4859, %v4012
        %v4861 = vadd.f32 %v4860, %v4014
        %v4862 = vadd.f32 %v4861, %v4016
        %v4863 = vadd.f32 %v4862, %v4018
        %v4864 = vadd.f32 %v4863, %v4020
        %v4865 = vadd.f32 %v4864, %v4022
        %v4866 = vadd.f32 %v4865, %v4024
        %v4867 = vadd.f32 %v4866, %v4026
        %v4868 = vadd.f32 %v4867, %v4028
        %v4869 = vadd.f32 %v4868, %v4030
        %v4870 = vadd.f32 %v4869, %v4032
        %v4871 = vadd.f32 %v4870, %v4034
        %v4872 = vadd.f32 %v4871, %v4036
        %v4873 = vadd.f32 %v4872, %v4038
        %v4874 = vadd.f32 %v4873, %v4040
        %v4875 = vadd.f32 %v4874, %v4042
        %v4876 = vadd.f32 %v4875, %v4044
        %v4877 = vrot.slane %v4876, 4
        %v4878 = vadd.f32 %v4876, %v4877
        %v4879 = vrot.slane %v4878, 2
        %v4880 = vadd.f32 %v4878, %v4879
        %v4881 = vrot.slane %v4880, 1
        %v4882 = vadd.f32 %v4880, %v4881
        %v4883 = vadd.f32 %v4045, %v4047
        %v4884 = vadd.f32 %v4883, %v4049
        %v4885 = vadd.f32 %v4884, %v4051
        %v4886 = vadd.f32 %v4885, %v4053
        %v4887 = vadd.f32 %v4886, %v4055
        %v4888 = vadd.f32 %v4887, %v4057
        %v4889 = vadd.f32 %v4888, %v4059
        %v4890 = vadd.f32 %v4889, %v4061
        %v4891 = vadd.f32 %v4890, %v4063
        %v4892 = vadd.f32 %v4891, %v4065
        %v4893 = vadd.f32 %v4892, %v4067
        %v4894 = vadd.f32 %v4893, %v4069
        %v4895 = vadd.f32 %v4894, %v4071
        %v4896 = vadd.f32 %v4895, %v4073
        %v4897 = vadd.f32 %v4896, %v4075
        %v4898 = vadd.f32 %v4897, %v4077
        %v4899 = vadd.f32 %v4898, %v4079
        %v4900 = vadd.f32 %v4899, %v4081
        %v4901 = vadd.f32 %v4900, %v4083
        %v4902 = vadd.f32 %v4901, %v4085
        %v4903 = vadd.f32 %v4902, %v4087
        %v4904 = vadd.f32 %v4903, %v4089
        %v4905 = vadd.f32 %v4904, %v4091
        %v4906 = vadd.f32 %v4905, %v4093
        %v4907 = vadd.f32 %v4906, %v4095
        %v4908 = vadd.f32 %v4907, %v4097
        %v4909 = vadd.f32 %v4908, %v4099
        %v4910 = vadd.f32 %v4909, %v4101
        %v4911 = vadd.f32 %v4910, %v4103
        %v4912 = vadd.f32 %v4911, %v4105
        %v4913 = vadd.f32 %v4912, %v4107
        %v4914 = vadd.f32 %v4913, %v4109
        %v4915 = vadd.f32 %v4914, %v4111
        %v4916 = vadd.f32 %v4915, %v4113
        %v4917 = vadd.f32 %v4916, %v4115
        %v4918 = vadd.f32 %v4917, %v4117
        %v4919 = vadd.f32 %v4918, %v4119
        %v4920 = vadd.f32 %v4919, %v4121
        %v4921 = vadd.f32 %v4920, %v4123
        %v4922 = vadd.f32 %v4921, %v4125
        %v4923 = vadd.f32 %v4922, %v4127
        %v4924 = vadd.f32 %v4923, %v4129
        %v4925 = vadd.f32 %v4924, %v4131
        %v4926 = vadd.f32 %v4925, %v4133
        %v4927 = vadd.f32 %v4926, %v4135
        %v4928 = vadd.f32 %v4927, %v4137
        %v4929 = vadd.f32 %v4928, %v4139
        %v4930 = vrot.slane %v4929, 4
        %v4931 = vadd.f32 %v4929, %v4930
        %v4932 = vrot.slane %v4931, 2
        %v4933 = vadd.f32 %v4931, %v4932
        %v4934 = vrot.slane %v4933, 1
        %v4935 = vadd.f32 %v4933, %v4934
        %v4936 = vadd.f32 %v4046, %v4048
        %v4937 = vadd.f32 %v4936, %v4050
        %v4938 = vadd.f32 %v4937, %v4052
        %v4939 = vadd.f32 %v4938, %v4054
        %v4940 = vadd.f32 %v4939, %v4056
        %v4941 = vadd.f32 %v4940, %v4058
        %v4942 = vadd.f32 %v4941, %v4060
        %v4943 = vadd.f32 %v4942, %v4062
        %v4944 = vadd.f32 %v4943, %v4064
        %v4945 = vadd.f32 %v4944, %v4066
        %v4946 = vadd.f32 %v4945, %v4068
        %v4947 = vadd.f32 %v4946, %v4070
        %v4948 = vadd.f32 %v4947, %v4072
        %v4949 = vadd.f32 %v4948, %v4074
        %v4950 = vadd.f32 %v4949, %v4076
        %v4951 = vadd.f32 %v4950, %v4078
        %v4952 = vadd.f32 %v4951, %v4080
        %v4953 = vadd.f32 %v4952, %v4082
        %v4954 = vadd.f32 %v4953, %v4084
        %v4955 = vadd.f32 %v4954, %v4086
        %v4956 = vadd.f32 %v4955, %v4088
        %v4957 = vadd.f32 %v4956, %v4090
        %v4958 = vadd.f32 %v4957, %v4092
        %v4959 = vadd.f32 %v4958, %v4094
        %v4960 = vadd.f32 %v4959, %v4096
        %v4961 = vadd.f32 %v4960, %v4098
        %v4962 = vadd.f32 %v4961, %v4100
        %v4963 = vadd.f32 %v4962, %v4102
        %v4964 = vadd.f32 %v4963, %v4104
        %v4965 = vadd.f32 %v4964, %v4106
        %v4966 = vadd.f32 %v4965, %v4108
        %v4967 = vadd.f32 %v4966, %v4110
        %v4968 = vadd.f32 %v4967, %v4112
        %v4969 = vadd.f32 %v4968, %v4114
        %v4970 = vadd.f32 %v4969, %v4116
        %v4971 = vadd.f32 %v4970, %v4118
        %v4972 = vadd.f32 %v4971, %v4120
        %v4973 = vadd.f32 %v4972, %v4122
        %v4974 = vadd.f32 %v4973, %v4124
        %v4975 = vadd.f32 %v4974, %v4126
        %v4976 = vadd.f32 %v4975, %v4128
        %v4977 = vadd.f32 %v4976, %v4130
        %v4978 = vadd.f32 %v4977, %v4132
        %v4979 = vadd.f32 %v4978, %v4134
        %v4980 = vadd.f32 %v4979, %v4136
        %v4981 = vadd.f32 %v4980, %v4138
        %v4982 = vadd.f32 %v4981, %v4140
        %v4983 = vrot.slane %v4982, 4
        %v4984 = vadd.f32 %v4982, %v4983
        %v4985 = vrot.slane %v4984, 2
        %v4986 = vadd.f32 %v4984, %v4985
        %v4987 = vrot.slane %v4986, 1
        %v4988 = vadd.f32 %v4986, %v4987
        %vm5005 = vcmask 1041409
        %v5006 = vsel %vm5005, %v4299, %v4193
        %vm5007 = vcmask 1042434
        %v5008 = vsel %vm5007, %v4405, %v5006
        %vm5009 = vcmask 1043459
        %v5010 = vsel %vm5009, %v4511, %v5008
        %vm5011 = vcmask 1044484
        %v5012 = vsel %vm5011, %v4617, %v5010
        %vm5013 = vcmask 1045509
        %v5014 = vsel %vm5013, %v4723, %v5012
        %vm5015 = vcmask 1046534
        %v5016 = vsel %vm5015, %v4829, %v5014
        %vm5017 = vcmask 1047559
        %v5018 = vsel %vm5017, %v4935, %v5016
        %v5019 = vsel %vm5005, %v4352, %v4246
        %v5020 = vsel %vm5007, %v4458, %v5019
        %v5021 = vsel %vm5009, %v4564, %v5020
        %v5022 = vsel %vm5011, %v4670, %v5021
        %v5023 = vsel %vm5013, %v4776, %v5022
        %v5024 = vsel %vm5015, %v4882, %v5023
        %v5025 = vsel %vm5017, %v4988, %v5024
        %v5028 = vadd.f32 %v1451, %v5018
        %v5029 = vadd.f32 %v1452, %v5025
        %5030 = vst [vmem:[#allocation2] sm:$0xff] %v5028
        %5031 = vst [vmem:[#allocation2 + $0x8] sm:$0xff] %v5029
        %v5032 = vld [vmem:[#allocation3] sm:$0xff]
        %v5033 = vmax.f32 %v1067, 1e-09
        %v5034 = vmax.f32 %v1068, 1e-09
        %v5035 = vmax.f32 %v1069, 1e-09
        %v5036 = vmax.f32 %v1070, 1e-09
        %v5037 = vmax.f32 %v1071, 1e-09
        %v5038 = vmax.f32 %v1072, 1e-09
        %v5039 = vmax.f32 %v1073, 1e-09
        %v5040 = vmax.f32 %v1074, 1e-09
        %v5041 = vmax.f32 %v1075, 1e-09
        %v5042 = vmax.f32 %v1076, 1e-09
        %v5043 = vmax.f32 %v1077, 1e-09
        %v5044 = vmax.f32 %v1078, 1e-09
        %v5045 = vmax.f32 %v1079, 1e-09
        %v5046 = vmax.f32 %v1080, 1e-09
        %v5047 = vmax.f32 %v1081, 1e-09
        %v5048 = vmax.f32 %v1082, 1e-09
        %v5049 = vmax.f32 %v1083, 1e-09
        %v5050 = vmax.f32 %v1084, 1e-09
        %v5051 = vmax.f32 %v1085, 1e-09
        %v5052 = vmax.f32 %v1086, 1e-09
        %v5053 = vmax.f32 %v1087, 1e-09
        %v5054 = vmax.f32 %v1088, 1e-09
        %v5055 = vmax.f32 %v1089, 1e-09
        %v5056 = vmax.f32 %v1090, 1e-09
        %v5057 = vmax.f32 %v1091, 1e-09
        %v5058 = vmax.f32 %v1092, 1e-09
        %v5059 = vmax.f32 %v1093, 1e-09
        %v5060 = vmax.f32 %v1094, 1e-09
        %v5061 = vmax.f32 %v1095, 1e-09
        %v5062 = vmax.f32 %v1096, 1e-09
        %v5063 = vmax.f32 %v1097, 1e-09
        %v5064 = vmax.f32 %v1098, 1e-09
        %v5065 = vmax.f32 %v1099, 1e-09
        %v5066 = vmax.f32 %v1100, 1e-09
        %v5067 = vmax.f32 %v1101, 1e-09
        %v5068 = vmax.f32 %v1102, 1e-09
        %v5069 = vmax.f32 %v1103, 1e-09
        %v5070 = vmax.f32 %v1104, 1e-09
        %v5071 = vmax.f32 %v1105, 1e-09
        %v5072 = vmax.f32 %v1106, 1e-09
        %v5073 = vmax.f32 %v1107, 1e-09
        %v5074 = vmax.f32 %v1108, 1e-09
        %v5075 = vmax.f32 %v1109, 1e-09
        %v5076 = vmax.f32 %v1110, 1e-09
        %v5077 = vmax.f32 %v1111, 1e-09
        %v5078 = vmax.f32 %v1112, 1e-09
        %v5079 = vmax.f32 %v1113, 1e-09
        %v5080 = vmax.f32 %v1114, 1e-09
        %v5081 = vmax.f32 %v1115, 1e-09
        %v5082 = vmax.f32 %v1116, 1e-09
        %v5083 = vmax.f32 %v1117, 1e-09
        %v5084 = vmax.f32 %v1118, 1e-09
        %v5085 = vmax.f32 %v1119, 1e-09
        %v5086 = vmax.f32 %v1120, 1e-09
        %v5087 = vmax.f32 %v1121, 1e-09
        %v5088 = vmax.f32 %v1122, 1e-09
        %v5089 = vmax.f32 %v1123, 1e-09
        %v5090 = vmax.f32 %v1124, 1e-09
        %v5091 = vmax.f32 %v1125, 1e-09
        %v5092 = vmax.f32 %v1126, 1e-09
        %v5093 = vmax.f32 %v1127, 1e-09
        %v5094 = vmax.f32 %v1128, 1e-09
        %v5095 = vmax.f32 %v1129, 1e-09
        %v5096 = vmax.f32 %v1130, 1e-09
        %v5097 = vmax.f32 %v1131, 1e-09
        %v5098 = vmax.f32 %v1132, 1e-09
        %v5099 = vmax.f32 %v1133, 1e-09
        %v5100 = vmax.f32 %v1134, 1e-09
        %v5101 = vmax.f32 %v1135, 1e-09
        %v5102 = vmax.f32 %v1136, 1e-09
        %v5103 = vmax.f32 %v1137, 1e-09
        %v5104 = vmax.f32 %v1138, 1e-09
        %v5105 = vmax.f32 %v1139, 1e-09
        %v5106 = vmax.f32 %v1140, 1e-09
        %v5107 = vmax.f32 %v1141, 1e-09
        %v5108 = vmax.f32 %v1142, 1e-09
        %v5109 = vmax.f32 %v1143, 1e-09
        %v5110 = vmax.f32 %v1144, 1e-09
        %v5111 = vmax.f32 %v1145, 1e-09
        %v5112 = vmax.f32 %v1146, 1e-09
        %v5113 = vmax.f32 %v1147, 1e-09
        %v5114 = vmax.f32 %v1148, 1e-09
        %v5115 = vmax.f32 %v1149, 1e-09
        %v5116 = vmax.f32 %v1150, 1e-09
        %v5117 = vmax.f32 %v1151, 1e-09
        %v5118 = vmax.f32 %v1152, 1e-09
        %v5119 = vmax.f32 %v1153, 1e-09
        %v5120 = vmax.f32 %v1154, 1e-09
        %v5121 = vmax.f32 %v1155, 1e-09
        %v5122 = vmax.f32 %v1156, 1e-09
        %v5123 = vmax.f32 %v1157, 1e-09
        %v5124 = vmax.f32 %v1158, 1e-09
        %v5125 = vmax.f32 %v1159, 1e-09
        %v5126 = vmax.f32 %v1160, 1e-09
        %v5127 = vmax.f32 %v1161, 1e-09
        %v5128 = vmax.f32 %v1162, 1e-09
        %v5129 = vmax.f32 %v1163, 1e-09
        %v5130 = vmax.f32 %v1164, 1e-09
        %v5131 = vmax.f32 %v1165, 1e-09
        %v5132 = vmax.f32 %v1166, 1e-09
        %v5133 = vmax.f32 %v1167, 1e-09
        %v5134 = vmax.f32 %v1168, 1e-09
        %v5135 = vmax.f32 %v1169, 1e-09
        %v5136 = vmax.f32 %v1170, 1e-09
        %v5137 = vmax.f32 %v1171, 1e-09
        %v5138 = vmax.f32 %v1172, 1e-09
        %v5139 = vmax.f32 %v1173, 1e-09
        %v5140 = vmax.f32 %v1174, 1e-09
        %v5141 = vmax.f32 %v1175, 1e-09
        %v5142 = vmax.f32 %v1176, 1e-09
        %v5143 = vmax.f32 %v1177, 1e-09
        %v5144 = vmax.f32 %v1178, 1e-09
        %v5145 = vmax.f32 %v1179, 1e-09
        %v5146 = vmax.f32 %v1180, 1e-09
        %v5147 = vmax.f32 %v1181, 1e-09
        %v5148 = vmax.f32 %v1182, 1e-09
        %v5149 = vmax.f32 %v1183, 1e-09
        %v5150 = vmax.f32 %v1184, 1e-09
        %v5151 = vmax.f32 %v1185, 1e-09
        %v5152 = vmax.f32 %v1186, 1e-09
        %v5153 = vmax.f32 %v1187, 1e-09
        %v5154 = vmax.f32 %v1188, 1e-09
        %v5155 = vmax.f32 %v1189, 1e-09
        %v5156 = vmax.f32 %v1190, 1e-09
        %v5157 = vmax.f32 %v1191, 1e-09
        %v5158 = vmax.f32 %v1192, 1e-09
        %v5159 = vmax.f32 %v1193, 1e-09
        %v5160 = vmax.f32 %v1194, 1e-09
        %v5161 = vmax.f32 %v1195, 1e-09
        %v5162 = vmax.f32 %v1196, 1e-09
        %v5163 = vmax.f32 %v1197, 1e-09
        %v5164 = vmax.f32 %v1198, 1e-09
        %v5165 = vmax.f32 %v1199, 1e-09
        %v5166 = vmax.f32 %v1200, 1e-09
        %v5167 = vmax.f32 %v1201, 1e-09
        %v5168 = vmax.f32 %v1202, 1e-09
        %v5169 = vmax.f32 %v1203, 1e-09
        %v5170 = vmax.f32 %v1204, 1e-09
        %v5171 = vmax.f32 %v1205, 1e-09
        %v5172 = vmax.f32 %v1206, 1e-09
        %v5173 = vmax.f32 %v1207, 1e-09
        %v5174 = vmax.f32 %v1208, 1e-09
        %v5175 = vmax.f32 %v1209, 1e-09
        %v5176 = vmax.f32 %v1210, 1e-09
        %v5177 = vmax.f32 %v1211, 1e-09
        %v5178 = vmax.f32 %v1212, 1e-09
        %v5179 = vmax.f32 %v1213, 1e-09
        %v5180 = vmax.f32 %v1214, 1e-09
        %v5181 = vmax.f32 %v1215, 1e-09
        %v5182 = vmax.f32 %v1216, 1e-09
        %v5183 = vmax.f32 %v1217, 1e-09
        %v5184 = vmax.f32 %v1218, 1e-09
        %v5185 = vmax.f32 %v1219, 1e-09
        %v5186 = vmax.f32 %v1220, 1e-09
        %v5187 = vmax.f32 %v1221, 1e-09
        %v5188 = vmax.f32 %v1222, 1e-09
        %v5189 = vmax.f32 %v1223, 1e-09
        %v5190 = vmax.f32 %v1224, 1e-09
        %v5191 = vmax.f32 %v1225, 1e-09
        %v5192 = vmax.f32 %v1226, 1e-09
        %v5193 = vmax.f32 %v1227, 1e-09
        %v5194 = vmax.f32 %v1228, 1e-09
        %v5195 = vmax.f32 %v1229, 1e-09
        %v5196 = vmax.f32 %v1230, 1e-09
        %v5197 = vmax.f32 %v1231, 1e-09
        %v5198 = vmax.f32 %v1232, 1e-09
        %v5199 = vmax.f32 %v1233, 1e-09
        %v5200 = vmax.f32 %v1234, 1e-09
        %v5201 = vmax.f32 %v1235, 1e-09
        %v5202 = vmax.f32 %v1236, 1e-09
        %v5203 = vmax.f32 %v1237, 1e-09
        %v5204 = vmax.f32 %v1238, 1e-09
        %v5205 = vmax.f32 %v1239, 1e-09
        %v5206 = vmax.f32 %v1240, 1e-09
        %v5207 = vmax.f32 %v1241, 1e-09
        %v5208 = vmax.f32 %v1242, 1e-09
        %v5209 = vmax.f32 %v1243, 1e-09
        %v5210 = vmax.f32 %v1244, 1e-09
        %v5211 = vmax.f32 %v1245, 1e-09
        %v5212 = vmax.f32 %v1246, 1e-09
        %v5213 = vmax.f32 %v1247, 1e-09
        %v5214 = vmax.f32 %v1248, 1e-09
        %v5215 = vmax.f32 %v1249, 1e-09
        %v5216 = vmax.f32 %v1250, 1e-09
        %v5217 = vmax.f32 %v1251, 1e-09
        %v5218 = vmax.f32 %v1252, 1e-09
        %v5219 = vmax.f32 %v1253, 1e-09
        %v5220 = vmax.f32 %v1254, 1e-09
        %v5221 = vmax.f32 %v1255, 1e-09
        %v5222 = vmax.f32 %v1256, 1e-09
        %v5223 = vmax.f32 %v1257, 1e-09
        %v5224 = vmax.f32 %v1258, 1e-09
        %v5225 = vmax.f32 %v1259, 1e-09
        %v5226 = vmax.f32 %v1260, 1e-09
        %v5227 = vmax.f32 %v1261, 1e-09
        %v5228 = vmax.f32 %v1262, 1e-09
        %v5229 = vmax.f32 %v1263, 1e-09
        %v5230 = vmax.f32 %v1264, 1e-09
        %v5231 = vmax.f32 %v1265, 1e-09
        %v5232 = vmax.f32 %v1266, 1e-09
        %v5233 = vmax.f32 %v1267, 1e-09
        %v5234 = vmax.f32 %v1268, 1e-09
        %v5235 = vmax.f32 %v1269, 1e-09
        %v5236 = vmax.f32 %v1270, 1e-09
        %v5237 = vmax.f32 %v1271, 1e-09
        %v5238 = vmax.f32 %v1272, 1e-09
        %v5239 = vmax.f32 %v1273, 1e-09
        %v5240 = vmax.f32 %v1274, 1e-09
        %v5241 = vmax.f32 %v1275, 1e-09
        %v5242 = vmax.f32 %v1276, 1e-09
        %v5243 = vmax.f32 %v1277, 1e-09
        %v5244 = vmax.f32 %v1278, 1e-09
        %v5245 = vmax.f32 %v1279, 1e-09
        %v5246 = vmax.f32 %v1280, 1e-09
        %v5247 = vmax.f32 %v1281, 1e-09
        %v5248 = vmax.f32 %v1282, 1e-09
        %v5249 = vmax.f32 %v1283, 1e-09
        %v5250 = vmax.f32 %v1284, 1e-09
        %v5251 = vmax.f32 %v1285, 1e-09
        %v5252 = vmax.f32 %v1286, 1e-09
        %v5253 = vmax.f32 %v1287, 1e-09
        %v5254 = vmax.f32 %v1288, 1e-09
        %v5255 = vmax.f32 %v1289, 1e-09
        %v5256 = vmax.f32 %v1290, 1e-09
        %v5257 = vmax.f32 %v1291, 1e-09
        %v5258 = vmax.f32 %v1292, 1e-09
        %v5259 = vmax.f32 %v1293, 1e-09
        %v5260 = vmax.f32 %v1294, 1e-09
        %v5261 = vmax.f32 %v1295, 1e-09
        %v5262 = vmax.f32 %v1296, 1e-09
        %v5263 = vmax.f32 %v1297, 1e-09
        %v5264 = vmax.f32 %v1298, 1e-09
        %v5265 = vmax.f32 %v1299, 1e-09
        %v5266 = vmax.f32 %v1300, 1e-09
        %v5267 = vmax.f32 %v1301, 1e-09
        %v5268 = vmax.f32 %v1302, 1e-09
        %v5269 = vmax.f32 %v1303, 1e-09
        %v5270 = vmax.f32 %v1304, 1e-09
        %v5271 = vmax.f32 %v1305, 1e-09
        %v5272 = vmax.f32 %v1306, 1e-09
        %v5273 = vmax.f32 %v1307, 1e-09
        %v5274 = vmax.f32 %v1308, 1e-09
        %v5275 = vmax.f32 %v1309, 1e-09
        %v5276 = vmax.f32 %v1310, 1e-09
        %v5277 = vmax.f32 %v1311, 1e-09
        %v5278 = vmax.f32 %v1312, 1e-09
        %v5279 = vmax.f32 %v1313, 1e-09
        %v5280 = vmax.f32 %v1314, 1e-09
        %v5281 = vmax.f32 %v1315, 1e-09
        %v5282 = vmax.f32 %v1316, 1e-09
        %v5283 = vmax.f32 %v1317, 1e-09
        %v5284 = vmax.f32 %v1318, 1e-09
        %v5285 = vmax.f32 %v1319, 1e-09
        %v5286 = vmax.f32 %v1320, 1e-09
        %v5287 = vmax.f32 %v1321, 1e-09
        %v5288 = vmax.f32 %v1322, 1e-09
        %v5289 = vmax.f32 %v1323, 1e-09
        %v5290 = vmax.f32 %v1324, 1e-09
        %v5291 = vmax.f32 %v1325, 1e-09
        %v5292 = vmax.f32 %v1326, 1e-09
        %v5293 = vmax.f32 %v1327, 1e-09
        %v5294 = vmax.f32 %v1328, 1e-09
        %v5295 = vmax.f32 %v1329, 1e-09
        %v5296 = vmax.f32 %v1330, 1e-09
        %v5297 = vmax.f32 %v1331, 1e-09
        %v5298 = vmax.f32 %v1332, 1e-09
        %v5299 = vmax.f32 %v1333, 1e-09
        %v5300 = vmax.f32 %v1334, 1e-09
        %v5301 = vmax.f32 %v1335, 1e-09
        %v5302 = vmax.f32 %v1336, 1e-09
        %v5303 = vmax.f32 %v1337, 1e-09
        %v5304 = vmax.f32 %v1338, 1e-09
        %v5305 = vmax.f32 %v1339, 1e-09
        %v5306 = vmax.f32 %v1340, 1e-09
        %v5307 = vmax.f32 %v1341, 1e-09
        %v5308 = vmax.f32 %v1342, 1e-09
        %v5309 = vmax.f32 %v1343, 1e-09
        %v5310 = vmax.f32 %v1344, 1e-09
        %v5311 = vmax.f32 %v1345, 1e-09
        %v5312 = vmax.f32 %v1346, 1e-09
        %v5313 = vmax.f32 %v1347, 1e-09
        %v5314 = vmax.f32 %v1348, 1e-09
        %v5315 = vmax.f32 %v1349, 1e-09
        %v5316 = vmax.f32 %v1350, 1e-09
        %v5317 = vmax.f32 %v1351, 1e-09
        %v5318 = vmax.f32 %v1352, 1e-09
        %v5319 = vmax.f32 %v1353, 1e-09
        %v5320 = vmax.f32 %v1354, 1e-09
        %v5321 = vmax.f32 %v1355, 1e-09
        %v5322 = vmax.f32 %v1356, 1e-09
        %v5323 = vmax.f32 %v1357, 1e-09
        %v5324 = vmax.f32 %v1358, 1e-09
        %v5325 = vmax.f32 %v1359, 1e-09
        %v5326 = vmax.f32 %v1360, 1e-09
        %v5327 = vmax.f32 %v1361, 1e-09
        %v5328 = vmax.f32 %v1362, 1e-09
        %v5329 = vmax.f32 %v1363, 1e-09
        %v5330 = vmax.f32 %v1364, 1e-09
        %v5331 = vmax.f32 %v1365, 1e-09
        %v5332 = vmax.f32 %v1366, 1e-09
        %v5333 = vmax.f32 %v1367, 1e-09
        %v5334 = vmax.f32 %v1368, 1e-09
        %v5335 = vmax.f32 %v1369, 1e-09
        %v5336 = vmax.f32 %v1370, 1e-09
        %v5337 = vmax.f32 %v1371, 1e-09
        %v5338 = vmax.f32 %v1372, 1e-09
        %v5339 = vmax.f32 %v1373, 1e-09
        %v5340 = vmax.f32 %v1374, 1e-09
        %v5341 = vmax.f32 %v1375, 1e-09
        %v5342 = vmax.f32 %v1376, 1e-09
        %v5343 = vmax.f32 %v1377, 1e-09
        %v5344 = vmax.f32 %v1378, 1e-09
        %v5345 = vmax.f32 %v1379, 1e-09
        %v5346 = vmax.f32 %v1380, 1e-09
        %v5347 = vmax.f32 %v1381, 1e-09
        %v5348 = vmax.f32 %v1382, 1e-09
        %v5349 = vmax.f32 %v1383, 1e-09
        %v5350 = vmax.f32 %v1384, 1e-09
        %v5351 = vmax.f32 %v1385, 1e-09
        %v5352 = vmax.f32 %v1386, 1e-09
        %v5353 = vmax.f32 %v1387, 1e-09
        %v5354 = vmax.f32 %v1388, 1e-09
        %v5355 = vmax.f32 %v1389, 1e-09
        %v5356 = vmax.f32 %v1390, 1e-09
        %v5357 = vmax.f32 %v1391, 1e-09
        %v5358 = vmax.f32 %v1392, 1e-09
        %v5359 = vmax.f32 %v1393, 1e-09
        %v5360 = vmax.f32 %v1394, 1e-09
        %v5361 = vmax.f32 %v1395, 1e-09
        %v5362 = vmax.f32 %v1396, 1e-09
        %v5363 = vmax.f32 %v1397, 1e-09
        %v5364 = vmax.f32 %v1398, 1e-09
        %v5365 = vmax.f32 %v1399, 1e-09
        %v5366 = vmax.f32 %v1400, 1e-09
        %v5367 = vmax.f32 %v1401, 1e-09
        %v5368 = vmax.f32 %v1402, 1e-09
        %v5369 = vmax.f32 %v1403, 1e-09
        %v5370 = vmax.f32 %v1404, 1e-09
        %v5371 = vmax.f32 %v1405, 1e-09
        %v5372 = vmax.f32 %v1406, 1e-09
        %v5373 = vmax.f32 %v1407, 1e-09
        %v5374 = vmax.f32 %v1408, 1e-09
        %v5375 = vmax.f32 %v1409, 1e-09
        %v5376 = vmax.f32 %v1410, 1e-09
        %v5377 = vmax.f32 %v1411, 1e-09
        %v5378 = vmax.f32 %v1412, 1e-09
        %v5379 = vmax.f32 %v1413, 1e-09
        %v5380 = vmax.f32 %v1414, 1e-09
        %v5381 = vmax.f32 %v1415, 1e-09
        %v5382 = vmax.f32 %v1416, 1e-09
        %v5383 = vmax.f32 %v1417, 1e-09
        %v5384 = vmax.f32 %v1418, 1e-09
        %v5385 = vmax.f32 %v1419, 1e-09
        %v5386 = vmax.f32 %v1420, 1e-09
        %v5387 = vmax.f32 %v1421, 1e-09
        %v5388 = vmax.f32 %v1422, 1e-09
        %v5389 = vmax.f32 %v1423, 1e-09
        %v5390 = vmax.f32 %v1424, 1e-09
        %v5391 = vmax.f32 %v1425, 1e-09
        %v5392 = vmax.f32 %v1426, 1e-09
        %v5393 = vmax.f32 %v1427, 1e-09
        %v5394 = vmax.f32 %v1428, 1e-09
        %v5395 = vmax.f32 %v1429, 1e-09
        %v5396 = vmax.f32 %v1430, 1e-09
        %v5397 = vmax.f32 %v1431, 1e-09
        %v5398 = vmax.f32 %v1432, 1e-09
        %v5399 = vmax.f32 %v1433, 1e-09
        %v5400 = vmax.f32 %v1434, 1e-09
        %v5401 = vmax.f32 %v1435, 1e-09
        %v5402 = vmax.f32 %v1436, 1e-09
        %v5403 = vmax.f32 %v1437, 1e-09
        %v5404 = vmax.f32 %v1438, 1e-09
        %v5405 = vmax.f32 %v1439, 1e-09
        %v5406 = vmax.f32 %v1440, 1e-09
        %v5407 = vmax.f32 %v1441, 1e-09
        %v5408 = vmax.f32 %v1442, 1e-09
        %v5409 = vmax.f32 %v1443, 1e-09
        %v5410 = vmax.f32 %v1444, 1e-09
        %v5411 = vmax.f32 %v1445, 1e-09
        %v5412 = vmax.f32 %v1446, 1e-09
        %v5413 = vmax.f32 %v1447, 1e-09
        %v5414 = vmax.f32 %v1448, 1e-09
        %v5415 = vmax.f32 %v1449, 1e-09
        %v5416 = vmax.f32 %v1450, 1e-09
        %vm5417 = vcmask 7168
        %v5418 = vsel %vm5417, %v5033, 0.0
        %v5419 = vsel %vm5417, %v5034, 0.0
        %v5420 = vadd.f32 %v5418, %v5419
        %v5421 = vsel %vm5417, %v5035, 0.0
        %v5422 = vadd.f32 %v5420, %v5421
        %v5423 = vsel %vm5417, %v5036, 0.0
        %v5424 = vadd.f32 %v5422, %v5423
        %v5425 = vsel %vm5417, %v5037, 0.0
        %v5426 = vadd.f32 %v5424, %v5425
        %v5427 = vsel %vm5417, %v5038, 0.0
        %v5428 = vadd.f32 %v5426, %v5427
        %v5429 = vsel %vm5417, %v5039, 0.0
        %v5430 = vadd.f32 %v5428, %v5429
        %v5431 = vsel %vm5417, %v5040, 0.0
        %v5432 = vadd.f32 %v5430, %v5431
        %v5433 = vsel %vm5417, %v5041, 0.0
        %v5434 = vadd.f32 %v5432, %v5433
        %v5435 = vsel %vm5417, %v5042, 0.0
        %v5436 = vadd.f32 %v5434, %v5435
        %v5437 = vsel %vm5417, %v5043, 0.0
        %v5438 = vadd.f32 %v5436, %v5437
        %v5439 = vsel %vm5417, %v5044, 0.0
        %v5440 = vadd.f32 %v5438, %v5439
        %v5441 = vsel %vm5417, %v5045, 0.0
        %v5442 = vadd.f32 %v5440, %v5441
        %v5443 = vsel %vm5417, %v5046, 0.0
        %v5444 = vadd.f32 %v5442, %v5443
        %v5445 = vsel %vm5417, %v5047, 0.0
        %v5446 = vadd.f32 %v5444, %v5445
        %v5447 = vsel %vm5417, %v5048, 0.0
        %v5448 = vadd.f32 %v5446, %v5447
        %v5449 = vsel %vm5417, %v5049, 0.0
        %v5450 = vadd.f32 %v5448, %v5449
        %v5451 = vsel %vm5417, %v5050, 0.0
        %v5452 = vadd.f32 %v5450, %v5451
        %v5453 = vsel %vm5417, %v5051, 0.0
        %v5454 = vadd.f32 %v5452, %v5453
        %v5455 = vsel %vm5417, %v5052, 0.0
        %v5456 = vadd.f32 %v5454, %v5455
        %v5457 = vsel %vm5417, %v5053, 0.0
        %v5458 = vadd.f32 %v5456, %v5457
        %v5459 = vsel %vm5417, %v5054, 0.0
        %v5460 = vadd.f32 %v5458, %v5459
        %v5461 = vsel %vm5417, %v5055, 0.0
        %v5462 = vadd.f32 %v5460, %v5461
        %v5463 = vsel %vm5417, %v5056, 0.0
        %v5464 = vadd.f32 %v5462, %v5463
        %v5465 = vsel %vm5417, %v5057, 0.0
        %v5466 = vadd.f32 %v5464, %v5465
        %v5467 = vsel %vm5417, %v5058, 0.0
        %v5468 = vadd.f32 %v5466, %v5467
        %v5469 = vsel %vm5417, %v5059, 0.0
        %v5470 = vadd.f32 %v5468, %v5469
        %v5471 = vsel %vm5417, %v5060, 0.0
        %v5472 = vadd.f32 %v5470, %v5471
        %v5473 = vsel %vm5417, %v5061, 0.0
        %v5474 = vadd.f32 %v5472, %v5473
        %v5475 = vsel %vm5417, %v5062, 0.0
        %v5476 = vadd.f32 %v5474, %v5475
        %v5477 = vsel %vm5417, %v5063, 0.0
        %v5478 = vadd.f32 %v5476, %v5477
        %v5479 = vsel %vm5417, %v5064, 0.0
        %v5480 = vadd.f32 %v5478, %v5479
        %v5481 = vsel %vm5417, %v5065, 0.0
        %v5482 = vadd.f32 %v5480, %v5481
        %v5483 = vsel %vm5417, %v5066, 0.0
        %v5484 = vadd.f32 %v5482, %v5483
        %v5485 = vsel %vm5417, %v5067, 0.0
        %v5486 = vadd.f32 %v5484, %v5485
        %v5487 = vsel %vm5417, %v5068, 0.0
        %v5488 = vadd.f32 %v5486, %v5487
        %v5489 = vsel %vm5417, %v5069, 0.0
        %v5490 = vadd.f32 %v5488, %v5489
        %v5491 = vsel %vm5417, %v5070, 0.0
        %v5492 = vadd.f32 %v5490, %v5491
        %v5493 = vsel %vm5417, %v5071, 0.0
        %v5494 = vadd.f32 %v5492, %v5493
        %v5495 = vsel %vm5417, %v5072, 0.0
        %v5496 = vadd.f32 %v5494, %v5495
        %v5497 = vsel %vm5417, %v5073, 0.0
        %v5498 = vadd.f32 %v5496, %v5497
        %v5499 = vsel %vm5417, %v5074, 0.0
        %v5500 = vadd.f32 %v5498, %v5499
        %v5501 = vsel %vm5417, %v5075, 0.0
        %v5502 = vadd.f32 %v5500, %v5501
        %v5503 = vsel %vm5417, %v5076, 0.0
        %v5504 = vadd.f32 %v5502, %v5503
        %v5505 = vsel %vm5417, %v5077, 0.0
        %v5506 = vadd.f32 %v5504, %v5505
        %v5507 = vsel %vm5417, %v5078, 0.0
        %v5508 = vadd.f32 %v5506, %v5507
        %v5509 = vsel %vm5417, %v5079, 0.0
        %v5510 = vadd.f32 %v5508, %v5509
        %v5511 = vsel %vm5417, %v5080, 0.0
        %v5512 = vadd.f32 %v5510, %v5511
        %v5513 = vrot.slane %v5512, 4
        %v5514 = vadd.f32 %v5512, %v5513
        %v5515 = vrot.slane %v5514, 2
        %v5516 = vadd.f32 %v5514, %v5515
        %v5517 = vrot.slane %v5516, 1
        %v5518 = vadd.f32 %v5516, %v5517
        %v5519 = vsel %vm5417, %v5081, 0.0
        %v5520 = vsel %vm5417, %v5082, 0.0
        %v5521 = vadd.f32 %v5519, %v5520
        %v5522 = vsel %vm5417, %v5083, 0.0
        %v5523 = vadd.f32 %v5521, %v5522
        %v5524 = vsel %vm5417, %v5084, 0.0
        %v5525 = vadd.f32 %v5523, %v5524
        %v5526 = vsel %vm5417, %v5085, 0.0
        %v5527 = vadd.f32 %v5525, %v5526
        %v5528 = vsel %vm5417, %v5086, 0.0
        %v5529 = vadd.f32 %v5527, %v5528
        %v5530 = vsel %vm5417, %v5087, 0.0
        %v5531 = vadd.f32 %v5529, %v5530
        %v5532 = vsel %vm5417, %v5088, 0.0
        %v5533 = vadd.f32 %v5531, %v5532
        %v5534 = vsel %vm5417, %v5089, 0.0
        %v5535 = vadd.f32 %v5533, %v5534
        %v5536 = vsel %vm5417, %v5090, 0.0
        %v5537 = vadd.f32 %v5535, %v5536
        %v5538 = vsel %vm5417, %v5091, 0.0
        %v5539 = vadd.f32 %v5537, %v5538
        %v5540 = vsel %vm5417, %v5092, 0.0
        %v5541 = vadd.f32 %v5539, %v5540
        %v5542 = vsel %vm5417, %v5093, 0.0
        %v5543 = vadd.f32 %v5541, %v5542
        %v5544 = vsel %vm5417, %v5094, 0.0
        %v5545 = vadd.f32 %v5543, %v5544
        %v5546 = vsel %vm5417, %v5095, 0.0
        %v5547 = vadd.f32 %v5545, %v5546
        %v5548 = vsel %vm5417, %v5096, 0.0
        %v5549 = vadd.f32 %v5547, %v5548
        %v5550 = vsel %vm5417, %v5097, 0.0
        %v5551 = vadd.f32 %v5549, %v5550
        %v5552 = vsel %vm5417, %v5098, 0.0
        %v5553 = vadd.f32 %v5551, %v5552
        %v5554 = vsel %vm5417, %v5099, 0.0
        %v5555 = vadd.f32 %v5553, %v5554
        %v5556 = vsel %vm5417, %v5100, 0.0
        %v5557 = vadd.f32 %v5555, %v5556
        %v5558 = vsel %vm5417, %v5101, 0.0
        %v5559 = vadd.f32 %v5557, %v5558
        %v5560 = vsel %vm5417, %v5102, 0.0
        %v5561 = vadd.f32 %v5559, %v5560
        %v5562 = vsel %vm5417, %v5103, 0.0
        %v5563 = vadd.f32 %v5561, %v5562
        %v5564 = vsel %vm5417, %v5104, 0.0
        %v5565 = vadd.f32 %v5563, %v5564
        %v5566 = vsel %vm5417, %v5105, 0.0
        %v5567 = vadd.f32 %v5565, %v5566
        %v5568 = vsel %vm5417, %v5106, 0.0
        %v5569 = vadd.f32 %v5567, %v5568
        %v5570 = vsel %vm5417, %v5107, 0.0
        %v5571 = vadd.f32 %v5569, %v5570
        %v5572 = vsel %vm5417, %v5108, 0.0
        %v5573 = vadd.f32 %v5571, %v5572
        %v5574 = vsel %vm5417, %v5109, 0.0
        %v5575 = vadd.f32 %v5573, %v5574
        %v5576 = vsel %vm5417, %v5110, 0.0
        %v5577 = vadd.f32 %v5575, %v5576
        %v5578 = vsel %vm5417, %v5111, 0.0
        %v5579 = vadd.f32 %v5577, %v5578
        %v5580 = vsel %vm5417, %v5112, 0.0
        %v5581 = vadd.f32 %v5579, %v5580
        %v5582 = vsel %vm5417, %v5113, 0.0
        %v5583 = vadd.f32 %v5581, %v5582
        %v5584 = vsel %vm5417, %v5114, 0.0
        %v5585 = vadd.f32 %v5583, %v5584
        %v5586 = vsel %vm5417, %v5115, 0.0
        %v5587 = vadd.f32 %v5585, %v5586
        %v5588 = vsel %vm5417, %v5116, 0.0
        %v5589 = vadd.f32 %v5587, %v5588
        %v5590 = vsel %vm5417, %v5117, 0.0
        %v5591 = vadd.f32 %v5589, %v5590
        %v5592 = vsel %vm5417, %v5118, 0.0
        %v5593 = vadd.f32 %v5591, %v5592
        %v5594 = vsel %vm5417, %v5119, 0.0
        %v5595 = vadd.f32 %v5593, %v5594
        %v5596 = vsel %vm5417, %v5120, 0.0
        %v5597 = vadd.f32 %v5595, %v5596
        %v5598 = vsel %vm5417, %v5121, 0.0
        %v5599 = vadd.f32 %v5597, %v5598
        %v5600 = vsel %vm5417, %v5122, 0.0
        %v5601 = vadd.f32 %v5599, %v5600
        %v5602 = vsel %vm5417, %v5123, 0.0
        %v5603 = vadd.f32 %v5601, %v5602
        %v5604 = vsel %vm5417, %v5124, 0.0
        %v5605 = vadd.f32 %v5603, %v5604
        %v5606 = vsel %vm5417, %v5125, 0.0
        %v5607 = vadd.f32 %v5605, %v5606
        %v5608 = vsel %vm5417, %v5126, 0.0
        %v5609 = vadd.f32 %v5607, %v5608
        %v5610 = vsel %vm5417, %v5127, 0.0
        %v5611 = vadd.f32 %v5609, %v5610
        %v5612 = vsel %vm5417, %v5128, 0.0
        %v5613 = vadd.f32 %v5611, %v5612
        %v5614 = vrot.slane %v5613, 4
        %v5615 = vadd.f32 %v5613, %v5614
        %v5616 = vrot.slane %v5615, 2
        %v5617 = vadd.f32 %v5615, %v5616
        %v5618 = vrot.slane %v5617, 1
        %v5619 = vadd.f32 %v5617, %v5618
        %v5620 = vsel %vm5417, %v5129, 0.0
        %v5621 = vsel %vm5417, %v5130, 0.0
        %v5622 = vadd.f32 %v5620, %v5621
        %v5623 = vsel %vm5417, %v5131, 0.0
        %v5624 = vadd.f32 %v5622, %v5623
        %v5625 = vsel %vm5417, %v5132, 0.0
        %v5626 = vadd.f32 %v5624, %v5625
        %v5627 = vsel %vm5417, %v5133, 0.0
        %v5628 = vadd.f32 %v5626, %v5627
        %v5629 = vsel %vm5417, %v5134, 0.0
        %v5630 = vadd.f32 %v5628, %v5629
        %v5631 = vsel %vm5417, %v5135, 0.0
        %v5632 = vadd.f32 %v5630, %v5631
        %v5633 = vsel %vm5417, %v5136, 0.0
        %v5634 = vadd.f32 %v5632, %v5633
        %v5635 = vsel %vm5417, %v5137, 0.0
        %v5636 = vadd.f32 %v5634, %v5635
        %v5637 = vsel %vm5417, %v5138, 0.0
        %v5638 = vadd.f32 %v5636, %v5637
        %v5639 = vsel %vm5417, %v5139, 0.0
        %v5640 = vadd.f32 %v5638, %v5639
        %v5641 = vsel %vm5417, %v5140, 0.0
        %v5642 = vadd.f32 %v5640, %v5641
        %v5643 = vsel %vm5417, %v5141, 0.0
        %v5644 = vadd.f32 %v5642, %v5643
        %v5645 = vsel %vm5417, %v5142, 0.0
        %v5646 = vadd.f32 %v5644, %v5645
        %v5647 = vsel %vm5417, %v5143, 0.0
        %v5648 = vadd.f32 %v5646, %v5647
        %v5649 = vsel %vm5417, %v5144, 0.0
        %v5650 = vadd.f32 %v5648, %v5649
        %v5651 = vsel %vm5417, %v5145, 0.0
        %v5652 = vadd.f32 %v5650, %v5651
        %v5653 = vsel %vm5417, %v5146, 0.0
        %v5654 = vadd.f32 %v5652, %v5653
        %v5655 = vsel %vm5417, %v5147, 0.0
        %v5656 = vadd.f32 %v5654, %v5655
        %v5657 = vsel %vm5417, %v5148, 0.0
        %v5658 = vadd.f32 %v5656, %v5657
        %v5659 = vsel %vm5417, %v5149, 0.0
        %v5660 = vadd.f32 %v5658, %v5659
        %v5661 = vsel %vm5417, %v5150, 0.0
        %v5662 = vadd.f32 %v5660, %v5661
        %v5663 = vsel %vm5417, %v5151, 0.0
        %v5664 = vadd.f32 %v5662, %v5663
        %v5665 = vsel %vm5417, %v5152, 0.0
        %v5666 = vadd.f32 %v5664, %v5665
        %v5667 = vsel %vm5417, %v5153, 0.0
        %v5668 = vadd.f32 %v5666, %v5667
        %v5669 = vsel %vm5417, %v5154, 0.0
        %v5670 = vadd.f32 %v5668, %v5669
        %v5671 = vsel %vm5417, %v5155, 0.0
        %v5672 = vadd.f32 %v5670, %v5671
        %v5673 = vsel %vm5417, %v5156, 0.0
        %v5674 = vadd.f32 %v5672, %v5673
        %v5675 = vsel %vm5417, %v5157, 0.0
        %v5676 = vadd.f32 %v5674, %v5675
        %v5677 = vsel %vm5417, %v5158, 0.0
        %v5678 = vadd.f32 %v5676, %v5677
        %v5679 = vsel %vm5417, %v5159, 0.0
        %v5680 = vadd.f32 %v5678, %v5679
        %v5681 = vsel %vm5417, %v5160, 0.0
        %v5682 = vadd.f32 %v5680, %v5681
        %v5683 = vsel %vm5417, %v5161, 0.0
        %v5684 = vadd.f32 %v5682, %v5683
        %v5685 = vsel %vm5417, %v5162, 0.0
        %v5686 = vadd.f32 %v5684, %v5685
        %v5687 = vsel %vm5417, %v5163, 0.0
        %v5688 = vadd.f32 %v5686, %v5687
        %v5689 = vsel %vm5417, %v5164, 0.0
        %v5690 = vadd.f32 %v5688, %v5689
        %v5691 = vsel %vm5417, %v5165, 0.0
        %v5692 = vadd.f32 %v5690, %v5691
        %v5693 = vsel %vm5417, %v5166, 0.0
        %v5694 = vadd.f32 %v5692, %v5693
        %v5695 = vsel %vm5417, %v5167, 0.0
        %v5696 = vadd.f32 %v5694, %v5695
        %v5697 = vsel %vm5417, %v5168, 0.0
        %v5698 = vadd.f32 %v5696, %v5697
        %v5699 = vsel %vm5417, %v5169, 0.0
        %v5700 = vadd.f32 %v5698, %v5699
        %v5701 = vsel %vm5417, %v5170, 0.0
        %v5702 = vadd.f32 %v5700, %v5701
        %v5703 = vsel %vm5417, %v5171, 0.0
        %v5704 = vadd.f32 %v5702, %v5703
        %v5705 = vsel %vm5417, %v5172, 0.0
        %v5706 = vadd.f32 %v5704, %v5705
        %v5707 = vsel %vm5417, %v5173, 0.0
        %v5708 = vadd.f32 %v5706, %v5707
        %v5709 = vsel %vm5417, %v5174, 0.0
        %v5710 = vadd.f32 %v5708, %v5709
        %v5711 = vsel %vm5417, %v5175, 0.0
        %v5712 = vadd.f32 %v5710, %v5711
        %v5713 = vsel %vm5417, %v5176, 0.0
        %v5714 = vadd.f32 %v5712, %v5713
        %v5715 = vrot.slane %v5714, 4
        %v5716 = vadd.f32 %v5714, %v5715
        %v5717 = vrot.slane %v5716, 2
        %v5718 = vadd.f32 %v5716, %v5717
        %v5719 = vrot.slane %v5718, 1
        %v5720 = vadd.f32 %v5718, %v5719
        %v5721 = vsel %vm5417, %v5177, 0.0
        %v5722 = vsel %vm5417, %v5178, 0.0
        %v5723 = vadd.f32 %v5721, %v5722
        %v5724 = vsel %vm5417, %v5179, 0.0
        %v5725 = vadd.f32 %v5723, %v5724
        %v5726 = vsel %vm5417, %v5180, 0.0
        %v5727 = vadd.f32 %v5725, %v5726
        %v5728 = vsel %vm5417, %v5181, 0.0
        %v5729 = vadd.f32 %v5727, %v5728
        %v5730 = vsel %vm5417, %v5182, 0.0
        %v5731 = vadd.f32 %v5729, %v5730
        %v5732 = vsel %vm5417, %v5183, 0.0
        %v5733 = vadd.f32 %v5731, %v5732
        %v5734 = vsel %vm5417, %v5184, 0.0
        %v5735 = vadd.f32 %v5733, %v5734
        %v5736 = vsel %vm5417, %v5185, 0.0
        %v5737 = vadd.f32 %v5735, %v5736
        %v5738 = vsel %vm5417, %v5186, 0.0
        %v5739 = vadd.f32 %v5737, %v5738
        %v5740 = vsel %vm5417, %v5187, 0.0
        %v5741 = vadd.f32 %v5739, %v5740
        %v5742 = vsel %vm5417, %v5188, 0.0
        %v5743 = vadd.f32 %v5741, %v5742
        %v5744 = vsel %vm5417, %v5189, 0.0
        %v5745 = vadd.f32 %v5743, %v5744
        %v5746 = vsel %vm5417, %v5190, 0.0
        %v5747 = vadd.f32 %v5745, %v5746
        %v5748 = vsel %vm5417, %v5191, 0.0
        %v5749 = vadd.f32 %v5747, %v5748
        %v5750 = vsel %vm5417, %v5192, 0.0
        %v5751 = vadd.f32 %v5749, %v5750
        %v5752 = vsel %vm5417, %v5193, 0.0
        %v5753 = vadd.f32 %v5751, %v5752
        %v5754 = vsel %vm5417, %v5194, 0.0
        %v5755 = vadd.f32 %v5753, %v5754
        %v5756 = vsel %vm5417, %v5195, 0.0
        %v5757 = vadd.f32 %v5755, %v5756
        %v5758 = vsel %vm5417, %v5196, 0.0
        %v5759 = vadd.f32 %v5757, %v5758
        %v5760 = vsel %vm5417, %v5197, 0.0
        %v5761 = vadd.f32 %v5759, %v5760
        %v5762 = vsel %vm5417, %v5198, 0.0
        %v5763 = vadd.f32 %v5761, %v5762
        %v5764 = vsel %vm5417, %v5199, 0.0
        %v5765 = vadd.f32 %v5763, %v5764
        %v5766 = vsel %vm5417, %v5200, 0.0
        %v5767 = vadd.f32 %v5765, %v5766
        %v5768 = vsel %vm5417, %v5201, 0.0
        %v5769 = vadd.f32 %v5767, %v5768
        %v5770 = vsel %vm5417, %v5202, 0.0
        %v5771 = vadd.f32 %v5769, %v5770
        %v5772 = vsel %vm5417, %v5203, 0.0
        %v5773 = vadd.f32 %v5771, %v5772
        %v5774 = vsel %vm5417, %v5204, 0.0
        %v5775 = vadd.f32 %v5773, %v5774
        %v5776 = vsel %vm5417, %v5205, 0.0
        %v5777 = vadd.f32 %v5775, %v5776
        %v5778 = vsel %vm5417, %v5206, 0.0
        %v5779 = vadd.f32 %v5777, %v5778
        %v5780 = vsel %vm5417, %v5207, 0.0
        %v5781 = vadd.f32 %v5779, %v5780
        %v5782 = vsel %vm5417, %v5208, 0.0
        %v5783 = vadd.f32 %v5781, %v5782
        %v5784 = vsel %vm5417, %v5209, 0.0
        %v5785 = vadd.f32 %v5783, %v5784
        %v5786 = vsel %vm5417, %v5210, 0.0
        %v5787 = vadd.f32 %v5785, %v5786
        %v5788 = vsel %vm5417, %v5211, 0.0
        %v5789 = vadd.f32 %v5787, %v5788
        %v5790 = vsel %vm5417, %v5212, 0.0
        %v5791 = vadd.f32 %v5789, %v5790
        %v5792 = vsel %vm5417, %v5213, 0.0
        %v5793 = vadd.f32 %v5791, %v5792
        %v5794 = vsel %vm5417, %v5214, 0.0
        %v5795 = vadd.f32 %v5793, %v5794
        %v5796 = vsel %vm5417, %v5215, 0.0
        %v5797 = vadd.f32 %v5795, %v5796
        %v5798 = vsel %vm5417, %v5216, 0.0
        %v5799 = vadd.f32 %v5797, %v5798
        %v5800 = vsel %vm5417, %v5217, 0.0
        %v5801 = vadd.f32 %v5799, %v5800
        %v5802 = vsel %vm5417, %v5218, 0.0
        %v5803 = vadd.f32 %v5801, %v5802
        %v5804 = vsel %vm5417, %v5219, 0.0
        %v5805 = vadd.f32 %v5803, %v5804
        %v5806 = vsel %vm5417, %v5220, 0.0
        %v5807 = vadd.f32 %v5805, %v5806
        %v5808 = vsel %vm5417, %v5221, 0.0
        %v5809 = vadd.f32 %v5807, %v5808
        %v5810 = vsel %vm5417, %v5222, 0.0
        %v5811 = vadd.f32 %v5809, %v5810
        %v5812 = vsel %vm5417, %v5223, 0.0
        %v5813 = vadd.f32 %v5811, %v5812
        %v5814 = vsel %vm5417, %v5224, 0.0
        %v5815 = vadd.f32 %v5813, %v5814
        %v5816 = vrot.slane %v5815, 4
        %v5817 = vadd.f32 %v5815, %v5816
        %v5818 = vrot.slane %v5817, 2
        %v5819 = vadd.f32 %v5817, %v5818
        %v5820 = vrot.slane %v5819, 1
        %v5821 = vadd.f32 %v5819, %v5820
        %v5822 = vsel %vm5417, %v5225, 0.0
        %v5823 = vsel %vm5417, %v5226, 0.0
        %v5824 = vadd.f32 %v5822, %v5823
        %v5825 = vsel %vm5417, %v5227, 0.0
        %v5826 = vadd.f32 %v5824, %v5825
        %v5827 = vsel %vm5417, %v5228, 0.0
        %v5828 = vadd.f32 %v5826, %v5827
        %v5829 = vsel %vm5417, %v5229, 0.0
        %v5830 = vadd.f32 %v5828, %v5829
        %v5831 = vsel %vm5417, %v5230, 0.0
        %v5832 = vadd.f32 %v5830, %v5831
        %v5833 = vsel %vm5417, %v5231, 0.0
        %v5834 = vadd.f32 %v5832, %v5833
        %v5835 = vsel %vm5417, %v5232, 0.0
        %v5836 = vadd.f32 %v5834, %v5835
        %v5837 = vsel %vm5417, %v5233, 0.0
        %v5838 = vadd.f32 %v5836, %v5837
        %v5839 = vsel %vm5417, %v5234, 0.0
        %v5840 = vadd.f32 %v5838, %v5839
        %v5841 = vsel %vm5417, %v5235, 0.0
        %v5842 = vadd.f32 %v5840, %v5841
        %v5843 = vsel %vm5417, %v5236, 0.0
        %v5844 = vadd.f32 %v5842, %v5843
        %v5845 = vsel %vm5417, %v5237, 0.0
        %v5846 = vadd.f32 %v5844, %v5845
        %v5847 = vsel %vm5417, %v5238, 0.0
        %v5848 = vadd.f32 %v5846, %v5847
        %v5849 = vsel %vm5417, %v5239, 0.0
        %v5850 = vadd.f32 %v5848, %v5849
        %v5851 = vsel %vm5417, %v5240, 0.0
        %v5852 = vadd.f32 %v5850, %v5851
        %v5853 = vsel %vm5417, %v5241, 0.0
        %v5854 = vadd.f32 %v5852, %v5853
        %v5855 = vsel %vm5417, %v5242, 0.0
        %v5856 = vadd.f32 %v5854, %v5855
        %v5857 = vsel %vm5417, %v5243, 0.0
        %v5858 = vadd.f32 %v5856, %v5857
        %v5859 = vsel %vm5417, %v5244, 0.0
        %v5860 = vadd.f32 %v5858, %v5859
        %v5861 = vsel %vm5417, %v5245, 0.0
        %v5862 = vadd.f32 %v5860, %v5861
        %v5863 = vsel %vm5417, %v5246, 0.0
        %v5864 = vadd.f32 %v5862, %v5863
        %v5865 = vsel %vm5417, %v5247, 0.0
        %v5866 = vadd.f32 %v5864, %v5865
        %v5867 = vsel %vm5417, %v5248, 0.0
        %v5868 = vadd.f32 %v5866, %v5867
        %v5869 = vsel %vm5417, %v5249, 0.0
        %v5870 = vadd.f32 %v5868, %v5869
        %v5871 = vsel %vm5417, %v5250, 0.0
        %v5872 = vadd.f32 %v5870, %v5871
        %v5873 = vsel %vm5417, %v5251, 0.0
        %v5874 = vadd.f32 %v5872, %v5873
        %v5875 = vsel %vm5417, %v5252, 0.0
        %v5876 = vadd.f32 %v5874, %v5875
        %v5877 = vsel %vm5417, %v5253, 0.0
        %v5878 = vadd.f32 %v5876, %v5877
        %v5879 = vsel %vm5417, %v5254, 0.0
        %v5880 = vadd.f32 %v5878, %v5879
        %v5881 = vsel %vm5417, %v5255, 0.0
        %v5882 = vadd.f32 %v5880, %v5881
        %v5883 = vsel %vm5417, %v5256, 0.0
        %v5884 = vadd.f32 %v5882, %v5883
        %v5885 = vsel %vm5417, %v5257, 0.0
        %v5886 = vadd.f32 %v5884, %v5885
        %v5887 = vsel %vm5417, %v5258, 0.0
        %v5888 = vadd.f32 %v5886, %v5887
        %v5889 = vsel %vm5417, %v5259, 0.0
        %v5890 = vadd.f32 %v5888, %v5889
        %v5891 = vsel %vm5417, %v5260, 0.0
        %v5892 = vadd.f32 %v5890, %v5891
        %v5893 = vsel %vm5417, %v5261, 0.0
        %v5894 = vadd.f32 %v5892, %v5893
        %v5895 = vsel %vm5417, %v5262, 0.0
        %v5896 = vadd.f32 %v5894, %v5895
        %v5897 = vsel %vm5417, %v5263, 0.0
        %v5898 = vadd.f32 %v5896, %v5897
        %v5899 = vsel %vm5417, %v5264, 0.0
        %v5900 = vadd.f32 %v5898, %v5899
        %v5901 = vsel %vm5417, %v5265, 0.0
        %v5902 = vadd.f32 %v5900, %v5901
        %v5903 = vsel %vm5417, %v5266, 0.0
        %v5904 = vadd.f32 %v5902, %v5903
        %v5905 = vsel %vm5417, %v5267, 0.0
        %v5906 = vadd.f32 %v5904, %v5905
        %v5907 = vsel %vm5417, %v5268, 0.0
        %v5908 = vadd.f32 %v5906, %v5907
        %v5909 = vsel %vm5417, %v5269, 0.0
        %v5910 = vadd.f32 %v5908, %v5909
        %v5911 = vsel %vm5417, %v5270, 0.0
        %v5912 = vadd.f32 %v5910, %v5911
        %v5913 = vsel %vm5417, %v5271, 0.0
        %v5914 = vadd.f32 %v5912, %v5913
        %v5915 = vsel %vm5417, %v5272, 0.0
        %v5916 = vadd.f32 %v5914, %v5915
        %v5917 = vrot.slane %v5916, 4
        %v5918 = vadd.f32 %v5916, %v5917
        %v5919 = vrot.slane %v5918, 2
        %v5920 = vadd.f32 %v5918, %v5919
        %v5921 = vrot.slane %v5920, 1
        %v5922 = vadd.f32 %v5920, %v5921
        %v5923 = vsel %vm5417, %v5273, 0.0
        %v5924 = vsel %vm5417, %v5274, 0.0
        %v5925 = vadd.f32 %v5923, %v5924
        %v5926 = vsel %vm5417, %v5275, 0.0
        %v5927 = vadd.f32 %v5925, %v5926
        %v5928 = vsel %vm5417, %v5276, 0.0
        %v5929 = vadd.f32 %v5927, %v5928
        %v5930 = vsel %vm5417, %v5277, 0.0
        %v5931 = vadd.f32 %v5929, %v5930
        %v5932 = vsel %vm5417, %v5278, 0.0
        %v5933 = vadd.f32 %v5931, %v5932
        %v5934 = vsel %vm5417, %v5279, 0.0
        %v5935 = vadd.f32 %v5933, %v5934
        %v5936 = vsel %vm5417, %v5280, 0.0
        %v5937 = vadd.f32 %v5935, %v5936
        %v5938 = vsel %vm5417, %v5281, 0.0
        %v5939 = vadd.f32 %v5937, %v5938
        %v5940 = vsel %vm5417, %v5282, 0.0
        %v5941 = vadd.f32 %v5939, %v5940
        %v5942 = vsel %vm5417, %v5283, 0.0
        %v5943 = vadd.f32 %v5941, %v5942
        %v5944 = vsel %vm5417, %v5284, 0.0
        %v5945 = vadd.f32 %v5943, %v5944
        %v5946 = vsel %vm5417, %v5285, 0.0
        %v5947 = vadd.f32 %v5945, %v5946
        %v5948 = vsel %vm5417, %v5286, 0.0
        %v5949 = vadd.f32 %v5947, %v5948
        %v5950 = vsel %vm5417, %v5287, 0.0
        %v5951 = vadd.f32 %v5949, %v5950
        %v5952 = vsel %vm5417, %v5288, 0.0
        %v5953 = vadd.f32 %v5951, %v5952
        %v5954 = vsel %vm5417, %v5289, 0.0
        %v5955 = vadd.f32 %v5953, %v5954
        %v5956 = vsel %vm5417, %v5290, 0.0
        %v5957 = vadd.f32 %v5955, %v5956
        %v5958 = vsel %vm5417, %v5291, 0.0
        %v5959 = vadd.f32 %v5957, %v5958
        %v5960 = vsel %vm5417, %v5292, 0.0
        %v5961 = vadd.f32 %v5959, %v5960
        %v5962 = vsel %vm5417, %v5293, 0.0
        %v5963 = vadd.f32 %v5961, %v5962
        %v5964 = vsel %vm5417, %v5294, 0.0
        %v5965 = vadd.f32 %v5963, %v5964
        %v5966 = vsel %vm5417, %v5295, 0.0
        %v5967 = vadd.f32 %v5965, %v5966
        %v5968 = vsel %vm5417, %v5296, 0.0
        %v5969 = vadd.f32 %v5967, %v5968
        %v5970 = vsel %vm5417, %v5297, 0.0
        %v5971 = vadd.f32 %v5969, %v5970
        %v5972 = vsel %vm5417, %v5298, 0.0
        %v5973 = vadd.f32 %v5971, %v5972
        %v5974 = vsel %vm5417, %v5299, 0.0
        %v5975 = vadd.f32 %v5973, %v5974
        %v5976 = vsel %vm5417, %v5300, 0.0
        %v5977 = vadd.f32 %v5975, %v5976
        %v5978 = vsel %vm5417, %v5301, 0.0
        %v5979 = vadd.f32 %v5977, %v5978
        %v5980 = vsel %vm5417, %v5302, 0.0
        %v5981 = vadd.f32 %v5979, %v5980
        %v5982 = vsel %vm5417, %v5303, 0.0
        %v5983 = vadd.f32 %v5981, %v5982
        %v5984 = vsel %vm5417, %v5304, 0.0
        %v5985 = vadd.f32 %v5983, %v5984
        %v5986 = vsel %vm5417, %v5305, 0.0
        %v5987 = vadd.f32 %v5985, %v5986
        %v5988 = vsel %vm5417, %v5306, 0.0
        %v5989 = vadd.f32 %v5987, %v5988
        %v5990 = vsel %vm5417, %v5307, 0.0
        %v5991 = vadd.f32 %v5989, %v5990
        %v5992 = vsel %vm5417, %v5308, 0.0
        %v5993 = vadd.f32 %v5991, %v5992
        %v5994 = vsel %vm5417, %v5309, 0.0
        %v5995 = vadd.f32 %v5993, %v5994
        %v5996 = vsel %vm5417, %v5310, 0.0
        %v5997 = vadd.f32 %v5995, %v5996
        %v5998 = vsel %vm5417, %v5311, 0.0
        %v5999 = vadd.f32 %v5997, %v5998
        %v6000 = vsel %vm5417, %v5312, 0.0
        %v6001 = vadd.f32 %v5999, %v6000
        %v6002 = vsel %vm5417, %v5313, 0.0
        %v6003 = vadd.f32 %v6001, %v6002
        %v6004 = vsel %vm5417, %v5314, 0.0
        %v6005 = vadd.f32 %v6003, %v6004
        %v6006 = vsel %vm5417, %v5315, 0.0
        %v6007 = vadd.f32 %v6005, %v6006
        %v6008 = vsel %vm5417, %v5316, 0.0
        %v6009 = vadd.f32 %v6007, %v6008
        %v6010 = vsel %vm5417, %v5317, 0.0
        %v6011 = vadd.f32 %v6009, %v6010
        %v6012 = vsel %vm5417, %v5318, 0.0
        %v6013 = vadd.f32 %v6011, %v6012
        %v6014 = vsel %vm5417, %v5319, 0.0
        %v6015 = vadd.f32 %v6013, %v6014
        %v6016 = vsel %vm5417, %v5320, 0.0
        %v6017 = vadd.f32 %v6015, %v6016
        %v6018 = vrot.slane %v6017, 4
        %v6019 = vadd.f32 %v6017, %v6018
        %v6020 = vrot.slane %v6019, 2
        %v6021 = vadd.f32 %v6019, %v6020
        %v6022 = vrot.slane %v6021, 1
        %v6023 = vadd.f32 %v6021, %v6022
        %v6024 = vsel %vm5417, %v5321, 0.0
        %v6025 = vsel %vm5417, %v5322, 0.0
        %v6026 = vadd.f32 %v6024, %v6025
        %v6027 = vsel %vm5417, %v5323, 0.0
        %v6028 = vadd.f32 %v6026, %v6027
        %v6029 = vsel %vm5417, %v5324, 0.0
        %v6030 = vadd.f32 %v6028, %v6029
        %v6031 = vsel %vm5417, %v5325, 0.0
        %v6032 = vadd.f32 %v6030, %v6031
        %v6033 = vsel %vm5417, %v5326, 0.0
        %v6034 = vadd.f32 %v6032, %v6033
        %v6035 = vsel %vm5417, %v5327, 0.0
        %v6036 = vadd.f32 %v6034, %v6035
        %v6037 = vsel %vm5417, %v5328, 0.0
        %v6038 = vadd.f32 %v6036, %v6037
        %v6039 = vsel %vm5417, %v5329, 0.0
        %v6040 = vadd.f32 %v6038, %v6039
        %v6041 = vsel %vm5417, %v5330, 0.0
        %v6042 = vadd.f32 %v6040, %v6041
        %v6043 = vsel %vm5417, %v5331, 0.0
        %v6044 = vadd.f32 %v6042, %v6043
        %v6045 = vsel %vm5417, %v5332, 0.0
        %v6046 = vadd.f32 %v6044, %v6045
        %v6047 = vsel %vm5417, %v5333, 0.0
        %v6048 = vadd.f32 %v6046, %v6047
        %v6049 = vsel %vm5417, %v5334, 0.0
        %v6050 = vadd.f32 %v6048, %v6049
        %v6051 = vsel %vm5417, %v5335, 0.0
        %v6052 = vadd.f32 %v6050, %v6051
        %v6053 = vsel %vm5417, %v5336, 0.0
        %v6054 = vadd.f32 %v6052, %v6053
        %v6055 = vsel %vm5417, %v5337, 0.0
        %v6056 = vadd.f32 %v6054, %v6055
        %v6057 = vsel %vm5417, %v5338, 0.0
        %v6058 = vadd.f32 %v6056, %v6057
        %v6059 = vsel %vm5417, %v5339, 0.0
        %v6060 = vadd.f32 %v6058, %v6059
        %v6061 = vsel %vm5417, %v5340, 0.0
        %v6062 = vadd.f32 %v6060, %v6061
        %v6063 = vsel %vm5417, %v5341, 0.0
        %v6064 = vadd.f32 %v6062, %v6063
        %v6065 = vsel %vm5417, %v5342, 0.0
        %v6066 = vadd.f32 %v6064, %v6065
        %v6067 = vsel %vm5417, %v5343, 0.0
        %v6068 = vadd.f32 %v6066, %v6067
        %v6069 = vsel %vm5417, %v5344, 0.0
        %v6070 = vadd.f32 %v6068, %v6069
        %v6071 = vsel %vm5417, %v5345, 0.0
        %v6072 = vadd.f32 %v6070, %v6071
        %v6073 = vsel %vm5417, %v5346, 0.0
        %v6074 = vadd.f32 %v6072, %v6073
        %v6075 = vsel %vm5417, %v5347, 0.0
        %v6076 = vadd.f32 %v6074, %v6075
        %v6077 = vsel %vm5417, %v5348, 0.0
        %v6078 = vadd.f32 %v6076, %v6077
        %v6079 = vsel %vm5417, %v5349, 0.0
        %v6080 = vadd.f32 %v6078, %v6079
        %v6081 = vsel %vm5417, %v5350, 0.0
        %v6082 = vadd.f32 %v6080, %v6081
        %v6083 = vsel %vm5417, %v5351, 0.0
        %v6084 = vadd.f32 %v6082, %v6083
        %v6085 = vsel %vm5417, %v5352, 0.0
        %v6086 = vadd.f32 %v6084, %v6085
        %v6087 = vsel %vm5417, %v5353, 0.0
        %v6088 = vadd.f32 %v6086, %v6087
        %v6089 = vsel %vm5417, %v5354, 0.0
        %v6090 = vadd.f32 %v6088, %v6089
        %v6091 = vsel %vm5417, %v5355, 0.0
        %v6092 = vadd.f32 %v6090, %v6091
        %v6093 = vsel %vm5417, %v5356, 0.0
        %v6094 = vadd.f32 %v6092, %v6093
        %v6095 = vsel %vm5417, %v5357, 0.0
        %v6096 = vadd.f32 %v6094, %v6095
        %v6097 = vsel %vm5417, %v5358, 0.0
        %v6098 = vadd.f32 %v6096, %v6097
        %v6099 = vsel %vm5417, %v5359, 0.0
        %v6100 = vadd.f32 %v6098, %v6099
        %v6101 = vsel %vm5417, %v5360, 0.0
        %v6102 = vadd.f32 %v6100, %v6101
        %v6103 = vsel %vm5417, %v5361, 0.0
        %v6104 = vadd.f32 %v6102, %v6103
        %v6105 = vsel %vm5417, %v5362, 0.0
        %v6106 = vadd.f32 %v6104, %v6105
        %v6107 = vsel %vm5417, %v5363, 0.0
        %v6108 = vadd.f32 %v6106, %v6107
        %v6109 = vsel %vm5417, %v5364, 0.0
        %v6110 = vadd.f32 %v6108, %v6109
        %v6111 = vsel %vm5417, %v5365, 0.0
        %v6112 = vadd.f32 %v6110, %v6111
        %v6113 = vsel %vm5417, %v5366, 0.0
        %v6114 = vadd.f32 %v6112, %v6113
        %v6115 = vsel %vm5417, %v5367, 0.0
        %v6116 = vadd.f32 %v6114, %v6115
        %v6117 = vsel %vm5417, %v5368, 0.0
        %v6118 = vadd.f32 %v6116, %v6117
        %v6119 = vrot.slane %v6118, 4
        %v6120 = vadd.f32 %v6118, %v6119
        %v6121 = vrot.slane %v6120, 2
        %v6122 = vadd.f32 %v6120, %v6121
        %v6123 = vrot.slane %v6122, 1
        %v6124 = vadd.f32 %v6122, %v6123
        %v6125 = vsel %vm5417, %v5369, 0.0
        %v6126 = vsel %vm5417, %v5370, 0.0
        %v6127 = vadd.f32 %v6125, %v6126
        %v6128 = vsel %vm5417, %v5371, 0.0
        %v6129 = vadd.f32 %v6127, %v6128
        %v6130 = vsel %vm5417, %v5372, 0.0
        %v6131 = vadd.f32 %v6129, %v6130
        %v6132 = vsel %vm5417, %v5373, 0.0
        %v6133 = vadd.f32 %v6131, %v6132
        %v6134 = vsel %vm5417, %v5374, 0.0
        %v6135 = vadd.f32 %v6133, %v6134
        %v6136 = vsel %vm5417, %v5375, 0.0
        %v6137 = vadd.f32 %v6135, %v6136
        %v6138 = vsel %vm5417, %v5376, 0.0
        %v6139 = vadd.f32 %v6137, %v6138
        %v6140 = vsel %vm5417, %v5377, 0.0
        %v6141 = vadd.f32 %v6139, %v6140
        %v6142 = vsel %vm5417, %v5378, 0.0
        %v6143 = vadd.f32 %v6141, %v6142
        %v6144 = vsel %vm5417, %v5379, 0.0
        %v6145 = vadd.f32 %v6143, %v6144
        %v6146 = vsel %vm5417, %v5380, 0.0
        %v6147 = vadd.f32 %v6145, %v6146
        %v6148 = vsel %vm5417, %v5381, 0.0
        %v6149 = vadd.f32 %v6147, %v6148
        %v6150 = vsel %vm5417, %v5382, 0.0
        %v6151 = vadd.f32 %v6149, %v6150
        %v6152 = vsel %vm5417, %v5383, 0.0
        %v6153 = vadd.f32 %v6151, %v6152
        %v6154 = vsel %vm5417, %v5384, 0.0
        %v6155 = vadd.f32 %v6153, %v6154
        %v6156 = vsel %vm5417, %v5385, 0.0
        %v6157 = vadd.f32 %v6155, %v6156
        %v6158 = vsel %vm5417, %v5386, 0.0
        %v6159 = vadd.f32 %v6157, %v6158
        %v6160 = vsel %vm5417, %v5387, 0.0
        %v6161 = vadd.f32 %v6159, %v6160
        %v6162 = vsel %vm5417, %v5388, 0.0
        %v6163 = vadd.f32 %v6161, %v6162
        %v6164 = vsel %vm5417, %v5389, 0.0
        %v6165 = vadd.f32 %v6163, %v6164
        %v6166 = vsel %vm5417, %v5390, 0.0
        %v6167 = vadd.f32 %v6165, %v6166
        %v6168 = vsel %vm5417, %v5391, 0.0
        %v6169 = vadd.f32 %v6167, %v6168
        %v6170 = vsel %vm5417, %v5392, 0.0
        %v6171 = vadd.f32 %v6169, %v6170
        %v6172 = vsel %vm5417, %v5393, 0.0
        %v6173 = vadd.f32 %v6171, %v6172
        %v6174 = vsel %vm5417, %v5394, 0.0
        %v6175 = vadd.f32 %v6173, %v6174
        %v6176 = vsel %vm5417, %v5395, 0.0
        %v6177 = vadd.f32 %v6175, %v6176
        %v6178 = vsel %vm5417, %v5396, 0.0
        %v6179 = vadd.f32 %v6177, %v6178
        %v6180 = vsel %vm5417, %v5397, 0.0
        %v6181 = vadd.f32 %v6179, %v6180
        %v6182 = vsel %vm5417, %v5398, 0.0
        %v6183 = vadd.f32 %v6181, %v6182
        %v6184 = vsel %vm5417, %v5399, 0.0
        %v6185 = vadd.f32 %v6183, %v6184
        %v6186 = vsel %vm5417, %v5400, 0.0
        %v6187 = vadd.f32 %v6185, %v6186
        %v6188 = vsel %vm5417, %v5401, 0.0
        %v6189 = vadd.f32 %v6187, %v6188
        %v6190 = vsel %vm5417, %v5402, 0.0
        %v6191 = vadd.f32 %v6189, %v6190
        %v6192 = vsel %vm5417, %v5403, 0.0
        %v6193 = vadd.f32 %v6191, %v6192
        %v6194 = vsel %vm5417, %v5404, 0.0
        %v6195 = vadd.f32 %v6193, %v6194
        %v6196 = vsel %vm5417, %v5405, 0.0
        %v6197 = vadd.f32 %v6195, %v6196
        %v6198 = vsel %vm5417, %v5406, 0.0
        %v6199 = vadd.f32 %v6197, %v6198
        %v6200 = vsel %vm5417, %v5407, 0.0
        %v6201 = vadd.f32 %v6199, %v6200
        %v6202 = vsel %vm5417, %v5408, 0.0
        %v6203 = vadd.f32 %v6201, %v6202
        %v6204 = vsel %vm5417, %v5409, 0.0
        %v6205 = vadd.f32 %v6203, %v6204
        %v6206 = vsel %vm5417, %v5410, 0.0
        %v6207 = vadd.f32 %v6205, %v6206
        %v6208 = vsel %vm5417, %v5411, 0.0
        %v6209 = vadd.f32 %v6207, %v6208
        %v6210 = vsel %vm5417, %v5412, 0.0
        %v6211 = vadd.f32 %v6209, %v6210
        %v6212 = vsel %vm5417, %v5413, 0.0
        %v6213 = vadd.f32 %v6211, %v6212
        %v6214 = vsel %vm5417, %v5414, 0.0
        %v6215 = vadd.f32 %v6213, %v6214
        %v6216 = vsel %vm5417, %v5415, 0.0
        %v6217 = vadd.f32 %v6215, %v6216
        %v6218 = vsel %vm5417, %v5416, 0.0
        %v6219 = vadd.f32 %v6217, %v6218
        %v6220 = vrot.slane %v6219, 4
        %v6221 = vadd.f32 %v6219, %v6220
        %v6222 = vrot.slane %v6221, 2
        %v6223 = vadd.f32 %v6221, %v6222
        %v6224 = vrot.slane %v6223, 1
        %v6225 = vadd.f32 %v6223, %v6224
        %v6234 = vsel %vm5005, %v5619, %v5518
        %v6235 = vsel %vm5007, %v5720, %v6234
        %v6236 = vsel %vm5009, %v5821, %v6235
        %v6237 = vsel %vm5011, %v5922, %v6236
        %v6238 = vsel %vm5013, %v6023, %v6237
        %v6239 = vsel %vm5015, %v6124, %v6238
        %v6240 = vsel %vm5017, %v6225, %v6239
        %v6242 = vadd.f32 %v5032, %v6240
        %6243 = vst.msk [vmem:[#allocation3] sm:$0xff] %vm5417, %v6242
        // Predicated region
        $region49: #{tpu_custom_call.1} parent=35 // pred_check
          %p6244 = pneg %p291
        $region50: #{tpu_custom_call.1} parent=35 // pred_check_branch
          %6246 = sbr.rel (%p6244) target = $region52
        $region51: #{tpu_custom_call.1} parent=35 // pred_region
          %v6247 = vld [vmem:[#allocation3] sm:$0xff]
          %v6248 = vld [vmem:[#allocation2] sm:$0xff]
          %v6249 = vld [vmem:[#allocation2 + $0x8] sm:$0xff]
          %v6250 = vld [vmem:[#allocation7] sm:$0x3]
          %v6252 = vlaneseq
          %v6253 = vshrl.u32 %v6252, 7
          %v6254 = vsub.s32 0, %v6253
          %v6255 = vrot.slane %v6250, %v6254
          %v6256 = vlaneseq
          %v6257 = vshrl.u32 %v6256, 7
          %v6258 = vsub.s32 1, %v6257
          %v6259 = vrot.slane %v6250, %v6258
          %v6262 = vmul.f32 %v6248, %v6255
          %v6263 = vmul.f32 %v6249, %v6259
          %v6264 = vadd.f32 %v6262, %v6263
          %6265 = vadd.xlane.f32.xlu0 %v6264
          %v6266 = vpop.xlane.xlu0 %6265
          %v6267 = vrcp.pop %v6247
          %v6268 = vmul.f32 %v6266, %v6267
          %s6269 = sld [smem:[#allocation4]]
          %v6270 = vstv %s6269
          %v6271 = vadd.f32 %v6268, %v6270
          %6272 = vst.msk [vmem:[%s290] sm:$0xff] %vm5417, %v6271
        $region52: #{tpu_custom_call.1} parent=35 // pred_fallthru
          _
        %p6273 = scmp.lt.s32.totalorder %s24, 1
        %s6274 = scalar_select %p6273, %s24, 1
        %s6275 = smul.addr %s6274, 8
        %s6276 = scalar_lea.vmem %s4, %s6275
        // Predicated region
        $region53: #{tpu_custom_call.1} parent=35 // pred_check
          %p6277 = pneg %p148
        $region54: #{tpu_custom_call.1} parent=35 // pred_check_branch
          %6279 = sbr.rel (%p6277) target = $region56
        $region55: #{tpu_custom_call.1} parent=35 // pred_region
          _
        $region56: #{tpu_custom_call.1} parent=35 // pred_fallthru
          _
      $region36: #{tpu_custom_call.1} parent=5 // pred_fallthru
        _
      %p6280 = scmp.le.s32.totalorder 2, %s15
      // Predicated region
      $region57: #{tpu_custom_call.1} parent=5 // pred_check
        %p6281 = pneg %p6280
      $region58: #{tpu_custom_call.1} parent=5 // pred_check_branch
        %6283 = sbr.rel (%p6281) target = $region60
      $region59: #{tpu_custom_call.1} parent=5 // pred_region
        %s6284 = ssub.s32 %s15, 2
        // Predicated region
        $region61: #{tpu_custom_call.1} parent=59 // pred_check
          %p6285 = pneg %p154
        $region62: #{tpu_custom_call.1} parent=59 // pred_check_branch
          %6287 = sbr.rel (%p6285) target = $region64
        $region63: #{tpu_custom_call.1} parent=59 // pred_region
          %p6288 = scmp.lt.s32.totalorder %s26, 1
          %s6289 = scalar_select %p6288, %s26, 1
          %s6290 = smul.addr %s6289, 8
          %s6291 = scalar_lea.vmem %s4, %s6290
        $region64: #{tpu_custom_call.1} parent=59 // pred_fallthru
          _
      $region60: #{tpu_custom_call.1} parent=5 // pred_fallthru
        _
    $region6: #{tpu_custom_call.1} parent=1 // loop_footer
      %s19 = sadd.s32 1, %s15
    $region7: #{tpu_custom_call.1} parent=1 // loop_footer_branch
      %14 = sbr.rel target = $region3
    $region8: #{tpu_custom_call.1} parent=1 // loop_exit
      _
    %6292 = vsyncpa [#allocation6], 1
    %s6293 = scalar_lea.sflag [#allocation6], 1
    %6294 = vsyncpa %s6293, 1
    %6295 = vsyncpa [#allocation8], 1

</llo_original>
